<compile_context>
chip_gen: v5e
topology: v5e:2x2
jax: 0.10.0
libtpu: 0.0.40
codegen_flags: <defaults>
</compile_context>

<pallas_src>
import math
import functools

import jax
import jax.numpy as jnp
from jax.experimental import pallas as pl
from jax.experimental.pallas import tpu as pltpu


_NEG_INF = -1e30


def _round_up(x, m):
    return ((x + m - 1) // m) * m


# ----------------------------------------------------------------------------
# Fused decoder stack: all layers (cross-attn + self-attn + FFN + 3x LayerNorm)
# in a single pallas_call.  grid = (batch, layer).
# ----------------------------------------------------------------------------

def _decoder_stack_kernel(mask_ref, qfeat_ref, qpos_ref, mem_ref, kmem_ref,
                          w_attn_ref, b_attn_ref, ln_ref,
                          w1_ref, b1_ref, w2_ref, b2_ref,
                          out_ref, *, nheads):
    layer = pl.program_id(1)

    @pl.when(layer == 0)
    def _():
        out_ref[...] = qfeat_ref[...]          # init the resident tgt block

    E = out_ref.shape[-1]
    dh = E // nheads
    scale = 1.0 / math.sqrt(dh)
    bf16 = jnp.bfloat16

    def brow(ref, i):                          # (1, E) static row of a packed table
        return ref[pl.ds(i, 1), :]

    def mha(x_q, x_k, x_v, base, attn_bias):
        # Full-width Q/K/V projections (bf16 MXU operands, f32 accumulation).
        q = jnp.dot(x_q.astype(bf16), w_attn_ref[base + 0],
                    preferred_element_type=jnp.float32) + brow(b_attn_ref, base + 0)
        k = jnp.dot(x_k.astype(bf16), w_attn_ref[base + 1],
                    preferred_element_type=jnp.float32) + brow(b_attn_ref, base + 1)
        v = jnp.dot(x_v.astype(bf16), w_attn_ref[base + 2],
                    preferred_element_type=jnp.float32) + brow(b_attn_ref, base + 2)
        q16, k16, v16 = q.astype(bf16), k.astype(bf16), v.astype(bf16)

        heads = []
        # TODO(synk): batch heads in a single dot_general (head as batch dim)
        # once the in-kernel lane-splitting relayout is verified cheap.
        for h in range(nheads):
            lo, hi = h * dh, (h + 1) * dh
            # A . B^T form: contract last dims of both operands, no transpose.
            s = jax.lax.dot_general(
                q16[:, lo:hi], k16[:, lo:hi],
                dimension_numbers=(((1,), (1,)), ((), ())),
                preferred_element_type=jnp.float32) * scale
            if attn_bias is not None:
                s = s + attn_bias              # additive key-padding mask
            s = s - jnp.max(s, axis=-1, keepdims=True)
            p = jnp.exp(s)
            p = p * pl.reciprocal(jnp.sum(p, axis=-1, keepdims=True), approx=True)
            heads.append(jnp.dot(p.astype(bf16), v16[:, lo:hi],
                                 preferred_element_type=jnp.float32))
        o = jnp.concatenate(heads, axis=-1)    # (Q, E)
        # Single full-E output projection (one MXU drain instead of nheads).
        return jnp.dot(o.astype(bf16), w_attn_ref[base + 3],
                       preferred_element_type=jnp.float32) + brow(b_attn_ref, base + 3)

    def layer_norm(y, gi, bi):
        mu = jnp.mean(y, axis=-1, keepdims=True)
        var = jnp.mean((y - mu) * (y - mu), axis=-1, keepdims=True)
        return ((y - mu) * jax.lax.rsqrt(var + 1e-5) * brow(ln_ref, gi)
                + brow(ln_ref, bi))

    tgt = out_ref[...].astype(jnp.float32)     # (Q, E), VMEM-resident
    qpos = qpos_ref[...].astype(jnp.float32)   # (Q, E)
    mem = mem_ref[...]                         # (S, E) bf16 (values)
    kmem = kmem_ref[...]                       # (S, E) bf16 (memory + pos, keys)
    attn_bias = mask_ref[...]                  # (1, S) f32 additive mask

    # cross-attention + residual + LayerNorm  (weights 0..3, ln rows 0,1)
    tgt = layer_norm(tgt + mha(tgt + qpos, kmem, mem, 0, attn_bias), 0, 1)
    # self-attention  + residual + LayerNorm  (weights 4..7, ln rows 2,3)
    qk = tgt + qpos
    tgt = layer_norm(tgt + mha(qk, qk, tgt, 4, None), 2, 3)
    # FFN + residual + LayerNorm               (ln rows 4,5)
    hidden = jnp.maximum(
        jnp.dot(tgt.astype(bf16), w1_ref[...],
                preferred_element_type=jnp.float32) + b1_ref[...], 0.0)
    y = jnp.dot(hidden.astype(bf16), w2_ref[...],
                preferred_element_type=jnp.float32) + b2_ref[...]
    tgt = layer_norm(tgt + y, 4, 5)

    out_ref[...] = tgt.astype(out_ref.dtype)


def pallas_decoder_stack(params, mem, kmem, mask, nheads, num_layers):
    """mem/kmem:(nl,B,S,E) bf16  mask:(nl,1,S) f32  ->  (B,Q,E) f32."""
    nl, B, S, E = mem.shape
    Q = params["query_feat"].shape[0]
    Fd = params["w1_all"].shape[-1]
    kernel = functools.partial(_decoder_stack_kernel, nheads=nheads)
    return pl.pallas_call(
        kernel,
        out_shape=jax.ShapeDtypeStruct((B, Q, E), jnp.float32),
        grid=(B, num_layers),
        in_specs=[
            pl.BlockSpec((None, 1, S), lambda b, l: (l % nl, 0, 0)),          # mask
            pl.BlockSpec((Q, E), lambda b, l: (0, 0)),                        # query_feat
            pl.BlockSpec((Q, E), lambda b, l: (0, 0)),                        # query_embed
            pl.BlockSpec((None, None, S, E), lambda b, l: (l % nl, b, 0, 0)), # memory (V)
            pl.BlockSpec((None, None, S, E), lambda b, l: (l % nl, b, 0, 0)), # memory+pos (K)
            pl.BlockSpec((None, 8, E, E), lambda b, l: (l, 0, 0, 0)),         # attn weights
            pl.BlockSpec((None, 8, E), lambda b, l: (l, 0, 0)),               # attn biases
            pl.BlockSpec((None, 6, E), lambda b, l: (l, 0, 0)),               # LN gamma/beta
            pl.BlockSpec((None, E, Fd), lambda b, l: (l, 0, 0)),              # ffn w1
            pl.BlockSpec((None, 1, Fd), lambda b, l: (l, 0, 0)),              # ffn b1
            pl.BlockSpec((None, Fd, E), lambda b, l: (l, 0, 0)),              # ffn w2
            pl.BlockSpec((None, 1, E), lambda b, l: (l, 0, 0)),               # ffn b2
        ],
        out_specs=pl.BlockSpec((None, Q, E), lambda b, l: (b, 0, 0)),
        compiler_params=pltpu.CompilerParams(
            dimension_semantics=("parallel", "arbitrary"),
            vmem_limit_bytes=64 * 1024 * 1024),
    )(mask, params["query_feat"], params["query_embed"], mem, kmem,
      params["w_attn_all"], params["b_attn_all"], params["ln_all"],
      params["w1_all"], params["b1_all"], params["w2_all"], params["b2_all"])


# ----------------------------------------------------------------------------
# Input projection (1x1 conv) fused with level-embed bias and the
# "memory + pos" key precompute.  S-tiled; bf16 outputs.
# ----------------------------------------------------------------------------

def _input_proj_kernel(x_ref, w_ref, b_ref, p_ref, src_ref, key_ref):
    s = jnp.dot(x_ref[...].astype(jnp.bfloat16), w_ref[...],
                preferred_element_type=jnp.float32) + b_ref[...]
    src_ref[...] = s.astype(src_ref.dtype)
    key_ref[...] = (s + p_ref[...]).astype(key_ref.dtype)


def pallas_input_proj(x_bsc, w_bf16, bias, pos, *, ts=512):
    """x:(B,S,Cin) f32  w:(Cin,E) bf16  bias:(1,E)  pos:(B,S,E) -> 2x (B,S_pad,E) bf16."""
    B, S, Cin = x_bsc.shape
    E = w_bf16.shape[1]
    ts = min(ts, _round_up(S, 8))
    S_pad = _round_up(S, ts)
    if S_pad != S:
        x_bsc = jnp.pad(x_bsc, ((0, 0), (0, S_pad - S), (0, 0)))
        pos = jnp.pad(pos, ((0, 0), (0, S_pad - S), (0, 0)))
    return pl.pallas_call(
        _input_proj_kernel,
        out_shape=(jax.ShapeDtypeStruct((B, S_pad, E), jnp.bfloat16),
                   jax.ShapeDtypeStruct((B, S_pad, E), jnp.bfloat16)),
        grid=(B, S_pad // ts),
        in_specs=[
            pl.BlockSpec((None, ts, Cin), lambda b, s: (b, s, 0)),
            pl.BlockSpec((Cin, E), lambda b, s: (0, 0)),
            pl.BlockSpec((1, E), lambda b, s: (0, 0)),
            pl.BlockSpec((None, ts, E), lambda b, s: (b, s, 0)),
        ],
        out_specs=(pl.BlockSpec((None, ts, E), lambda b, s: (b, s, 0)),
                   pl.BlockSpec((None, ts, E), lambda b, s: (b, s, 0))),
        compiler_params=pltpu.CompilerParams(
            dimension_semantics=("parallel", "parallel")),
    )(x_bsc, w_bf16, bias, pos)


# ----------------------------------------------------------------------------
# decoder_norm (residual-free LayerNorm) + 3-layer color_embed MLP, fused,
# tiled over rows.
# ----------------------------------------------------------------------------

def _head_kernel(x_ref, ln_ref, w1_ref, b1_ref, w2_ref, b2_ref,
                 w3_ref, b3_ref, o_ref):
    bf16 = jnp.bfloat16
    xv = x_ref[...].astype(jnp.float32)
    mu = jnp.mean(xv, axis=-1, keepdims=True)
    var = jnp.mean((xv - mu) * (xv - mu), axis=-1, keepdims=True)
    y = ((xv - mu) * jax.lax.rsqrt(var + 1e-5)
         * ln_ref[pl.ds(0, 1), :] + ln_ref[pl.ds(1, 1), :])
    h = jnp.maximum(jnp.dot(y.astype(bf16), w1_ref[...],
                            preferred_element_type=jnp.float32) + b1_ref[...], 0.0)
    h = jnp.maximum(jnp.dot(h.astype(bf16), w2_ref[...],
                            preferred_element_type=jnp.float32) + b2_ref[...], 0.0)
    o_ref[...] = (jnp.dot(h.astype(bf16), w3_ref[...],
                          preferred_element_type=jnp.float32)
                  + b3_ref[...]).astype(o_ref.dtype)


def pallas_head(x, p, *, tm=256):
    """x:(M,E) f32 -> (M,Cemb) f32."""
    M, E = x.shape
    Cemb = p["w3"].shape[1]
    tm = min(tm, _round_up(M, 8))
    M_pad = _round_up(M, tm)
    if M_pad != M:
        x = jnp.pad(x, ((0, M_pad - M), (0, 0)))
    out = pl.pallas_call(
        _head_kernel,
        out_shape=jax.ShapeDtypeStruct((M_pad, Cemb), jnp.float32),
        grid=(M_pad // tm,),
        in_specs=[
            pl.BlockSpec((tm, E), lambda i: (i, 0)),
            pl.BlockSpec((2, E), lambda i: (0, 0)),
            pl.BlockSpec((E, E), lambda i: (0, 0)),
            pl.BlockSpec((1, E), lambda i: (0, 0)),
            pl.BlockSpec((E, E), lambda i: (0, 0)),
            pl.BlockSpec((1, E), lambda i: (0, 0)),
            pl.BlockSpec((E, Cemb), lambda i: (0, 0)),
            pl.BlockSpec((1, Cemb), lambda i: (0, 0)),
        ],
        out_specs=pl.BlockSpec((tm, Cemb), lambda i: (i, 0)),
        compiler_params=pltpu.CompilerParams(dimension_semantics=("parallel",)),
    )(x, p["ln"], p["w1"], p["b1"], p["w2"], p["b2"], p["w3"], p["b3"])
    return out[:M]


# ----------------------------------------------------------------------------
# einsum('bqc,bcp->bqp') -- per-batch matmul, capped lane-dense P tiles.
# ----------------------------------------------------------------------------

def _bqp_kernel(c_ref, i_ref, o_ref):
    o_ref[...] = jnp.dot(c_ref[...].astype(jnp.bfloat16), i_ref[...],
                         preferred_element_type=jnp.float32).astype(o_ref.dtype)


def pallas_bqc_bchw(color, img_flat_bf16, *, tp=2048):
    """color:(B,Q,C) f32  img:(B,C,P) bf16 -> (B,Q,P) f32."""
    B, Q, C = color.shape
    P = img_flat_bf16.shape[2]
    tp = min(tp, _round_up(P, 128))
    P_pad = _round_up(P, tp)
    if P_pad != P:
        img_flat_bf16 = jnp.pad(img_flat_bf16, ((0, 0), (0, 0), (0, P_pad - P)))
    out = pl.pallas_call(
        _bqp_kernel,
        out_shape=jax.ShapeDtypeStruct((B, Q, P_pad), jnp.float32),
        grid=(B, P_pad // tp),
        in_specs=[
            pl.BlockSpec((None, Q, C), lambda b, p: (b, 0, 0)),
            pl.BlockSpec((None, C, tp), lambda b, p: (b, 0, p)),
        ],
        out_specs=pl.BlockSpec((None, Q, tp), lambda b, p: (b, 0, p)),
        compiler_params=pltpu.CompilerParams(
            dimension_semantics=("parallel", "parallel")),
    )(color, img_flat_bf16)
    return out[:, :, :P]


# ----------------------------------------------------------------------------
# Position embedding (shape-static, computed once outside the jitted forward)
# ----------------------------------------------------------------------------

def position_embedding_sine_bhwc(B, H, W, num_pos_feats, temperature=10000.0,
                                 scale=2.0 * math.pi):
    # TODO(synk): pure-trig table kept in plain JAX; precomputed once, not a hot path.
    ones = jnp.ones((B, H, W), jnp.float32)
    y_embed = jnp.cumsum(ones, axis=1)
    x_embed = jnp.cumsum(ones, axis=2)
    eps = 1e-6
    y_embed = y_embed / (y_embed[:, -1:, :] + eps) * scale
    x_embed = x_embed / (x_embed[:, :, -1:] + eps) * scale
    dim_t = jnp.arange(num_pos_feats, dtype=jnp.float32)
    dim_t = temperature ** (2.0 * jnp.floor(dim_t / 2.0) / num_pos_feats)
    pos_x = x_embed[..., None] / dim_t
    pos_y = y_embed[..., None] / dim_t
    pos_x = jnp.stack((jnp.sin(pos_x[..., 0::2]),
                       jnp.cos(pos_x[..., 1::2])), axis=4).reshape(B, H, W, -1)
    pos_y = jnp.stack((jnp.sin(pos_y[..., 0::2]),
                       jnp.cos(pos_y[..., 1::2])), axis=4).reshape(B, H, W, -1)
    return jnp.concatenate((pos_y, pos_x), axis=3)     # (B, H, W, 2*num_pos_feats)


# ----------------------------------------------------------------------------
# Forward pass
# ----------------------------------------------------------------------------

def multi_scale_color_decoder_forward(params, xs, pos_list, img_features, cfg):
    E = cfg["hidden_dim"]
    nheads = cfg["nheads"]
    nl = cfg["num_scales"]
    L = cfg["dec_layers"]
    B = xs[0].shape[0]

    srcs, kmems, valid = [], [], []
    for i in range(nl):
        x = xs[i]                                      # (B, Cin, H, W) NCHW
        _, Cin, H, W = x.shape
        S = H * W
        # TODO(synk): NCHW -> (B, HW, Cin) relayout stays one plain XLA transpose.
        x_bsc = x.transpose(0, 2, 3, 1).reshape(B, S, Cin)
        bias = params["input_proj"][i]["b"] + params["level_embed"][i:i + 1, :]
        s_i, k_i = pallas_input_proj(x_bsc, params["input_proj"][i]["w"],
                                     bias, pos_list[i])
        srcs.append(s_i)
        kmems.append(k_i)
        valid.append(S)

    # Pad every level to a common S and stack (levels selected by index_map).
    S_stack = max(s.shape[1] for s in srcs)

    def pad_s(a):
        return jnp.pad(a, ((0, 0), (0, S_stack - a.shape[1]), (0, 0)))

    mem = jnp.stack([pad_s(s) for s in srcs])          # (nl, B, S_stack, E) bf16
    kmem = jnp.stack([pad_s(k) for k in kmems])        # (nl, B, S_stack, E) bf16

    # Additive key-padding mask per level (0 = valid, -1e30 = padded key).
    col = jnp.arange(S_stack, dtype=jnp.int32)[None, None, :]
    lens = jnp.asarray(valid, dtype=jnp.int32)[:, None, None]
    mask = jnp.where(col < lens, 0.0, _NEG_INF).astype(jnp.float32)   # (nl,1,S_stack)

    output = pallas_decoder_stack(params, mem, kmem, mask, nheads, L)  # (B,Q,E) f32

    Q = output.shape[1]
    color = pallas_head(output.reshape(B * Q, E), params["head"]).reshape(B, Q, -1)

    Bi, Ci, Hi, Wi = img_features.shape
    img_flat = img_features.astype(jnp.bfloat16).reshape(Bi, Ci, Hi * Wi)
    out = pallas_bqc_bchw(color, img_flat)
    return out.reshape(B, Q, Hi, Wi)


# ----------------------------------------------------------------------------
# Deterministic synthetic parameters (shapes follow the PyTorch __init__)
# ----------------------------------------------------------------------------

def init_params(key, cfg):
    E = cfg["hidden_dim"]
    Fd = cfg["dim_feedforward"]
    Q = cfg["num_queries"]
    nl = cfg["num_scales"]
    L = cfg["dec_layers"]
    Cemb = cfg["color_embed_dim"]

    keys = iter(jax.random.split(key, 4096))

    def lin_w(fin, fout):
        return jax.random.normal(next(keys), (fin, fout), jnp.float32) / math.sqrt(fin)

    ones_e = jnp.ones((E,), jnp.float32)
    zeros_e = jnp.zeros((E,), jnp.float32)

    # packed order per layer: [cross q,k,v,o, self q,k,v,o]
    w_attn = jnp.stack([jnp.stack([lin_w(E, E) for _ in range(8)]) for _ in range(L)])
    # packed LN rows: [cross g, cross b, self g, self b, ffn g, ffn b]
    ln = jnp.stack([jnp.stack([ones_e, zeros_e, ones_e, zeros_e, ones_e, zeros_e])
                    for _ in range(L)])
    w1 = jnp.stack([lin_w(E, Fd) for _ in range(L)])
    w2 = jnp.stack([lin_w(Fd, E) for _ in range(L)])

    params = {
        "query_feat": jax.random.normal(next(keys), (Q, E), jnp.float32),
        "query_embed": jax.random.normal(next(keys), (Q, E), jnp.float32),
        "level_embed": jax.random.normal(next(keys), (nl, E), jnp.float32),
        "input_proj": [
            {"w": lin_w(cfg["in_channels"][i], E).astype(jnp.bfloat16),
             "b": jnp.zeros((1, E), jnp.float32)}
            for i in range(nl)
        ],
        # decoder-stack weights packed with a leading layer axis; MXU operands bf16.
        "w_attn_all": w_attn.astype(jnp.bfloat16),          # (L, 8, E, E)
        "b_attn_all": jnp.zeros((L, 8, E), jnp.float32),
        "ln_all": ln,                                       # (L, 6, E)
        "w1_all": w1.astype(jnp.bfloat16),                  # (L, E, Fd)
        "b1_all": jnp.zeros((L, 1, Fd), jnp.float32),
        "w2_all": w2.astype(jnp.bfloat16),                  # (L, Fd, E)
        "b2_all": jnp.zeros((L, 1, E), jnp.float32),
        "head": {                                  # decoder_norm + color_embed MLP
            "ln": jnp.stack([ones_e, zeros_e]),                      # (2, E)
            "w1": lin_w(E, E).astype(jnp.bfloat16),
            "b1": jnp.zeros((1, E), jnp.float32),
            "w2": lin_w(E, E).astype(jnp.bfloat16),
            "b2": jnp.zeros((1, E), jnp.float32),
            "w3": lin_w(E, Cemb).astype(jnp.bfloat16),
            "b3": jnp.zeros((1, Cemb), jnp.float32),
        },
    }
    return params


# ----------------------------------------------------------------------------
# Main
# ----------------------------------------------------------------------------

if __name__ == "__main__":
    cfg = dict(
        in_channels=[8, 8, 8],
        hidden_dim=32,
        num_queries=8,
        nheads=4,
        dim_feedforward=64,
        dec_layers=3,
        color_embed_dim=32,
        num_scales=3,
    )

    key = jax.random.PRNGKey(0)
    k_p, k_x0, k_x1, k_x2, k_img = jax.random.split(key, 5)

    params = init_params(k_p, cfg)

    B = 2
    xs = [
        jax.random.normal(k_x0, (B, 8, 8, 8), jnp.float32),   # NCHW, scale 0
        jax.random.normal(k_x1, (B, 8, 4, 4), jnp.float32),   # NCHW, scale 1
        jax.random.normal(k_x2, (B, 8, 4, 4), jnp.float32),   # NCHW, scale 2
    ]
    img_features = jax.random.normal(k_img, (B, cfg["color_embed_dim"], 16, 16),
                                     jnp.float32)

    # Shape-static position embeddings: computed once, outside the jitted forward.
    E = cfg["hidden_dim"]
    pos_list = []
    for x in xs:
        _, _, H, W = x.shape
        pos_list.append(
            position_embedding_sine_bhwc(B, H, W, E // 2).reshape(B, H * W, E))

    fwd = jax.jit(functools.partial(multi_scale_color_decoder_forward, cfg=cfg))
    out = fwd(params, xs, pos_list, img_features)
    out = jax.block_until_ready(out)

    assert out.shape == (B, cfg["num_queries"], 16, 16), out.shape
    assert bool(jnp.all(jnp.isfinite(out)))
    print("KERNEL_OK")
</pallas_src>

<mosaic_0001>
module attributes {stable_mosaic.version = 11 : i64} {
  func.func @_input_proj_kernel(%arg0: i32, %arg1: i32, %arg2: memref<1x64x8xf32, #tpu.memory_space<vmem>>, %arg3: memref<8x32xbf16, #tpu.memory_space<vmem>>, %arg4: memref<1x32xf32, #tpu.memory_space<vmem>>, %arg5: memref<1x64x32xf32, #tpu.memory_space<vmem>>, %arg6: memref<1x64x32xbf16, #tpu.memory_space<vmem>>, %arg7: memref<1x64x32xbf16, #tpu.memory_space<vmem>>) attributes {dimension_semantics = [#tpu.dimension_semantics<parallel>, #tpu.dimension_semantics<parallel>], iteration_bounds = array<i64: 2, 1>, scalar_prefetch = 0 : i64, scratch_operands = 0 : i64, tpu.core_type = #tpu.core_type<tc>, window_params = [{transform_indices = @transform_0, window_bounds = array<i64: 1, 64, 8>}, {pipeline_mode = #tpu.pipeline_mode<synchronous>, transform_indices = @transform_1, window_bounds = array<i64: 8, 32>}, {pipeline_mode = #tpu.pipeline_mode<synchronous>, transform_indices = @transform_2, window_bounds = array<i64: 1, 32>}, {transform_indices = @transform_3, window_bounds = array<i64: 1, 64, 32>}, {transform_indices = @transform_4, window_bounds = array<i64: 1, 64, 32>}, {transform_indices = @transform_5, window_bounds = array<i64: 1, 64, 32>}]} {
    %c0 = arith.constant 0 : index
    %c0_0 = arith.constant 0 : index
    %c0_1 = arith.constant 0 : index
    %0 = vector.load %arg2[%c0, %c0_0, %c0_1] : memref<1x64x8xf32, #tpu.memory_space<vmem>>, vector<1x64x8xf32>
    %1 = vector.shape_cast %0 : vector<1x64x8xf32> to vector<64x8xf32>
    %2 = arith.truncf %1 : vector<64x8xf32> to vector<64x8xbf16>
    %c0_2 = arith.constant 0 : index
    %c0_3 = arith.constant 0 : index
    %3 = vector.load %arg3[%c0_2, %c0_3] : memref<8x32xbf16, #tpu.memory_space<vmem>>, vector<8x32xbf16>
    %cst = arith.constant dense<0.000000e+00> : vector<64x32xf32>
    %4 = tpu.matmul %2, %3, %cst {dimension_numbers = #tpu.dot_dimension_numbers<[1], [0], [0], [1], [0, 0, 1, 1], [], []>} : vector<64x8xbf16>, vector<8x32xbf16>, vector<64x32xf32> -> vector<64x32xf32>
    %c0_4 = arith.constant 0 : index
    %c0_5 = arith.constant 0 : index
    %5 = vector.load %arg4[%c0_4, %c0_5] : memref<1x32xf32, #tpu.memory_space<vmem>>, vector<1x32xf32>
    %6 = vector.broadcast %5 : vector<1x32xf32> to vector<64x32xf32>
    %7 = arith.addf %4, %6 : vector<64x32xf32>
    %8 = arith.truncf %7 : vector<64x32xf32> to vector<64x32xbf16>
    %c0_6 = arith.constant 0 : index
    %c0_7 = arith.constant 0 : index
    %c0_8 = arith.constant 0 : index
    %9 = vector.load %arg6[%c0_6, %c0_7, %c0_8] : memref<1x64x32xbf16, #tpu.memory_space<vmem>>, vector<1x64x32xbf16>
    %10 = vector.shape_cast %9 : vector<1x64x32xbf16> to vector<64x32xbf16>
    %11 = vector.shape_cast %8 : vector<64x32xbf16> to vector<1x64x32xbf16>
    tpu.vector_store %arg6[%c0_6, %c0_7, %c0_8], %11 {strides = array<i32>} : memref<1x64x32xbf16, #tpu.memory_space<vmem>>, vector<1x64x32xbf16>,
    %c0_9 = arith.constant 0 : index
    %c0_10 = arith.constant 0 : index
    %c0_11 = arith.constant 0 : index
    %12 = vector.load %arg5[%c0_9, %c0_10, %c0_11] : memref<1x64x32xf32, #tpu.memory_space<vmem>>, vector<1x64x32xf32>
    %13 = vector.shape_cast %12 : vector<1x64x32xf32> to vector<64x32xf32>
    %14 = arith.addf %7, %13 : vector<64x32xf32>
    %15 = arith.truncf %14 : vector<64x32xf32> to vector<64x32xbf16>
    %c0_12 = arith.constant 0 : index
    %c0_13 = arith.constant 0 : index
    %c0_14 = arith.constant 0 : index
    %16 = vector.load %arg7[%c0_12, %c0_13, %c0_14] : memref<1x64x32xbf16, #tpu.memory_space<vmem>>, vector<1x64x32xbf16>
    %17 = vector.shape_cast %16 : vector<1x64x32xbf16> to vector<64x32xbf16>
    %18 = vector.shape_cast %15 : vector<64x32xbf16> to vector<1x64x32xbf16>
    tpu.vector_store %arg7[%c0_12, %c0_13, %c0_14], %18 {strides = array<i32>} : memref<1x64x32xbf16, #tpu.memory_space<vmem>>, vector<1x64x32xbf16>,
    return
  }
  func.func @transform_0(%arg0: i32, %arg1: i32) -> (i32, i32, i32) {
    %c0_i32 = arith.constant 0 : i32
    %c0_i32_0 = arith.constant 0 : i32
    return %arg0, %arg1, %c0_i32 : i32, i32, i32
  }
  func.func @transform_1(%arg0: i32, %arg1: i32) -> (i32, i32) {
    %c0_i32 = arith.constant 0 : i32
    %c0_i32_0 = arith.constant 0 : i32
    %c0_i32_1 = arith.constant 0 : i32
    return %c0_i32, %c0_i32_0 : i32, i32
  }
  func.func @transform_2(%arg0: i32, %arg1: i32) -> (i32, i32) {
    %c0_i32 = arith.constant 0 : i32
    %c0_i32_0 = arith.constant 0 : i32
    %c0_i32_1 = arith.constant 0 : i32
    return %c0_i32, %c0_i32_0 : i32, i32
  }
  func.func @transform_3(%arg0: i32, %arg1: i32) -> (i32, i32, i32) {
    %c0_i32 = arith.constant 0 : i32
    %c0_i32_0 = arith.constant 0 : i32
    return %arg0, %arg1, %c0_i32 : i32, i32, i32
  }
  func.func @transform_4(%arg0: i32, %arg1: i32) -> (i32, i32, i32) {
    %c0_i32 = arith.constant 0 : i32
    %c0_i32_0 = arith.constant 0 : i32
    return %arg0, %arg1, %c0_i32 : i32, i32, i32
  }
  func.func @transform_5(%arg0: i32, %arg1: i32) -> (i32, i32, i32) {
    %c0_i32 = arith.constant 0 : i32
    %c0_i32_0 = arith.constant 0 : i32
    return %arg0, %arg1, %c0_i32 : i32, i32, i32
  }
}

module attributes {stable_mosaic.version = 11 : i64} {
  func.func @_input_proj_kernel(%arg0: i32, %arg1: i32, %arg2: memref<1x16x8xf32, #tpu.memory_space<vmem>>, %arg3: memref<8x32xbf16, #tpu.memory_space<vmem>>, %arg4: memref<1x32xf32, #tpu.memory_space<vmem>>, %arg5: memref<1x16x32xf32, #tpu.memory_space<vmem>>, %arg6: memref<1x16x32xbf16, #tpu.memory_space<vmem>>, %arg7: memref<1x16x32xbf16, #tpu.memory_space<vmem>>) attributes {dimension_semantics = [#tpu.dimension_semantics<parallel>, #tpu.dimension_semantics<parallel>], iteration_bounds = array<i64: 2, 1>, scalar_prefetch = 0 : i64, scratch_operands = 0 : i64, tpu.core_type = #tpu.core_type<tc>, window_params = [{transform_indices = @transform_0, window_bounds = array<i64: 1, 16, 8>}, {pipeline_mode = #tpu.pipeline_mode<synchronous>, transform_indices = @transform_1, window_bounds = array<i64: 8, 32>}, {pipeline_mode = #tpu.pipeline_mode<synchronous>, transform_indices = @transform_2, window_bounds = array<i64: 1, 32>}, {transform_indices = @transform_3, window_bounds = array<i64: 1, 16, 32>}, {transform_indices = @transform_4, window_bounds = array<i64: 1, 16, 32>}, {transform_indices = @transform_5, window_bounds = array<i64: 1, 16, 32>}]} {
    %c0 = arith.constant 0 : index
    %c0_0 = arith.constant 0 : index
    %c0_1 = arith.constant 0 : index
    %0 = vector.load %arg2[%c0, %c0_0, %c0_1] : memref<1x16x8xf32, #tpu.memory_space<vmem>>, vector<1x16x8xf32>
    %1 = vector.shape_cast %0 : vector<1x16x8xf32> to vector<16x8xf32>
    %2 = arith.truncf %1 : vector<16x8xf32> to vector<16x8xbf16>
    %c0_2 = arith.constant 0 : index
    %c0_3 = arith.constant 0 : index
    %3 = vector.load %arg3[%c0_2, %c0_3] : memref<8x32xbf16, #tpu.memory_space<vmem>>, vector<8x32xbf16>
    %cst = arith.constant dense<0.000000e+00> : vector<16x32xf32>
    %4 = tpu.matmul %2, %3, %cst {dimension_numbers = #tpu.dot_dimension_numbers<[1], [0], [0], [1], [0, 0, 1, 1], [], []>} : vector<16x8xbf16>, vector<8x32xbf16>, vector<16x32xf32> -> vector<16x32xf32>
    %c0_4 = arith.constant 0 : index
    %c0_5 = arith.constant 0 : index
    %5 = vector.load %arg4[%c0_4, %c0_5] : memref<1x32xf32, #tpu.memory_space<vmem>>, vector<1x32xf32>
    %6 = vector.broadcast %5 : vector<1x32xf32> to vector<16x32xf32>
    %7 = arith.addf %4, %6 : vector<16x32xf32>
    %8 = arith.truncf %7 : vector<16x32xf32> to vector<16x32xbf16>
    %c0_6 = arith.constant 0 : index
    %c0_7 = arith.constant 0 : index
    %c0_8 = arith.constant 0 : index
    %9 = vector.load %arg6[%c0_6, %c0_7, %c0_8] : memref<1x16x32xbf16, #tpu.memory_space<vmem>>, vector<1x16x32xbf16>
    %10 = vector.shape_cast %9 : vector<1x16x32xbf16> to vector<16x32xbf16>
    %11 = vector.shape_cast %8 : vector<16x32xbf16> to vector<1x16x32xbf16>
    tpu.vector_store %arg6[%c0_6, %c0_7, %c0_8], %11 {strides = array<i32>} : memref<1x16x32xbf16, #tpu.memory_space<vmem>>, vector<1x16x32xbf16>,
    %c0_9 = arith.constant 0 : index
    %c0_10 = arith.constant 0 : index
    %c0_11 = arith.constant 0 : index
    %12 = vector.load %arg5[%c0_9, %c0_10, %c0_11] : memref<1x16x32xf32, #tpu.memory_space<vmem>>, vector<1x16x32xf32>
    %13 = vector.shape_cast %12 : vector<1x16x32xf32> to vector<16x32xf32>
    %14 = arith.addf %7, %13 : vector<16x32xf32>
    %15 = arith.truncf %14 : vector<16x32xf32> to vector<16x32xbf16>
    %c0_12 = arith.constant 0 : index
    %c0_13 = arith.constant 0 : index
    %c0_14 = arith.constant 0 : index
    %16 = vector.load %arg7[%c0_12, %c0_13, %c0_14] : memref<1x16x32xbf16, #tpu.memory_space<vmem>>, vector<1x16x32xbf16>
    %17 = vector.shape_cast %16 : vector<1x16x32xbf16> to vector<16x32xbf16>
    %18 = vector.shape_cast %15 : vector<16x32xbf16> to vector<1x16x32xbf16>
    tpu.vector_store %arg7[%c0_12, %c0_13, %c0_14], %18 {strides = array<i32>} : memref<1x16x32xbf16, #tpu.memory_space<vmem>>, vector<1x16x32xbf16>,
    return
  }
  func.func @transform_0(%arg0: i32, %arg1: i32) -> (i32, i32, i32) {
    %c0_i32 = arith.constant 0 : i32
    %c0_i32_0 = arith.constant 0 : i32
    return %arg0, %arg1, %c0_i32 : i32, i32, i32
  }
  func.func @transform_1(%arg0: i32, %arg1: i32) -> (i32, i32) {
    %c0_i32 = arith.constant 0 : i32
    %c0_i32_0 = arith.constant 0 : i32
    %c0_i32_1 = arith.constant 0 : i32
    return %c0_i32, %c0_i32_0 : i32, i32
  }
  func.func @transform_2(%arg0: i32, %arg1: i32) -> (i32, i32) {
    %c0_i32 = arith.constant 0 : i32
    %c0_i32_0 = arith.constant 0 : i32
    %c0_i32_1 = arith.constant 0 : i32
    return %c0_i32, %c0_i32_0 : i32, i32
  }
  func.func @transform_3(%arg0: i32, %arg1: i32) -> (i32, i32, i32) {
    %c0_i32 = arith.constant 0 : i32
    %c0_i32_0 = arith.constant 0 : i32
    return %arg0, %arg1, %c0_i32 : i32, i32, i32
  }
  func.func @transform_4(%arg0: i32, %arg1: i32) -> (i32, i32, i32) {
    %c0_i32 = arith.constant 0 : i32
    %c0_i32_0 = arith.constant 0 : i32
    return %arg0, %arg1, %c0_i32 : i32, i32, i32
  }
  func.func @transform_5(%arg0: i32, %arg1: i32) -> (i32, i32, i32) {
    %c0_i32 = arith.constant 0 : i32
    %c0_i32_0 = arith.constant 0 : i32
    return %arg0, %arg1, %c0_i32 : i32, i32, i32
  }
}

module attributes {stable_mosaic.version = 11 : i64} {
  func.func @_head_kernel(%arg0: i32, %arg1: memref<16x32xf32, #tpu.memory_space<vmem>>, %arg2: memref<2x32xf32, #tpu.memory_space<vmem>>, %arg3: memref<32x32xbf16, #tpu.memory_space<vmem>>, %arg4: memref<1x32xf32, #tpu.memory_space<vmem>>, %arg5: memref<32x32xbf16, #tpu.memory_space<vmem>>, %arg6: memref<1x32xf32, #tpu.memory_space<vmem>>, %arg7: memref<32x32xbf16, #tpu.memory_space<vmem>>, %arg8: memref<1x32xf32, #tpu.memory_space<vmem>>, %arg9: memref<16x32xf32, #tpu.memory_space<vmem>>) attributes {dimension_semantics = [#tpu.dimension_semantics<parallel>], iteration_bounds = array<i64: 1>, scalar_prefetch = 0 : i64, scratch_operands = 0 : i64, tpu.core_type = #tpu.core_type<tc>, window_params = [{transform_indices = @transform_0, window_bounds = array<i64: 16, 32>}, {pipeline_mode = #tpu.pipeline_mode<synchronous>, transform_indices = @transform_1, window_bounds = array<i64: 2, 32>}, {pipeline_mode = #tpu.pipeline_mode<synchronous>, transform_indices = @transform_2, window_bounds = array<i64: 32, 32>}, {pipeline_mode = #tpu.pipeline_mode<synchronous>, transform_indices = @transform_3, window_bounds = array<i64: 1, 32>}, {pipeline_mode = #tpu.pipeline_mode<synchronous>, transform_indices = @transform_4, window_bounds = array<i64: 32, 32>}, {pipeline_mode = #tpu.pipeline_mode<synchronous>, transform_indices = @transform_5, window_bounds = array<i64: 1, 32>}, {pipeline_mode = #tpu.pipeline_mode<synchronous>, transform_indices = @transform_6, window_bounds = array<i64: 32, 32>}, {pipeline_mode = #tpu.pipeline_mode<synchronous>, transform_indices = @transform_7, window_bounds = array<i64: 1, 32>}, {transform_indices = @transform_8, window_bounds = array<i64: 16, 32>}]} {
    %c0 = arith.constant 0 : index
    %c0_0 = arith.constant 0 : index
    %0 = vector.load %arg1[%c0, %c0_0] : memref<16x32xf32, #tpu.memory_space<vmem>>, vector<16x32xf32>
    %cst = arith.constant dense<0.000000e+00> : vector<16xf32>
    %1 = vector.multi_reduction <add>, %0, %cst [1] : vector<16x32xf32> to vector<16xf32>
    %2 = vector.shape_cast %1 : vector<16xf32> to vector<16x1xf32>
    %cst_1 = arith.constant 3.200000e+01 : f32
    %3 = vector.broadcast %cst_1 : f32 to vector<16x1xf32>
    %4 = arith.divf %2, %3 : vector<16x1xf32>
    %5 = vector.broadcast %4 : vector<16x1xf32> to vector<16x32xf32>
    %6 = arith.subf %0, %5 : vector<16x32xf32>
    %7 = vector.broadcast %4 : vector<16x1xf32> to vector<16x32xf32>
    %8 = arith.subf %0, %7 : vector<16x32xf32>
    %9 = arith.mulf %6, %8 : vector<16x32xf32>
    %cst_2 = arith.constant dense<0.000000e+00> : vector<16xf32>
    %10 = vector.multi_reduction <add>, %9, %cst_2 [1] : vector<16x32xf32> to vector<16xf32>
    %11 = vector.shape_cast %10 : vector<16xf32> to vector<16x1xf32>
    %cst_3 = arith.constant 3.200000e+01 : f32
    %12 = vector.broadcast %cst_3 : f32 to vector<16x1xf32>
    %13 = arith.divf %11, %12 : vector<16x1xf32>
    %14 = vector.broadcast %4 : vector<16x1xf32> to vector<16x32xf32>
    %15 = arith.subf %0, %14 : vector<16x32xf32>
    %cst_4 = arith.constant 9.99999974E-6 : f32
    %16 = vector.broadcast %cst_4 : f32 to vector<16x1xf32>
    %17 = arith.addf %13, %16 : vector<16x1xf32>
    %18 = math.rsqrt %17 : vector<16x1xf32>
    %19 = vector.broadcast %18 : vector<16x1xf32> to vector<16x32xf32>
    %20 = arith.mulf %15, %19 : vector<16x32xf32>
    %c0_5 = arith.constant 0 : index
    %c0_6 = arith.constant 0 : index
    %21 = vector.load %arg2[%c0_5, %c0_6] : memref<2x32xf32, #tpu.memory_space<vmem>>, vector<1x32xf32>
    %22 = vector.broadcast %21 : vector<1x32xf32> to vector<16x32xf32>
    %23 = arith.mulf %20, %22 : vector<16x32xf32>
    %c1 = arith.constant 1 : index
    %c0_7 = arith.constant 0 : index
    %24 = vector.load %arg2[%c1, %c0_7] : memref<2x32xf32, #tpu.memory_space<vmem>>, vector<1x32xf32>
    %25 = vector.broadcast %24 : vector<1x32xf32> to vector<16x32xf32>
    %26 = arith.addf %23, %25 : vector<16x32xf32>
    %27 = arith.truncf %26 : vector<16x32xf32> to vector<16x32xbf16>
    %c0_8 = arith.constant 0 : index
    %c0_9 = arith.constant 0 : index
    %28 = vector.load %arg3[%c0_8, %c0_9] : memref<32x32xbf16, #tpu.memory_space<vmem>>, vector<32x32xbf16>
    %cst_10 = arith.constant dense<0.000000e+00> : vector<16x32xf32>
    %29 = tpu.matmul %27, %28, %cst_10 {dimension_numbers = #tpu.dot_dimension_numbers<[1], [0], [0], [1], [0, 0, 1, 1], [], []>} : vector<16x32xbf16>, vector<32x32xbf16>, vector<16x32xf32> -> vector<16x32xf32>
    %c0_11 = arith.constant 0 : index
    %c0_12 = arith.constant 0 : index
    %30 = vector.load %arg4[%c0_11, %c0_12] : memref<1x32xf32, #tpu.memory_space<vmem>>, vector<1x32xf32>
    %31 = vector.broadcast %30 : vector<1x32xf32> to vector<16x32xf32>
    %32 = arith.addf %29, %31 : vector<16x32xf32>
    %cst_13 = arith.constant 0.000000e+00 : f32
    %33 = vector.broadcast %cst_13 : f32 to vector<16x32xf32>
    %34 = arith.maximumf %32, %33 : vector<16x32xf32>
    %35 = arith.truncf %34 : vector<16x32xf32> to vector<16x32xbf16>
    %c0_14 = arith.constant 0 : index
    %c0_15 = arith.constant 0 : index
    %36 = vector.load %arg5[%c0_14, %c0_15] : memref<32x32xbf16, #tpu.memory_space<vmem>>, vector<32x32xbf16>
    %cst_16 = arith.constant dense<0.000000e+00> : vector<16x32xf32>
    %37 = tpu.matmul %35, %36, %cst_16 {dimension_numbers = #tpu.dot_dimension_numbers<[1], [0], [0], [1], [0, 0, 1, 1], [], []>} : vector<16x32xbf16>, vector<32x32xbf16>, vector<16x32xf32> -> vector<16x32xf32>
    %c0_17 = arith.constant 0 : index
    %c0_18 = arith.constant 0 : index
    %38 = vector.load %arg6[%c0_17, %c0_18] : memref<1x32xf32, #tpu.memory_space<vmem>>, vector<1x32xf32>
    %39 = vector.broadcast %38 : vector<1x32xf32> to vector<16x32xf32>
    %40 = arith.addf %37, %39 : vector<16x32xf32>
    %cst_19 = arith.constant 0.000000e+00 : f32
    %41 = vector.broadcast %cst_19 : f32 to vector<16x32xf32>
    %42 = arith.maximumf %40, %41 : vector<16x32xf32>
    %43 = arith.truncf %42 : vector<16x32xf32> to vector<16x32xbf16>
    %c0_20 = arith.constant 0 : index
    %c0_21 = arith.constant 0 : index
    %44 = vector.load %arg7[%c0_20, %c0_21] : memref<32x32xbf16, #tpu.memory_space<vmem>>, vector<32x32xbf16>
    %cst_22 = arith.constant dense<0.000000e+00> : vector<16x32xf32>
    %45 = tpu.matmul %43, %44, %cst_22 {dimension_numbers = #tpu.dot_dimension_numbers<[1], [0], [0], [1], [0, 0, 1, 1], [], []>} : vector<16x32xbf16>, vector<32x32xbf16>, vector<16x32xf32> -> vector<16x32xf32>
    %c0_23 = arith.constant 0 : index
    %c0_24 = arith.constant 0 : index
    %46 = vector.load %arg8[%c0_23, %c0_24] : memref<1x32xf32, #tpu.memory_space<vmem>>, vector<1x32xf32>
    %47 = vector.broadcast %46 : vector<1x32xf32> to vector<16x32xf32>
    %48 = arith.addf %45, %47 : vector<16x32xf32>
    %c0_25 = arith.constant 0 : index
    %c0_26 = arith.constant 0 : index
    %49 = vector.load %arg9[%c0_25, %c0_26] : memref<16x32xf32, #tpu.memory_space<vmem>>, vector<16x32xf32>
    tpu.vector_store %arg9[%c0_25, %c0_26], %48 {strides = array<i32>} : memref<16x32xf32, #tpu.memory_space<vmem>>, vector<16x32xf32>,
    return
  }
  func.func @transform_0(%arg0: i32) -> (i32, i32) {
    %c0_i32 = arith.constant 0 : i32
    %c0_i32_0 = arith.constant 0 : i32
    return %arg0, %c0_i32 : i32, i32
  }
  func.func @transform_1(%arg0: i32) -> (i32, i32) {
    %c0_i32 = arith.constant 0 : i32
    %c0_i32_0 = arith.constant 0 : i32
    %c0_i32_1 = arith.constant 0 : i32
    return %c0_i32, %c0_i32_0 : i32, i32
  }
  func.func @transform_2(%arg0: i32) -> (i32, i32) {
    %c0_i32 = arith.constant 0 : i32
    %c0_i32_0 = arith.constant 0 : i32
    %c0_i32_1 = arith.constant 0 : i32
    return %c0_i32, %c0_i32_0 : i32, i32
  }
  func.func @transform_3(%arg0: i32) -> (i32, i32) {
    %c0_i32 = arith.constant 0 : i32
    %c0_i32_0 = arith.constant 0 : i32
    %c0_i32_1 = arith.constant 0 : i32
    return %c0_i32, %c0_i32_0 : i32, i32
  }
  func.func @transform_4(%arg0: i32) -> (i32, i32) {
    %c0_i32 = arith.constant 0 : i32
    %c0_i32_0 = arith.constant 0 : i32
    %c0_i32_1 = arith.constant 0 : i32
    return %c0_i32, %c0_i32_0 : i32, i32
  }
  func.func @transform_5(%arg0: i32) -> (i32, i32) {
    %c0_i32 = arith.constant 0 : i32
    %c0_i32_0 = arith.constant 0 : i32
    %c0_i32_1 = arith.constant 0 : i32
    return %c0_i32, %c0_i32_0 : i32, i32
  }
  func.func @transform_6(%arg0: i32) -> (i32, i32) {
    %c0_i32 = arith.constant 0 : i32
    %c0_i32_0 = arith.constant 0 : i32
    %c0_i32_1 = arith.constant 0 : i32
    return %c0_i32, %c0_i32_0 : i32, i32
  }
  func.func @transform_7(%arg0: i32) -> (i32, i32) {
    %c0_i32 = arith.constant 0 : i32
    %c0_i32_0 = arith.constant 0 : i32
    %c0_i32_1 = arith.constant 0 : i32
    return %c0_i32, %c0_i32_0 : i32, i32
  }
  func.func @transform_8(%arg0: i32) -> (i32, i32) {
    %c0_i32 = arith.constant 0 : i32
    %c0_i32_0 = arith.constant 0 : i32
    return %arg0, %c0_i32 : i32, i32
  }
}

module attributes {stable_mosaic.version = 11 : i64} {
  func.func @_decoder_stack_kernel(%arg0: i32, %arg1: i32, %arg2: memref<1x1x64xf32, #tpu.memory_space<vmem>>, %arg3: memref<8x32xf32, #tpu.memory_space<vmem>>, %arg4: memref<8x32xf32, #tpu.memory_space<vmem>>, %arg5: memref<1x1x64x32xbf16, #tpu.memory_space<vmem>>, %arg6: memref<1x1x64x32xbf16, #tpu.memory_space<vmem>>, %arg7: memref<1x8x32x32xbf16, #tpu.memory_space<vmem>>, %arg8: memref<1x8x32xf32, #tpu.memory_space<vmem>>, %arg9: memref<1x6x32xf32, #tpu.memory_space<vmem>>, %arg10: memref<1x32x64xbf16, #tpu.memory_space<vmem>>, %arg11: memref<1x1x64xf32, #tpu.memory_space<vmem>>, %arg12: memref<1x64x32xbf16, #tpu.memory_space<vmem>>, %arg13: memref<1x1x32xf32, #tpu.memory_space<vmem>>, %arg14: memref<1x8x32xf32, #tpu.memory_space<vmem>>) attributes {dimension_semantics = [#tpu.dimension_semantics<parallel>, #tpu.dimension_semantics<arbitrary>], iteration_bounds = array<i64: 2, 3>, scalar_prefetch = 0 : i64, scratch_operands = 0 : i64, tpu.core_type = #tpu.core_type<tc>, window_params = [{transform_indices = @transform_0, window_bounds = array<i64: 1, 1, 64>}, {pipeline_mode = #tpu.pipeline_mode<synchronous>, transform_indices = @transform_1, window_bounds = array<i64: 8, 32>}, {pipeline_mode = #tpu.pipeline_mode<synchronous>, transform_indices = @transform_2, window_bounds = array<i64: 8, 32>}, {transform_indices = @transform_3, window_bounds = array<i64: 1, 1, 64, 32>}, {transform_indices = @transform_4, window_bounds = array<i64: 1, 1, 64, 32>}, {transform_indices = @transform_5, window_bounds = array<i64: 1, 8, 32, 32>}, {transform_indices = @transform_6, window_bounds = array<i64: 1, 8, 32>}, {transform_indices = @transform_7, window_bounds = array<i64: 1, 6, 32>}, {transform_indices = @transform_8, window_bounds = array<i64: 1, 32, 64>}, {transform_indices = @transform_9, window_bounds = array<i64: 1, 1, 64>}, {transform_indices = @transform_10, window_bounds = array<i64: 1, 64, 32>}, {transform_indices = @transform_11, window_bounds = array<i64: 1, 1, 32>}, {transform_indices = @transform_12, window_bounds = array<i64: 1, 8, 32>}]} {
    %c0_i32 = arith.constant 0 : i32
    %0 = arith.cmpi eq, %arg1, %c0_i32 : i32
    %1 = arith.extui %0 : i1 to i32
    %c0_i32_0 = arith.constant 0 : i32
    %2 = arith.cmpi ne, %1, %c0_i32_0 : i32
    scf.if %2 {
      %c0_163 = arith.constant 0 : index
      %c0_164 = arith.constant 0 : index
      %344 = vector.load %arg3[%c0_163, %c0_164] : memref<8x32xf32, #tpu.memory_space<vmem>>, vector<8x32xf32>
      %c0_165 = arith.constant 0 : index
      %c0_166 = arith.constant 0 : index
      %c0_167 = arith.constant 0 : index
      %345 = vector.load %arg14[%c0_165, %c0_166, %c0_167] : memref<1x8x32xf32, #tpu.memory_space<vmem>>, vector<1x8x32xf32>
      %346 = vector.shape_cast %345 : vector<1x8x32xf32> to vector<8x32xf32>
      %347 = vector.shape_cast %344 : vector<8x32xf32> to vector<1x8x32xf32>
      tpu.vector_store %arg14[%c0_165, %c0_166, %c0_167], %347 {strides = array<i32>} : memref<1x8x32xf32, #tpu.memory_space<vmem>>, vector<1x8x32xf32>,
    } else {
    }
    %c0 = arith.constant 0 : index
    %c0_1 = arith.constant 0 : index
    %c0_2 = arith.constant 0 : index
    %3 = vector.load %arg14[%c0, %c0_1, %c0_2] : memref<1x8x32xf32, #tpu.memory_space<vmem>>, vector<1x8x32xf32>
    %4 = vector.shape_cast %3 : vector<1x8x32xf32> to vector<8x32xf32>
    %c0_3 = arith.constant 0 : index
    %c0_4 = arith.constant 0 : index
    %5 = vector.load %arg4[%c0_3, %c0_4] : memref<8x32xf32, #tpu.memory_space<vmem>>, vector<8x32xf32>
    %c0_5 = arith.constant 0 : index
    %c0_6 = arith.constant 0 : index
    %c0_7 = arith.constant 0 : index
    %c0_8 = arith.constant 0 : index
    %6 = vector.load %arg5[%c0_5, %c0_6, %c0_7, %c0_8] : memref<1x1x64x32xbf16, #tpu.memory_space<vmem>>, vector<1x1x64x32xbf16>
    %7 = vector.shape_cast %6 : vector<1x1x64x32xbf16> to vector<64x32xbf16>
    %c0_9 = arith.constant 0 : index
    %c0_10 = arith.constant 0 : index
    %c0_11 = arith.constant 0 : index
    %c0_12 = arith.constant 0 : index
    %8 = vector.load %arg6[%c0_9, %c0_10, %c0_11, %c0_12] : memref<1x1x64x32xbf16, #tpu.memory_space<vmem>>, vector<1x1x64x32xbf16>
    %9 = vector.shape_cast %8 : vector<1x1x64x32xbf16> to vector<64x32xbf16>
    %c0_13 = arith.constant 0 : index
    %c0_14 = arith.constant 0 : index
    %c0_15 = arith.constant 0 : index
    %10 = vector.load %arg2[%c0_13, %c0_14, %c0_15] : memref<1x1x64xf32, #tpu.memory_space<vmem>>, vector<1x1x64xf32>
    %11 = vector.shape_cast %10 : vector<1x1x64xf32> to vector<1x64xf32>
    %12 = arith.addf %4, %5 : vector<8x32xf32>
    %13 = arith.truncf %12 : vector<8x32xf32> to vector<8x32xbf16>
    %c0_16 = arith.constant 0 : index
    %c0_17 = arith.constant 0 : index
    %c0_18 = arith.constant 0 : index
    %c0_19 = arith.constant 0 : index
    %14 = vector.load %arg7[%c0_16, %c0_17, %c0_18, %c0_19] : memref<1x8x32x32xbf16, #tpu.memory_space<vmem>>, vector<1x1x32x32xbf16>
    %15 = vector.shape_cast %14 : vector<1x1x32x32xbf16> to vector<32x32xbf16>
    %cst = arith.constant dense<0.000000e+00> : vector<8x32xf32>
    %16 = tpu.matmul %13, %15, %cst {dimension_numbers = #tpu.dot_dimension_numbers<[1], [0], [0], [1], [0, 0, 1, 1], [], []>} : vector<8x32xbf16>, vector<32x32xbf16>, vector<8x32xf32> -> vector<8x32xf32>
    %c0_20 = arith.constant 0 : index
    %c0_21 = arith.constant 0 : index
    %c0_22 = arith.constant 0 : index
    %17 = vector.load %arg8[%c0_20, %c0_21, %c0_22] : memref<1x8x32xf32, #tpu.memory_space<vmem>>, vector<1x1x32xf32>
    %18 = vector.shape_cast %17 : vector<1x1x32xf32> to vector<1x32xf32>
    %19 = vector.broadcast %18 : vector<1x32xf32> to vector<8x32xf32>
    %20 = arith.addf %16, %19 : vector<8x32xf32>
    %c0_23 = arith.constant 0 : index
    %c1 = arith.constant 1 : index
    %c0_24 = arith.constant 0 : index
    %c0_25 = arith.constant 0 : index
    %21 = vector.load %arg7[%c0_23, %c1, %c0_24, %c0_25] : memref<1x8x32x32xbf16, #tpu.memory_space<vmem>>, vector<1x1x32x32xbf16>
    %22 = vector.shape_cast %21 : vector<1x1x32x32xbf16> to vector<32x32xbf16>
    %cst_26 = arith.constant dense<0.000000e+00> : vector<64x32xf32>
    %23 = tpu.matmul %9, %22, %cst_26 {dimension_numbers = #tpu.dot_dimension_numbers<[1], [0], [0], [1], [0, 0, 1, 1], [], []>} : vector<64x32xbf16>, vector<32x32xbf16>, vector<64x32xf32> -> vector<64x32xf32>
    %c0_27 = arith.constant 0 : index
    %c1_28 = arith.constant 1 : index
    %c0_29 = arith.constant 0 : index
    %24 = vector.load %arg8[%c0_27, %c1_28, %c0_29] : memref<1x8x32xf32, #tpu.memory_space<vmem>>, vector<1x1x32xf32>
    %25 = vector.shape_cast %24 : vector<1x1x32xf32> to vector<1x32xf32>
    %26 = vector.broadcast %25 : vector<1x32xf32> to vector<64x32xf32>
    %27 = arith.addf %23, %26 : vector<64x32xf32>
    %c0_30 = arith.constant 0 : index
    %c2 = arith.constant 2 : index
    %c0_31 = arith.constant 0 : index
    %c0_32 = arith.constant 0 : index
    %28 = vector.load %arg7[%c0_30, %c2, %c0_31, %c0_32] : memref<1x8x32x32xbf16, #tpu.memory_space<vmem>>, vector<1x1x32x32xbf16>
    %29 = vector.shape_cast %28 : vector<1x1x32x32xbf16> to vector<32x32xbf16>
    %cst_33 = arith.constant dense<0.000000e+00> : vector<64x32xf32>
    %30 = tpu.matmul %7, %29, %cst_33 {dimension_numbers = #tpu.dot_dimension_numbers<[1], [0], [0], [1], [0, 0, 1, 1], [], []>} : vector<64x32xbf16>, vector<32x32xbf16>, vector<64x32xf32> -> vector<64x32xf32>
    %c0_34 = arith.constant 0 : index
    %c2_35 = arith.constant 2 : index
    %c0_36 = arith.constant 0 : index
    %31 = vector.load %arg8[%c0_34, %c2_35, %c0_36] : memref<1x8x32xf32, #tpu.memory_space<vmem>>, vector<1x1x32xf32>
    %32 = vector.shape_cast %31 : vector<1x1x32xf32> to vector<1x32xf32>
    %33 = vector.broadcast %32 : vector<1x32xf32> to vector<64x32xf32>
    %34 = arith.addf %30, %33 : vector<64x32xf32>
    %35 = arith.truncf %20 : vector<8x32xf32> to vector<8x32xbf16>
    %36 = arith.truncf %27 : vector<64x32xf32> to vector<64x32xbf16>
    %37 = arith.truncf %34 : vector<64x32xf32> to vector<64x32xbf16>
    %38 = vector.extract_strided_slice %35 {offsets = [0, 0], sizes = [8, 8], strides = [1, 1]} : vector<8x32xbf16> to vector<8x8xbf16>
    %39 = vector.extract_strided_slice %36 {offsets = [0, 0], sizes = [64, 8], strides = [1, 1]} : vector<64x32xbf16> to vector<64x8xbf16>
    %cst_37 = arith.constant dense<0.000000e+00> : vector<8x64xf32>
    %40 = tpu.matmul %38, %39, %cst_37 {dimension_numbers = #tpu.dot_dimension_numbers<[1], [1], [0], [0], [0, 0, 1, 0], [], []>} : vector<8x8xbf16>, vector<64x8xbf16>, vector<8x64xf32> -> vector<8x64xf32>
    %cst_38 = arith.constant 0.353553385 : f32
    %41 = vector.broadcast %cst_38 : f32 to vector<8x64xf32>
    %42 = arith.mulf %40, %41 : vector<8x64xf32>
    %43 = vector.broadcast %11 : vector<1x64xf32> to vector<8x64xf32>
    %44 = arith.addf %42, %43 : vector<8x64xf32>
    %cst_39 = arith.constant dense<0xFF800000> : vector<8xf32>
    %45 = vector.multi_reduction <maximumf>, %44, %cst_39 [1] : vector<8x64xf32> to vector<8xf32>
    %46 = vector.shape_cast %45 : vector<8xf32> to vector<8x1xf32>
    %47 = vector.broadcast %46 : vector<8x1xf32> to vector<8x64xf32>
    %48 = arith.subf %44, %47 : vector<8x64xf32>
    %49 = math.exp %48 : vector<8x64xf32>
    %cst_40 = arith.constant dense<0.000000e+00> : vector<8xf32>
    %50 = vector.multi_reduction <add>, %49, %cst_40 [1] : vector<8x64xf32> to vector<8xf32>
    %51 = vector.shape_cast %50 : vector<8xf32> to vector<8x1xf32>
    %52 = tpu.reciprocal %51 {approx = true} : vector<8x1xf32> -> vector<8x1xf32>
    %53 = vector.broadcast %52 : vector<8x1xf32> to vector<8x64xf32>
    %54 = arith.mulf %49, %53 : vector<8x64xf32>
    %55 = arith.truncf %54 : vector<8x64xf32> to vector<8x64xbf16>
    %56 = vector.extract_strided_slice %37 {offsets = [0, 0], sizes = [64, 8], strides = [1, 1]} : vector<64x32xbf16> to vector<64x8xbf16>
    %cst_41 = arith.constant dense<0.000000e+00> : vector<8x8xf32>
    %57 = tpu.matmul %55, %56, %cst_41 {dimension_numbers = #tpu.dot_dimension_numbers<[1], [0], [0], [1], [0, 0, 1, 1], [], []>} : vector<8x64xbf16>, vector<64x8xbf16>, vector<8x8xf32> -> vector<8x8xf32>
    %58 = vector.extract_strided_slice %35 {offsets = [0, 8], sizes = [8, 8], strides = [1, 1]} : vector<8x32xbf16> to vector<8x8xbf16>
    %59 = vector.extract_strided_slice %36 {offsets = [0, 8], sizes = [64, 8], strides = [1, 1]} : vector<64x32xbf16> to vector<64x8xbf16>
    %cst_42 = arith.constant dense<0.000000e+00> : vector<8x64xf32>
    %60 = tpu.matmul %58, %59, %cst_42 {dimension_numbers = #tpu.dot_dimension_numbers<[1], [1], [0], [0], [0, 0, 1, 0], [], []>} : vector<8x8xbf16>, vector<64x8xbf16>, vector<8x64xf32> -> vector<8x64xf32>
    %cst_43 = arith.constant 0.353553385 : f32
    %61 = vector.broadcast %cst_43 : f32 to vector<8x64xf32>
    %62 = arith.mulf %60, %61 : vector<8x64xf32>
    %63 = vector.broadcast %11 : vector<1x64xf32> to vector<8x64xf32>
    %64 = arith.addf %62, %63 : vector<8x64xf32>
    %cst_44 = arith.constant dense<0xFF800000> : vector<8xf32>
    %65 = vector.multi_reduction <maximumf>, %64, %cst_44 [1] : vector<8x64xf32> to vector<8xf32>
    %66 = vector.shape_cast %65 : vector<8xf32> to vector<8x1xf32>
    %67 = vector.broadcast %66 : vector<8x1xf32> to vector<8x64xf32>
    %68 = arith.subf %64, %67 : vector<8x64xf32>
    %69 = math.exp %68 : vector<8x64xf32>
    %cst_45 = arith.constant dense<0.000000e+00> : vector<8xf32>
    %70 = vector.multi_reduction <add>, %69, %cst_45 [1] : vector<8x64xf32> to vector<8xf32>
    %71 = vector.shape_cast %70 : vector<8xf32> to vector<8x1xf32>
    %72 = tpu.reciprocal %71 {approx = true} : vector<8x1xf32> -> vector<8x1xf32>
    %73 = vector.broadcast %72 : vector<8x1xf32> to vector<8x64xf32>
    %74 = arith.mulf %69, %73 : vector<8x64xf32>
    %75 = arith.truncf %74 : vector<8x64xf32> to vector<8x64xbf16>
    %76 = vector.extract_strided_slice %37 {offsets = [0, 8], sizes = [64, 8], strides = [1, 1]} : vector<64x32xbf16> to vector<64x8xbf16>
    %cst_46 = arith.constant dense<0.000000e+00> : vector<8x8xf32>
    %77 = tpu.matmul %75, %76, %cst_46 {dimension_numbers = #tpu.dot_dimension_numbers<[1], [0], [0], [1], [0, 0, 1, 1], [], []>} : vector<8x64xbf16>, vector<64x8xbf16>, vector<8x8xf32> -> vector<8x8xf32>
    %78 = vector.extract_strided_slice %35 {offsets = [0, 16], sizes = [8, 8], strides = [1, 1]} : vector<8x32xbf16> to vector<8x8xbf16>
    %79 = vector.extract_strided_slice %36 {offsets = [0, 16], sizes = [64, 8], strides = [1, 1]} : vector<64x32xbf16> to vector<64x8xbf16>
    %cst_47 = arith.constant dense<0.000000e+00> : vector<8x64xf32>
    %80 = tpu.matmul %78, %79, %cst_47 {dimension_numbers = #tpu.dot_dimension_numbers<[1], [1], [0], [0], [0, 0, 1, 0], [], []>} : vector<8x8xbf16>, vector<64x8xbf16>, vector<8x64xf32> -> vector<8x64xf32>
    %cst_48 = arith.constant 0.353553385 : f32
    %81 = vector.broadcast %cst_48 : f32 to vector<8x64xf32>
    %82 = arith.mulf %80, %81 : vector<8x64xf32>
    %83 = vector.broadcast %11 : vector<1x64xf32> to vector<8x64xf32>
    %84 = arith.addf %82, %83 : vector<8x64xf32>
    %cst_49 = arith.constant dense<0xFF800000> : vector<8xf32>
    %85 = vector.multi_reduction <maximumf>, %84, %cst_49 [1] : vector<8x64xf32> to vector<8xf32>
    %86 = vector.shape_cast %85 : vector<8xf32> to vector<8x1xf32>
    %87 = vector.broadcast %86 : vector<8x1xf32> to vector<8x64xf32>
    %88 = arith.subf %84, %87 : vector<8x64xf32>
    %89 = math.exp %88 : vector<8x64xf32>
    %cst_50 = arith.constant dense<0.000000e+00> : vector<8xf32>
    %90 = vector.multi_reduction <add>, %89, %cst_50 [1] : vector<8x64xf32> to vector<8xf32>
    %91 = vector.shape_cast %90 : vector<8xf32> to vector<8x1xf32>
    %92 = tpu.reciprocal %91 {approx = true} : vector<8x1xf32> -> vector<8x1xf32>
    %93 = vector.broadcast %92 : vector<8x1xf32> to vector<8x64xf32>
    %94 = arith.mulf %89, %93 : vector<8x64xf32>
    %95 = arith.truncf %94 : vector<8x64xf32> to vector<8x64xbf16>
    %96 = vector.extract_strided_slice %37 {offsets = [0, 16], sizes = [64, 8], strides = [1, 1]} : vector<64x32xbf16> to vector<64x8xbf16>
    %cst_51 = arith.constant dense<0.000000e+00> : vector<8x8xf32>
    %97 = tpu.matmul %95, %96, %cst_51 {dimension_numbers = #tpu.dot_dimension_numbers<[1], [0], [0], [1], [0, 0, 1, 1], [], []>} : vector<8x64xbf16>, vector<64x8xbf16>, vector<8x8xf32> -> vector<8x8xf32>
    %98 = vector.extract_strided_slice %35 {offsets = [0, 24], sizes = [8, 8], strides = [1, 1]} : vector<8x32xbf16> to vector<8x8xbf16>
    %99 = vector.extract_strided_slice %36 {offsets = [0, 24], sizes = [64, 8], strides = [1, 1]} : vector<64x32xbf16> to vector<64x8xbf16>
    %cst_52 = arith.constant dense<0.000000e+00> : vector<8x64xf32>
    %100 = tpu.matmul %98, %99, %cst_52 {dimension_numbers = #tpu.dot_dimension_numbers<[1], [1], [0], [0], [0, 0, 1, 0], [], []>} : vector<8x8xbf16>, vector<64x8xbf16>, vector<8x64xf32> -> vector<8x64xf32>
    %cst_53 = arith.constant 0.353553385 : f32
    %101 = vector.broadcast %cst_53 : f32 to vector<8x64xf32>
    %102 = arith.mulf %100, %101 : vector<8x64xf32>
    %103 = vector.broadcast %11 : vector<1x64xf32> to vector<8x64xf32>
    %104 = arith.addf %102, %103 : vector<8x64xf32>
    %cst_54 = arith.constant dense<0xFF800000> : vector<8xf32>
    %105 = vector.multi_reduction <maximumf>, %104, %cst_54 [1] : vector<8x64xf32> to vector<8xf32>
    %106 = vector.shape_cast %105 : vector<8xf32> to vector<8x1xf32>
    %107 = vector.broadcast %106 : vector<8x1xf32> to vector<8x64xf32>
    %108 = arith.subf %104, %107 : vector<8x64xf32>
    %109 = math.exp %108 : vector<8x64xf32>
    %cst_55 = arith.constant dense<0.000000e+00> : vector<8xf32>
    %110 = vector.multi_reduction <add>, %109, %cst_55 [1] : vector<8x64xf32> to vector<8xf32>
    %111 = vector.shape_cast %110 : vector<8xf32> to vector<8x1xf32>
    %112 = tpu.reciprocal %111 {approx = true} : vector<8x1xf32> -> vector<8x1xf32>
    %113 = vector.broadcast %112 : vector<8x1xf32> to vector<8x64xf32>
    %114 = arith.mulf %109, %113 : vector<8x64xf32>
    %115 = arith.truncf %114 : vector<8x64xf32> to vector<8x64xbf16>
    %116 = vector.extract_strided_slice %37 {offsets = [0, 24], sizes = [64, 8], strides = [1, 1]} : vector<64x32xbf16> to vector<64x8xbf16>
    %cst_56 = arith.constant dense<0.000000e+00> : vector<8x8xf32>
    %117 = tpu.matmul %115, %116, %cst_56 {dimension_numbers = #tpu.dot_dimension_numbers<[1], [0], [0], [1], [0, 0, 1, 1], [], []>} : vector<8x64xbf16>, vector<64x8xbf16>, vector<8x8xf32> -> vector<8x8xf32>
    %118 = tpu.concatenate %57, %77, %97, %117 in 1 : vector<8x8xf32>, vector<8x8xf32>, vector<8x8xf32>, vector<8x8xf32> -> vector<8x32xf32>
    %119 = arith.truncf %118 : vector<8x32xf32> to vector<8x32xbf16>
    %c0_57 = arith.constant 0 : index
    %c3 = arith.constant 3 : index
    %c0_58 = arith.constant 0 : index
    %c0_59 = arith.constant 0 : index
    %120 = vector.load %arg7[%c0_57, %c3, %c0_58, %c0_59] : memref<1x8x32x32xbf16, #tpu.memory_space<vmem>>, vector<1x1x32x32xbf16>
    %121 = vector.shape_cast %120 : vector<1x1x32x32xbf16> to vector<32x32xbf16>
    %cst_60 = arith.constant dense<0.000000e+00> : vector<8x32xf32>
    %122 = tpu.matmul %119, %121, %cst_60 {dimension_numbers = #tpu.dot_dimension_numbers<[1], [0], [0], [1], [0, 0, 1, 1], [], []>} : vector<8x32xbf16>, vector<32x32xbf16>, vector<8x32xf32> -> vector<8x32xf32>
    %c0_61 = arith.constant 0 : index
    %c3_62 = arith.constant 3 : index
    %c0_63 = arith.constant 0 : index
    %123 = vector.load %arg8[%c0_61, %c3_62, %c0_63] : memref<1x8x32xf32, #tpu.memory_space<vmem>>, vector<1x1x32xf32>
    %124 = vector.shape_cast %123 : vector<1x1x32xf32> to vector<1x32xf32>
    %125 = vector.broadcast %124 : vector<1x32xf32> to vector<8x32xf32>
    %126 = arith.addf %122, %125 : vector<8x32xf32>
    %127 = arith.addf %4, %126 : vector<8x32xf32>
    %cst_64 = arith.constant dense<0.000000e+00> : vector<8xf32>
    %128 = vector.multi_reduction <add>, %127, %cst_64 [1] : vector<8x32xf32> to vector<8xf32>
    %129 = vector.shape_cast %128 : vector<8xf32> to vector<8x1xf32>
    %cst_65 = arith.constant 3.200000e+01 : f32
    %130 = vector.broadcast %cst_65 : f32 to vector<8x1xf32>
    %131 = arith.divf %129, %130 : vector<8x1xf32>
    %132 = vector.broadcast %131 : vector<8x1xf32> to vector<8x32xf32>
    %133 = arith.subf %127, %132 : vector<8x32xf32>
    %134 = vector.broadcast %131 : vector<8x1xf32> to vector<8x32xf32>
    %135 = arith.subf %127, %134 : vector<8x32xf32>
    %136 = arith.mulf %133, %135 : vector<8x32xf32>
    %cst_66 = arith.constant dense<0.000000e+00> : vector<8xf32>
    %137 = vector.multi_reduction <add>, %136, %cst_66 [1] : vector<8x32xf32> to vector<8xf32>
    %138 = vector.shape_cast %137 : vector<8xf32> to vector<8x1xf32>
    %cst_67 = arith.constant 3.200000e+01 : f32
    %139 = vector.broadcast %cst_67 : f32 to vector<8x1xf32>
    %140 = arith.divf %138, %139 : vector<8x1xf32>
    %141 = vector.broadcast %131 : vector<8x1xf32> to vector<8x32xf32>
    %142 = arith.subf %127, %141 : vector<8x32xf32>
    %cst_68 = arith.constant 9.99999974E-6 : f32
    %143 = vector.broadcast %cst_68 : f32 to vector<8x1xf32>
    %144 = arith.addf %140, %143 : vector<8x1xf32>
    %145 = math.rsqrt %144 : vector<8x1xf32>
    %146 = vector.broadcast %145 : vector<8x1xf32> to vector<8x32xf32>
    %147 = arith.mulf %142, %146 : vector<8x32xf32>
    %c0_69 = arith.constant 0 : index
    %c0_70 = arith.constant 0 : index
    %c0_71 = arith.constant 0 : index
    %148 = vector.load %arg9[%c0_69, %c0_70, %c0_71] : memref<1x6x32xf32, #tpu.memory_space<vmem>>, vector<1x1x32xf32>
    %149 = vector.shape_cast %148 : vector<1x1x32xf32> to vector<1x32xf32>
    %150 = vector.broadcast %149 : vector<1x32xf32> to vector<8x32xf32>
    %151 = arith.mulf %147, %150 : vector<8x32xf32>
    %c0_72 = arith.constant 0 : index
    %c1_73 = arith.constant 1 : index
    %c0_74 = arith.constant 0 : index
    %152 = vector.load %arg9[%c0_72, %c1_73, %c0_74] : memref<1x6x32xf32, #tpu.memory_space<vmem>>, vector<1x1x32xf32>
    %153 = vector.shape_cast %152 : vector<1x1x32xf32> to vector<1x32xf32>
    %154 = vector.broadcast %153 : vector<1x32xf32> to vector<8x32xf32>
    %155 = arith.addf %151, %154 : vector<8x32xf32>
    %156 = arith.addf %155, %5 : vector<8x32xf32>
    %157 = arith.truncf %156 : vector<8x32xf32> to vector<8x32xbf16>
    %c0_75 = arith.constant 0 : index
    %c4 = arith.constant 4 : index
    %c0_76 = arith.constant 0 : index
    %c0_77 = arith.constant 0 : index
    %158 = vector.load %arg7[%c0_75, %c4, %c0_76, %c0_77] : memref<1x8x32x32xbf16, #tpu.memory_space<vmem>>, vector<1x1x32x32xbf16>
    %159 = vector.shape_cast %158 : vector<1x1x32x32xbf16> to vector<32x32xbf16>
    %cst_78 = arith.constant dense<0.000000e+00> : vector<8x32xf32>
    %160 = tpu.matmul %157, %159, %cst_78 {dimension_numbers = #tpu.dot_dimension_numbers<[1], [0], [0], [1], [0, 0, 1, 1], [], []>} : vector<8x32xbf16>, vector<32x32xbf16>, vector<8x32xf32> -> vector<8x32xf32>
    %c0_79 = arith.constant 0 : index
    %c4_80 = arith.constant 4 : index
    %c0_81 = arith.constant 0 : index
    %161 = vector.load %arg8[%c0_79, %c4_80, %c0_81] : memref<1x8x32xf32, #tpu.memory_space<vmem>>, vector<1x1x32xf32>
    %162 = vector.shape_cast %161 : vector<1x1x32xf32> to vector<1x32xf32>
    %163 = vector.broadcast %162 : vector<1x32xf32> to vector<8x32xf32>
    %164 = arith.addf %160, %163 : vector<8x32xf32>
    %165 = arith.truncf %156 : vector<8x32xf32> to vector<8x32xbf16>
    %c0_82 = arith.constant 0 : index
    %c5 = arith.constant 5 : index
    %c0_83 = arith.constant 0 : index
    %c0_84 = arith.constant 0 : index
    %166 = vector.load %arg7[%c0_82, %c5, %c0_83, %c0_84] : memref<1x8x32x32xbf16, #tpu.memory_space<vmem>>, vector<1x1x32x32xbf16>
    %167 = vector.shape_cast %166 : vector<1x1x32x32xbf16> to vector<32x32xbf16>
    %cst_85 = arith.constant dense<0.000000e+00> : vector<8x32xf32>
    %168 = tpu.matmul %165, %167, %cst_85 {dimension_numbers = #tpu.dot_dimension_numbers<[1], [0], [0], [1], [0, 0, 1, 1], [], []>} : vector<8x32xbf16>, vector<32x32xbf16>, vector<8x32xf32> -> vector<8x32xf32>
    %c0_86 = arith.constant 0 : index
    %c5_87 = arith.constant 5 : index
    %c0_88 = arith.constant 0 : index
    %169 = vector.load %arg8[%c0_86, %c5_87, %c0_88] : memref<1x8x32xf32, #tpu.memory_space<vmem>>, vector<1x1x32xf32>
    %170 = vector.shape_cast %169 : vector<1x1x32xf32> to vector<1x32xf32>
    %171 = vector.broadcast %170 : vector<1x32xf32> to vector<8x32xf32>
    %172 = arith.addf %168, %171 : vector<8x32xf32>
    %173 = arith.truncf %155 : vector<8x32xf32> to vector<8x32xbf16>
    %c0_89 = arith.constant 0 : index
    %c6 = arith.constant 6 : index
    %c0_90 = arith.constant 0 : index
    %c0_91 = arith.constant 0 : index
    %174 = vector.load %arg7[%c0_89, %c6, %c0_90, %c0_91] : memref<1x8x32x32xbf16, #tpu.memory_space<vmem>>, vector<1x1x32x32xbf16>
    %175 = vector.shape_cast %174 : vector<1x1x32x32xbf16> to vector<32x32xbf16>
    %cst_92 = arith.constant dense<0.000000e+00> : vector<8x32xf32>
    %176 = tpu.matmul %173, %175, %cst_92 {dimension_numbers = #tpu.dot_dimension_numbers<[1], [0], [0], [1], [0, 0, 1, 1], [], []>} : vector<8x32xbf16>, vector<32x32xbf16>, vector<8x32xf32> -> vector<8x32xf32>
    %c0_93 = arith.constant 0 : index
    %c6_94 = arith.constant 6 : index
    %c0_95 = arith.constant 0 : index
    %177 = vector.load %arg8[%c0_93, %c6_94, %c0_95] : memref<1x8x32xf32, #tpu.memory_space<vmem>>, vector<1x1x32xf32>
    %178 = vector.shape_cast %177 : vector<1x1x32xf32> to vector<1x32xf32>
    %179 = vector.broadcast %178 : vector<1x32xf32> to vector<8x32xf32>
    %180 = arith.addf %176, %179 : vector<8x32xf32>
    %181 = arith.truncf %164 : vector<8x32xf32> to vector<8x32xbf16>
    %182 = arith.truncf %172 : vector<8x32xf32> to vector<8x32xbf16>
    %183 = arith.truncf %180 : vector<8x32xf32> to vector<8x32xbf16>
    %184 = vector.extract_strided_slice %181 {offsets = [0, 0], sizes = [8, 8], strides = [1, 1]} : vector<8x32xbf16> to vector<8x8xbf16>
    %185 = vector.extract_strided_slice %182 {offsets = [0, 0], sizes = [8, 8], strides = [1, 1]} : vector<8x32xbf16> to vector<8x8xbf16>
    %cst_96 = arith.constant dense<0.000000e+00> : vector<8x8xf32>
    %186 = tpu.matmul %184, %185, %cst_96 {dimension_numbers = #tpu.dot_dimension_numbers<[1], [1], [0], [0], [0, 0, 1, 0], [], []>} : vector<8x8xbf16>, vector<8x8xbf16>, vector<8x8xf32> -> vector<8x8xf32>
    %cst_97 = arith.constant 0.353553385 : f32
    %187 = vector.broadcast %cst_97 : f32 to vector<8x8xf32>
    %188 = arith.mulf %186, %187 : vector<8x8xf32>
    %cst_98 = arith.constant dense<0xFF800000> : vector<8xf32>
    %189 = vector.multi_reduction <maximumf>, %188, %cst_98 [1] : vector<8x8xf32> to vector<8xf32>
    %190 = vector.shape_cast %189 : vector<8xf32> to vector<8x1xf32>
    %191 = vector.broadcast %190 : vector<8x1xf32> to vector<8x8xf32>
    %192 = arith.subf %188, %191 : vector<8x8xf32>
    %193 = math.exp %192 : vector<8x8xf32>
    %cst_99 = arith.constant dense<0.000000e+00> : vector<8xf32>
    %194 = vector.multi_reduction <add>, %193, %cst_99 [1] : vector<8x8xf32> to vector<8xf32>
    %195 = vector.shape_cast %194 : vector<8xf32> to vector<8x1xf32>
    %196 = tpu.reciprocal %195 {approx = true} : vector<8x1xf32> -> vector<8x1xf32>
    %197 = vector.broadcast %196 : vector<8x1xf32> to vector<8x8xf32>
    %198 = arith.mulf %193, %197 : vector<8x8xf32>
    %199 = arith.truncf %198 : vector<8x8xf32> to vector<8x8xbf16>
    %200 = vector.extract_strided_slice %183 {offsets = [0, 0], sizes = [8, 8], strides = [1, 1]} : vector<8x32xbf16> to vector<8x8xbf16>
    %cst_100 = arith.constant dense<0.000000e+00> : vector<8x8xf32>
    %201 = tpu.matmul %199, %200, %cst_100 {dimension_numbers = #tpu.dot_dimension_numbers<[1], [0], [0], [1], [0, 0, 1, 1], [], []>} : vector<8x8xbf16>, vector<8x8xbf16>, vector<8x8xf32> -> vector<8x8xf32>
    %202 = vector.extract_strided_slice %181 {offsets = [0, 8], sizes = [8, 8], strides = [1, 1]} : vector<8x32xbf16> to vector<8x8xbf16>
    %203 = vector.extract_strided_slice %182 {offsets = [0, 8], sizes = [8, 8], strides = [1, 1]} : vector<8x32xbf16> to vector<8x8xbf16>
    %cst_101 = arith.constant dense<0.000000e+00> : vector<8x8xf32>
    %204 = tpu.matmul %202, %203, %cst_101 {dimension_numbers = #tpu.dot_dimension_numbers<[1], [1], [0], [0], [0, 0, 1, 0], [], []>} : vector<8x8xbf16>, vector<8x8xbf16>, vector<8x8xf32> -> vector<8x8xf32>
    %cst_102 = arith.constant 0.353553385 : f32
    %205 = vector.broadcast %cst_102 : f32 to vector<8x8xf32>
    %206 = arith.mulf %204, %205 : vector<8x8xf32>
    %cst_103 = arith.constant dense<0xFF800000> : vector<8xf32>
    %207 = vector.multi_reduction <maximumf>, %206, %cst_103 [1] : vector<8x8xf32> to vector<8xf32>
    %208 = vector.shape_cast %207 : vector<8xf32> to vector<8x1xf32>
    %209 = vector.broadcast %208 : vector<8x1xf32> to vector<8x8xf32>
    %210 = arith.subf %206, %209 : vector<8x8xf32>
    %211 = math.exp %210 : vector<8x8xf32>
    %cst_104 = arith.constant dense<0.000000e+00> : vector<8xf32>
    %212 = vector.multi_reduction <add>, %211, %cst_104 [1] : vector<8x8xf32> to vector<8xf32>
    %213 = vector.shape_cast %212 : vector<8xf32> to vector<8x1xf32>
    %214 = tpu.reciprocal %213 {approx = true} : vector<8x1xf32> -> vector<8x1xf32>
    %215 = vector.broadcast %214 : vector<8x1xf32> to vector<8x8xf32>
    %216 = arith.mulf %211, %215 : vector<8x8xf32>
    %217 = arith.truncf %216 : vector<8x8xf32> to vector<8x8xbf16>
    %218 = vector.extract_strided_slice %183 {offsets = [0, 8], sizes = [8, 8], strides = [1, 1]} : vector<8x32xbf16> to vector<8x8xbf16>
    %cst_105 = arith.constant dense<0.000000e+00> : vector<8x8xf32>
    %219 = tpu.matmul %217, %218, %cst_105 {dimension_numbers = #tpu.dot_dimension_numbers<[1], [0], [0], [1], [0, 0, 1, 1], [], []>} : vector<8x8xbf16>, vector<8x8xbf16>, vector<8x8xf32> -> vector<8x8xf32>
    %220 = vector.extract_strided_slice %181 {offsets = [0, 16], sizes = [8, 8], strides = [1, 1]} : vector<8x32xbf16> to vector<8x8xbf16>
    %221 = vector.extract_strided_slice %182 {offsets = [0, 16], sizes = [8, 8], strides = [1, 1]} : vector<8x32xbf16> to vector<8x8xbf16>
    %cst_106 = arith.constant dense<0.000000e+00> : vector<8x8xf32>
    %222 = tpu.matmul %220, %221, %cst_106 {dimension_numbers = #tpu.dot_dimension_numbers<[1], [1], [0], [0], [0, 0, 1, 0], [], []>} : vector<8x8xbf16>, vector<8x8xbf16>, vector<8x8xf32> -> vector<8x8xf32>
    %cst_107 = arith.constant 0.353553385 : f32
    %223 = vector.broadcast %cst_107 : f32 to vector<8x8xf32>
    %224 = arith.mulf %222, %223 : vector<8x8xf32>
    %cst_108 = arith.constant dense<0xFF800000> : vector<8xf32>
    %225 = vector.multi_reduction <maximumf>, %224, %cst_108 [1] : vector<8x8xf32> to vector<8xf32>
    %226 = vector.shape_cast %225 : vector<8xf32> to vector<8x1xf32>
    %227 = vector.broadcast %226 : vector<8x1xf32> to vector<8x8xf32>
    %228 = arith.subf %224, %227 : vector<8x8xf32>
    %229 = math.exp %228 : vector<8x8xf32>
    %cst_109 = arith.constant dense<0.000000e+00> : vector<8xf32>
    %230 = vector.multi_reduction <add>, %229, %cst_109 [1] : vector<8x8xf32> to vector<8xf32>
    %231 = vector.shape_cast %230 : vector<8xf32> to vector<8x1xf32>
    %232 = tpu.reciprocal %231 {approx = true} : vector<8x1xf32> -> vector<8x1xf32>
    %233 = vector.broadcast %232 : vector<8x1xf32> to vector<8x8xf32>
    %234 = arith.mulf %229, %233 : vector<8x8xf32>
    %235 = arith.truncf %234 : vector<8x8xf32> to vector<8x8xbf16>
    %236 = vector.extract_strided_slice %183 {offsets = [0, 16], sizes = [8, 8], strides = [1, 1]} : vector<8x32xbf16> to vector<8x8xbf16>
    %cst_110 = arith.constant dense<0.000000e+00> : vector<8x8xf32>
    %237 = tpu.matmul %235, %236, %cst_110 {dimension_numbers = #tpu.dot_dimension_numbers<[1], [0], [0], [1], [0, 0, 1, 1], [], []>} : vector<8x8xbf16>, vector<8x8xbf16>, vector<8x8xf32> -> vector<8x8xf32>
    %238 = vector.extract_strided_slice %181 {offsets = [0, 24], sizes = [8, 8], strides = [1, 1]} : vector<8x32xbf16> to vector<8x8xbf16>
    %239 = vector.extract_strided_slice %182 {offsets = [0, 24], sizes = [8, 8], strides = [1, 1]} : vector<8x32xbf16> to vector<8x8xbf16>
    %cst_111 = arith.constant dense<0.000000e+00> : vector<8x8xf32>
    %240 = tpu.matmul %238, %239, %cst_111 {dimension_numbers = #tpu.dot_dimension_numbers<[1], [1], [0], [0], [0, 0, 1, 0], [], []>} : vector<8x8xbf16>, vector<8x8xbf16>, vector<8x8xf32> -> vector<8x8xf32>
    %cst_112 = arith.constant 0.353553385 : f32
    %241 = vector.broadcast %cst_112 : f32 to vector<8x8xf32>
    %242 = arith.mulf %240, %241 : vector<8x8xf32>
    %cst_113 = arith.constant dense<0xFF800000> : vector<8xf32>
    %243 = vector.multi_reduction <maximumf>, %242, %cst_113 [1] : vector<8x8xf32> to vector<8xf32>
    %244 = vector.shape_cast %243 : vector<8xf32> to vector<8x1xf32>
    %245 = vector.broadcast %244 : vector<8x1xf32> to vector<8x8xf32>
    %246 = arith.subf %242, %245 : vector<8x8xf32>
    %247 = math.exp %246 : vector<8x8xf32>
    %cst_114 = arith.constant dense<0.000000e+00> : vector<8xf32>
    %248 = vector.multi_reduction <add>, %247, %cst_114 [1] : vector<8x8xf32> to vector<8xf32>
    %249 = vector.shape_cast %248 : vector<8xf32> to vector<8x1xf32>
    %250 = tpu.reciprocal %249 {approx = true} : vector<8x1xf32> -> vector<8x1xf32>
    %251 = vector.broadcast %250 : vector<8x1xf32> to vector<8x8xf32>
    %252 = arith.mulf %247, %251 : vector<8x8xf32>
    %253 = arith.truncf %252 : vector<8x8xf32> to vector<8x8xbf16>
    %254 = vector.extract_strided_slice %183 {offsets = [0, 24], sizes = [8, 8], strides = [1, 1]} : vector<8x32xbf16> to vector<8x8xbf16>
    %cst_115 = arith.constant dense<0.000000e+00> : vector<8x8xf32>
    %255 = tpu.matmul %253, %254, %cst_115 {dimension_numbers = #tpu.dot_dimension_numbers<[1], [0], [0], [1], [0, 0, 1, 1], [], []>} : vector<8x8xbf16>, vector<8x8xbf16>, vector<8x8xf32> -> vector<8x8xf32>
    %256 = tpu.concatenate %201, %219, %237, %255 in 1 : vector<8x8xf32>, vector<8x8xf32>, vector<8x8xf32>, vector<8x8xf32> -> vector<8x32xf32>
    %257 = arith.truncf %256 : vector<8x32xf32> to vector<8x32xbf16>
    %c0_116 = arith.constant 0 : index
    %c7 = arith.constant 7 : index
    %c0_117 = arith.constant 0 : index
    %c0_118 = arith.constant 0 : index
    %258 = vector.load %arg7[%c0_116, %c7, %c0_117, %c0_118] : memref<1x8x32x32xbf16, #tpu.memory_space<vmem>>, vector<1x1x32x32xbf16>
    %259 = vector.shape_cast %258 : vector<1x1x32x32xbf16> to vector<32x32xbf16>
    %cst_119 = arith.constant dense<0.000000e+00> : vector<8x32xf32>
    %260 = tpu.matmul %257, %259, %cst_119 {dimension_numbers = #tpu.dot_dimension_numbers<[1], [0], [0], [1], [0, 0, 1, 1], [], []>} : vector<8x32xbf16>, vector<32x32xbf16>, vector<8x32xf32> -> vector<8x32xf32>
    %c0_120 = arith.constant 0 : index
    %c7_121 = arith.constant 7 : index
    %c0_122 = arith.constant 0 : index
    %261 = vector.load %arg8[%c0_120, %c7_121, %c0_122] : memref<1x8x32xf32, #tpu.memory_space<vmem>>, vector<1x1x32xf32>
    %262 = vector.shape_cast %261 : vector<1x1x32xf32> to vector<1x32xf32>
    %263 = vector.broadcast %262 : vector<1x32xf32> to vector<8x32xf32>
    %264 = arith.addf %260, %263 : vector<8x32xf32>
    %265 = arith.addf %155, %264 : vector<8x32xf32>
    %cst_123 = arith.constant dense<0.000000e+00> : vector<8xf32>
    %266 = vector.multi_reduction <add>, %265, %cst_123 [1] : vector<8x32xf32> to vector<8xf32>
    %267 = vector.shape_cast %266 : vector<8xf32> to vector<8x1xf32>
    %cst_124 = arith.constant 3.200000e+01 : f32
    %268 = vector.broadcast %cst_124 : f32 to vector<8x1xf32>
    %269 = arith.divf %267, %268 : vector<8x1xf32>
    %270 = vector.broadcast %269 : vector<8x1xf32> to vector<8x32xf32>
    %271 = arith.subf %265, %270 : vector<8x32xf32>
    %272 = vector.broadcast %269 : vector<8x1xf32> to vector<8x32xf32>
    %273 = arith.subf %265, %272 : vector<8x32xf32>
    %274 = arith.mulf %271, %273 : vector<8x32xf32>
    %cst_125 = arith.constant dense<0.000000e+00> : vector<8xf32>
    %275 = vector.multi_reduction <add>, %274, %cst_125 [1] : vector<8x32xf32> to vector<8xf32>
    %276 = vector.shape_cast %275 : vector<8xf32> to vector<8x1xf32>
    %cst_126 = arith.constant 3.200000e+01 : f32
    %277 = vector.broadcast %cst_126 : f32 to vector<8x1xf32>
    %278 = arith.divf %276, %277 : vector<8x1xf32>
    %279 = vector.broadcast %269 : vector<8x1xf32> to vector<8x32xf32>
    %280 = arith.subf %265, %279 : vector<8x32xf32>
    %cst_127 = arith.constant 9.99999974E-6 : f32
    %281 = vector.broadcast %cst_127 : f32 to vector<8x1xf32>
    %282 = arith.addf %278, %281 : vector<8x1xf32>
    %283 = math.rsqrt %282 : vector<8x1xf32>
    %284 = vector.broadcast %283 : vector<8x1xf32> to vector<8x32xf32>
    %285 = arith.mulf %280, %284 : vector<8x32xf32>
    %c0_128 = arith.constant 0 : index
    %c2_129 = arith.constant 2 : index
    %c0_130 = arith.constant 0 : index
    %286 = vector.load %arg9[%c0_128, %c2_129, %c0_130] : memref<1x6x32xf32, #tpu.memory_space<vmem>>, vector<1x1x32xf32>
    %287 = vector.shape_cast %286 : vector<1x1x32xf32> to vector<1x32xf32>
    %288 = vector.broadcast %287 : vector<1x32xf32> to vector<8x32xf32>
    %289 = arith.mulf %285, %288 : vector<8x32xf32>
    %c0_131 = arith.constant 0 : index
    %c3_132 = arith.constant 3 : index
    %c0_133 = arith.constant 0 : index
    %290 = vector.load %arg9[%c0_131, %c3_132, %c0_133] : memref<1x6x32xf32, #tpu.memory_space<vmem>>, vector<1x1x32xf32>
    %291 = vector.shape_cast %290 : vector<1x1x32xf32> to vector<1x32xf32>
    %292 = vector.broadcast %291 : vector<1x32xf32> to vector<8x32xf32>
    %293 = arith.addf %289, %292 : vector<8x32xf32>
    %294 = arith.truncf %293 : vector<8x32xf32> to vector<8x32xbf16>
    %c0_134 = arith.constant 0 : index
    %c0_135 = arith.constant 0 : index
    %c0_136 = arith.constant 0 : index
    %295 = vector.load %arg10[%c0_134, %c0_135, %c0_136] : memref<1x32x64xbf16, #tpu.memory_space<vmem>>, vector<1x32x64xbf16>
    %296 = vector.shape_cast %295 : vector<1x32x64xbf16> to vector<32x64xbf16>
    %cst_137 = arith.constant dense<0.000000e+00> : vector<8x64xf32>
    %297 = tpu.matmul %294, %296, %cst_137 {dimension_numbers = #tpu.dot_dimension_numbers<[1], [0], [0], [1], [0, 0, 1, 1], [], []>} : vector<8x32xbf16>, vector<32x64xbf16>, vector<8x64xf32> -> vector<8x64xf32>
    %c0_138 = arith.constant 0 : index
    %c0_139 = arith.constant 0 : index
    %c0_140 = arith.constant 0 : index
    %298 = vector.load %arg11[%c0_138, %c0_139, %c0_140] : memref<1x1x64xf32, #tpu.memory_space<vmem>>, vector<1x1x64xf32>
    %299 = vector.shape_cast %298 : vector<1x1x64xf32> to vector<1x64xf32>
    %300 = vector.broadcast %299 : vector<1x64xf32> to vector<8x64xf32>
    %301 = arith.addf %297, %300 : vector<8x64xf32>
    %cst_141 = arith.constant 0.000000e+00 : f32
    %302 = vector.broadcast %cst_141 : f32 to vector<8x64xf32>
    %303 = arith.maximumf %301, %302 : vector<8x64xf32>
    %304 = arith.truncf %303 : vector<8x64xf32> to vector<8x64xbf16>
    %c0_142 = arith.constant 0 : index
    %c0_143 = arith.constant 0 : index
    %c0_144 = arith.constant 0 : index
    %305 = vector.load %arg12[%c0_142, %c0_143, %c0_144] : memref<1x64x32xbf16, #tpu.memory_space<vmem>>, vector<1x64x32xbf16>
    %306 = vector.shape_cast %305 : vector<1x64x32xbf16> to vector<64x32xbf16>
    %cst_145 = arith.constant dense<0.000000e+00> : vector<8x32xf32>
    %307 = tpu.matmul %304, %306, %cst_145 {dimension_numbers = #tpu.dot_dimension_numbers<[1], [0], [0], [1], [0, 0, 1, 1], [], []>} : vector<8x64xbf16>, vector<64x32xbf16>, vector<8x32xf32> -> vector<8x32xf32>
    %c0_146 = arith.constant 0 : index
    %c0_147 = arith.constant 0 : index
    %c0_148 = arith.constant 0 : index
    %308 = vector.load %arg13[%c0_146, %c0_147, %c0_148] : memref<1x1x32xf32, #tpu.memory_space<vmem>>, vector<1x1x32xf32>
    %309 = vector.shape_cast %308 : vector<1x1x32xf32> to vector<1x32xf32>
    %310 = vector.broadcast %309 : vector<1x32xf32> to vector<8x32xf32>
    %311 = arith.addf %307, %310 : vector<8x32xf32>
    %312 = arith.addf %293, %311 : vector<8x32xf32>
    %cst_149 = arith.constant dense<0.000000e+00> : vector<8xf32>
    %313 = vector.multi_reduction <add>, %312, %cst_149 [1] : vector<8x32xf32> to vector<8xf32>
    %314 = vector.shape_cast %313 : vector<8xf32> to vector<8x1xf32>
    %cst_150 = arith.constant 3.200000e+01 : f32
    %315 = vector.broadcast %cst_150 : f32 to vector<8x1xf32>
    %316 = arith.divf %314, %315 : vector<8x1xf32>
    %317 = vector.broadcast %316 : vector<8x1xf32> to vector<8x32xf32>
    %318 = arith.subf %312, %317 : vector<8x32xf32>
    %319 = vector.broadcast %316 : vector<8x1xf32> to vector<8x32xf32>
    %320 = arith.subf %312, %319 : vector<8x32xf32>
    %321 = arith.mulf %318, %320 : vector<8x32xf32>
    %cst_151 = arith.constant dense<0.000000e+00> : vector<8xf32>
    %322 = vector.multi_reduction <add>, %321, %cst_151 [1] : vector<8x32xf32> to vector<8xf32>
    %323 = vector.shape_cast %322 : vector<8xf32> to vector<8x1xf32>
    %cst_152 = arith.constant 3.200000e+01 : f32
    %324 = vector.broadcast %cst_152 : f32 to vector<8x1xf32>
    %325 = arith.divf %323, %324 : vector<8x1xf32>
    %326 = vector.broadcast %316 : vector<8x1xf32> to vector<8x32xf32>
    %327 = arith.subf %312, %326 : vector<8x32xf32>
    %cst_153 = arith.constant 9.99999974E-6 : f32
    %328 = vector.broadcast %cst_153 : f32 to vector<8x1xf32>
    %329 = arith.addf %325, %328 : vector<8x1xf32>
    %330 = math.rsqrt %329 : vector<8x1xf32>
    %331 = vector.broadcast %330 : vector<8x1xf32> to vector<8x32xf32>
    %332 = arith.mulf %327, %331 : vector<8x32xf32>
    %c0_154 = arith.constant 0 : index
    %c4_155 = arith.constant 4 : index
    %c0_156 = arith.constant 0 : index
    %333 = vector.load %arg9[%c0_154, %c4_155, %c0_156] : memref<1x6x32xf32, #tpu.memory_space<vmem>>, vector<1x1x32xf32>
    %334 = vector.shape_cast %333 : vector<1x1x32xf32> to vector<1x32xf32>
    %335 = vector.broadcast %334 : vector<1x32xf32> to vector<8x32xf32>
    %336 = arith.mulf %332, %335 : vector<8x32xf32>
    %c0_157 = arith.constant 0 : index
    %c5_158 = arith.constant 5 : index
    %c0_159 = arith.constant 0 : index
    %337 = vector.load %arg9[%c0_157, %c5_158, %c0_159] : memref<1x6x32xf32, #tpu.memory_space<vmem>>, vector<1x1x32xf32>
    %338 = vector.shape_cast %337 : vector<1x1x32xf32> to vector<1x32xf32>
    %339 = vector.broadcast %338 : vector<1x32xf32> to vector<8x32xf32>
    %340 = arith.addf %336, %339 : vector<8x32xf32>
    %c0_160 = arith.constant 0 : index
    %c0_161 = arith.constant 0 : index
    %c0_162 = arith.constant 0 : index
    %341 = vector.load %arg14[%c0_160, %c0_161, %c0_162] : memref<1x8x32xf32, #tpu.memory_space<vmem>>, vector<1x8x32xf32>
    %342 = vector.shape_cast %341 : vector<1x8x32xf32> to vector<8x32xf32>
    %343 = vector.shape_cast %340 : vector<8x32xf32> to vector<1x8x32xf32>
    tpu.vector_store %arg14[%c0_160, %c0_161, %c0_162], %343 {strides = array<i32>} : memref<1x8x32xf32, #tpu.memory_space<vmem>>, vector<1x8x32xf32>,
    return
  }
  func.func @transform_0(%arg0: i32, %arg1: i32) -> (i32, i32, i32) {
    %c3_i32 = arith.constant 3 : i32
    %c0_i32 = arith.constant 0 : i32
    %0 = arith.cmpi eq, %c3_i32, %c0_i32 : i32
    %c1_i32 = arith.constant 1 : i32
    %1 = arith.select %0, %c1_i32, %c3_i32 : i32
    %2 = arith.remsi %arg1, %1 : i32
    %c0_i32_0 = arith.constant 0 : i32
    %3 = arith.cmpi ne, %2, %c0_i32_0 : i32
    %c0_i32_1 = arith.constant 0 : i32
    %4 = arith.cmpi slt, %2, %c0_i32_1 : i32
    %c0_i32_2 = arith.constant 0 : i32
    %5 = arith.cmpi slt, %1, %c0_i32_2 : i32
    %6 = arith.xori %4, %5 : i1
    %7 = arith.andi %6, %3 : i1
    %8 = arith.addi %2, %1 : i32
    %9 = arith.select %7, %8, %2 : i32
    %c0_i32_3 = arith.constant 0 : i32
    %c0_i32_4 = arith.constant 0 : i32
    %c0_i32_5 = arith.constant 0 : i32
    return %9, %c0_i32_3, %c0_i32_4 : i32, i32, i32
  }
  func.func @transform_1(%arg0: i32, %arg1: i32) -> (i32, i32) {
    %c0_i32 = arith.constant 0 : i32
    %c0_i32_0 = arith.constant 0 : i32
    %c0_i32_1 = arith.constant 0 : i32
    return %c0_i32, %c0_i32_0 : i32, i32
  }
  func.func @transform_2(%arg0: i32, %arg1: i32) -> (i32, i32) {
    %c0_i32 = arith.constant 0 : i32
    %c0_i32_0 = arith.constant 0 : i32
    %c0_i32_1 = arith.constant 0 : i32
    return %c0_i32, %c0_i32_0 : i32, i32
  }
  func.func @transform_3(%arg0: i32, %arg1: i32) -> (i32, i32, i32, i32) {
    %c3_i32 = arith.constant 3 : i32
    %c0_i32 = arith.constant 0 : i32
    %0 = arith.cmpi eq, %c3_i32, %c0_i32 : i32
    %c1_i32 = arith.constant 1 : i32
    %1 = arith.select %0, %c1_i32, %c3_i32 : i32
    %2 = arith.remsi %arg1, %1 : i32
    %c0_i32_0 = arith.constant 0 : i32
    %3 = arith.cmpi ne, %2, %c0_i32_0 : i32
    %c0_i32_1 = arith.constant 0 : i32
    %4 = arith.cmpi slt, %2, %c0_i32_1 : i32
    %c0_i32_2 = arith.constant 0 : i32
    %5 = arith.cmpi slt, %1, %c0_i32_2 : i32
    %6 = arith.xori %4, %5 : i1
    %7 = arith.andi %6, %3 : i1
    %8 = arith.addi %2, %1 : i32
    %9 = arith.select %7, %8, %2 : i32
    %c0_i32_3 = arith.constant 0 : i32
    %c0_i32_4 = arith.constant 0 : i32
    %c0_i32_5 = arith.constant 0 : i32
    return %9, %arg0, %c0_i32_3, %c0_i32_4 : i32, i32, i32, i32
  }
  func.func @transform_4(%arg0: i32, %arg1: i32) -> (i32, i32, i32, i32) {
    %c3_i32 = arith.constant 3 : i32
    %c0_i32 = arith.constant 0 : i32
    %0 = arith.cmpi eq, %c3_i32, %c0_i32 : i32
    %c1_i32 = arith.constant 1 : i32
    %1 = arith.select %0, %c1_i32, %c3_i32 : i32
    %2 = arith.remsi %arg1, %1 : i32
    %c0_i32_0 = arith.constant 0 : i32
    %3 = arith.cmpi ne, %2, %c0_i32_0 : i32
    %c0_i32_1 = arith.constant 0 : i32
    %4 = arith.cmpi slt, %2, %c0_i32_1 : i32
    %c0_i32_2 = arith.constant 0 : i32
    %5 = arith.cmpi slt, %1, %c0_i32_2 : i32
    %6 = arith.xori %4, %5 : i1
    %7 = arith.andi %6, %3 : i1
    %8 = arith.addi %2, %1 : i32
    %9 = arith.select %7, %8, %2 : i32
    %c0_i32_3 = arith.constant 0 : i32
    %c0_i32_4 = arith.constant 0 : i32
    %c0_i32_5 = arith.constant 0 : i32
    return %9, %arg0, %c0_i32_3, %c0_i32_4 : i32, i32, i32, i32
  }
  func.func @transform_5(%arg0: i32, %arg1: i32) -> (i32, i32, i32, i32) {
    %c0_i32 = arith.constant 0 : i32
    %c0_i32_0 = arith.constant 0 : i32
    %c0_i32_1 = arith.constant 0 : i32
    %c0_i32_2 = arith.constant 0 : i32
    return %arg1, %c0_i32, %c0_i32_0, %c0_i32_1 : i32, i32, i32, i32
  }
  func.func @transform_6(%arg0: i32, %arg1: i32) -> (i32, i32, i32) {
    %c0_i32 = arith.constant 0 : i32
    %c0_i32_0 = arith.constant 0 : i32
    %c0_i32_1 = arith.constant 0 : i32
    return %arg1, %c0_i32, %c0_i32_0 : i32, i32, i32
  }
  func.func @transform_7(%arg0: i32, %arg1: i32) -> (i32, i32, i32) {
    %c0_i32 = arith.constant 0 : i32
    %c0_i32_0 = arith.constant 0 : i32
    %c0_i32_1 = arith.constant 0 : i32
    return %arg1, %c0_i32, %c0_i32_0 : i32, i32, i32
  }
  func.func @transform_8(%arg0: i32, %arg1: i32) -> (i32, i32, i32) {
    %c0_i32 = arith.constant 0 : i32
    %c0_i32_0 = arith.constant 0 : i32
    %c0_i32_1 = arith.constant 0 : i32
    return %arg1, %c0_i32, %c0_i32_0 : i32, i32, i32
  }
  func.func @transform_9(%arg0: i32, %arg1: i32) -> (i32, i32, i32) {
    %c0_i32 = arith.constant 0 : i32
    %c0_i32_0 = arith.constant 0 : i32
    %c0_i32_1 = arith.constant 0 : i32
    return %arg1, %c0_i32, %c0_i32_0 : i32, i32, i32
  }
  func.func @transform_10(%arg0: i32, %arg1: i32) -> (i32, i32, i32) {
    %c0_i32 = arith.constant 0 : i32
    %c0_i32_0 = arith.constant 0 : i32
    %c0_i32_1 = arith.constant 0 : i32
    return %arg1, %c0_i32, %c0_i32_0 : i32, i32, i32
  }
  func.func @transform_11(%arg0: i32, %arg1: i32) -> (i32, i32, i32) {
    %c0_i32 = arith.constant 0 : i32
    %c0_i32_0 = arith.constant 0 : i32
    %c0_i32_1 = arith.constant 0 : i32
    return %arg1, %c0_i32, %c0_i32_0 : i32, i32, i32
  }
  func.func @transform_12(%arg0: i32, %arg1: i32) -> (i32, i32, i32) {
    %c0_i32 = arith.constant 0 : i32
    %c0_i32_0 = arith.constant 0 : i32
    %c0_i32_1 = arith.constant 0 : i32
    return %arg0, %c0_i32, %c0_i32_0 : i32, i32, i32
  }
}

module attributes {stable_mosaic.version = 11 : i64} {
  func.func @_bqp_kernel(%arg0: i32, %arg1: i32, %arg2: memref<1x8x32xf32, #tpu.memory_space<vmem>>, %arg3: memref<1x32x256xbf16, #tpu.memory_space<vmem>>, %arg4: memref<1x8x256xf32, #tpu.memory_space<vmem>>) attributes {dimension_semantics = [#tpu.dimension_semantics<parallel>, #tpu.dimension_semantics<parallel>], iteration_bounds = array<i64: 2, 1>, scalar_prefetch = 0 : i64, scratch_operands = 0 : i64, tpu.core_type = #tpu.core_type<tc>, window_params = [{transform_indices = @transform_0, window_bounds = array<i64: 1, 8, 32>}, {transform_indices = @transform_1, window_bounds = array<i64: 1, 32, 256>}, {transform_indices = @transform_2, window_bounds = array<i64: 1, 8, 256>}]} {
    %c0 = arith.constant 0 : index
    %c0_0 = arith.constant 0 : index
    %c0_1 = arith.constant 0 : index
    %0 = vector.load %arg2[%c0, %c0_0, %c0_1] : memref<1x8x32xf32, #tpu.memory_space<vmem>>, vector<1x8x32xf32>
    %1 = vector.shape_cast %0 : vector<1x8x32xf32> to vector<8x32xf32>
    %2 = arith.truncf %1 : vector<8x32xf32> to vector<8x32xbf16>
    %c0_2 = arith.constant 0 : index
    %c0_3 = arith.constant 0 : index
    %c0_4 = arith.constant 0 : index
    %3 = vector.load %arg3[%c0_2, %c0_3, %c0_4] : memref<1x32x256xbf16, #tpu.memory_space<vmem>>, vector<1x32x256xbf16>
    %4 = vector.shape_cast %3 : vector<1x32x256xbf16> to vector<32x256xbf16>
    %cst = arith.constant dense<0.000000e+00> : vector<8x256xf32>
    %5 = tpu.matmul %2, %4, %cst {dimension_numbers = #tpu.dot_dimension_numbers<[1], [0], [0], [1], [0, 0, 1, 1], [], []>} : vector<8x32xbf16>, vector<32x256xbf16>, vector<8x256xf32> -> vector<8x256xf32>
    %c0_5 = arith.constant 0 : index
    %c0_6 = arith.constant 0 : index
    %c0_7 = arith.constant 0 : index
    %6 = vector.load %arg4[%c0_5, %c0_6, %c0_7] : memref<1x8x256xf32, #tpu.memory_space<vmem>>, vector<1x8x256xf32>
    %7 = vector.shape_cast %6 : vector<1x8x256xf32> to vector<8x256xf32>
    %8 = vector.shape_cast %5 : vector<8x256xf32> to vector<1x8x256xf32>
    tpu.vector_store %arg4[%c0_5, %c0_6, %c0_7], %8 {strides = array<i32>} : memref<1x8x256xf32, #tpu.memory_space<vmem>>, vector<1x8x256xf32>,
    return
  }
  func.func @transform_0(%arg0: i32, %arg1: i32) -> (i32, i32, i32) {
    %c0_i32 = arith.constant 0 : i32
    %c0_i32_0 = arith.constant 0 : i32
    %c0_i32_1 = arith.constant 0 : i32
    return %arg0, %c0_i32, %c0_i32_0 : i32, i32, i32
  }
  func.func @transform_1(%arg0: i32, %arg1: i32) -> (i32, i32, i32) {
    %c0_i32 = arith.constant 0 : i32
    %c0_i32_0 = arith.constant 0 : i32
    return %arg0, %c0_i32, %arg1 : i32, i32, i32
  }
  func.func @transform_2(%arg0: i32, %arg1: i32) -> (i32, i32, i32) {
    %c0_i32 = arith.constant 0 : i32
    %c0_i32_0 = arith.constant 0 : i32
    return %arg0, %c0_i32, %arg1 : i32, i32, i32
  }
}

</mosaic_0001>

<llo_original>
// kernel: multi_scale_color_decoder_forward.6
$region0: #{multi_scale_color_decoder_forward.6}
  #allocation0 [shape = 'u32[]', space=smem, size = 0x4, offset = 0x4, fixed_abs, tag = 'smem constant byte address 0x4 - core index']
  #allocation1 [shape = 'u32[72,128]{1,0:T(1,128)}', space=vmem, size = 0x9000, scoped, tag = 'internal scratch']
  %s0 = inlined_call_operand.vmem [shape: f32[2,64,8], index: 0, kind: input, shape index: {}]
  %s1 = inlined_call_operand.vmem [shape: bf16[8,32], index: 1, kind: input, shape index: {}]
  %s2 = inlined_call_operand.vmem [shape: f32[1,32], index: 2, kind: input, shape index: {}]
  %s3 = inlined_call_operand.vmem [shape: f32[2,64,32], index: 3, kind: input, shape index: {}]
  %s4 = inlined_call_operand.vmem [shape: bf16[2,64,32], index: 4, kind: output, shape index: {0}]
  %s5 = inlined_call_operand.vmem [shape: bf16[2,64,32], index: 5, kind: output, shape index: {1}]
  %6 = xla_tuple %s4, %s5
  %s7 = sld [smem:[#allocation0]]
  $region57: #{multi_scale_color_decoder_forward.6} parent=0
    _
  %s9 = ssub.s32 1, %s7
  %s10 = scalar_select 0, %s9, %s7
  loop: start=0, step=1, limit=4
  $region2: #{multi_scale_color_decoder_forward.6} parent=0 // loop_pre_header
    _
  $region3: #{multi_scale_color_decoder_forward.6} parent=0 // loop_header
    %s12 = sphi 0, %s16
    %p13 = scmp.ge.s32.totalorder %s12, 4
    %s19 = sphi 0, %s31
    %s20 = sphi 0, %s27
    %s21 = sphi 0, %s19
    %s22 = sphi 0, %s20
    %s23 = sphi 0, %s21
    %s24 = sphi 0, %s22
    %s36 = sphi 0, %s38
    %s39 = sphi 0, %s36
    %s40 = sphi 0, %s39
    %s56 = sphi 0, %s40
    %s60 = sphi 0, %s60
    %s62 = sphi 0, %s60
    %s63 = sphi 0, %s62
    %s77 = sphi 0, %s63
    %s81 = sphi 0, %s81
    %s83 = sphi 0, %s81
    %s84 = sphi 0, %s83
    %s98 = sphi 0, %s84
    %s106 = sphi 0, %s108
    %s109 = sphi 0, %s106
    %s110 = sphi 0, %s109
    %s126 = sphi 0, %s110
    %s134 = sphi 0, %s136
    %s137 = sphi 0, %s134
    %s138 = sphi 0, %s137
    %s154 = sphi 0, %s138
    %s162 = sphi 0, %s164
    %s165 = sphi 0, %s162
    %s166 = sphi 0, %s165
    %s182 = sphi 0, %s166
  $region4: #{multi_scale_color_decoder_forward.6} parent=0 // loop_header_branch
    %15 = sbr.rel (%p13) target = $region8
  $region5: #{multi_scale_color_decoder_forward.6} parent=0 // loop_body
    %s17 = ssub.s32 %s12, 1
    %s18 = ssub.s32 %s12, 2
    %s25 = sadd.s32 1, %s20
    %p26 = scmp.ge.s32.totalorder %s25, 1
    %s27 = scalar_select %p26, 0, %s25
    %s28 = sadd.s32 1, %s19
    %s29 = scalar_select %p26, %s28, %s19
    %p30 = scmp.ge.s32.totalorder %s29, 2
    %s31 = scalar_select %p30, 0, %s29
    %s32 = ssub.s32 %s19, %s31
    %s33 = ssub.s32 %s20, %s27
    %s34 = sor.u32 %s32, %s33
    %p35 = scmp.eq.s32.totalorder %s34, 0
    %s37 = sadd.s32 %s36, 1
    %s38 = scalar_select %p35, %s36, %s37
    %p41 = pneg %p35
    %p42 = scmp.eq.s32.totalorder %s12, 1
    %p43 = por %p41, %p42
    %p44 = scmp.ne.s32.totalorder %s36, %s39
    %p45 = scmp.eq.s32.totalorder %s12, 0
    %p46 = por %p44, %p45
    %p47 = scmp.ne.s32.totalorder %s36, %s39
    %p48 = scmp.eq.s32.totalorder %s17, 1
    %p49 = por %p47, %p48
    %p50 = scmp.ne.s32.totalorder %s39, %s40
    %p51 = scmp.eq.s32.totalorder %s17, 0
    %p52 = por %p50, %p51
    %p53 = scmp.ne.s32.totalorder %s39, %s40
    %p54 = scmp.eq.s32.totalorder %s18, 1
    %p55 = por %p53, %p54
    %p57 = scmp.ne.s32.totalorder %s40, %s56
    %p58 = scmp.eq.s32.totalorder %s18, 0
    %p59 = por %p57, %p58
    %s61 = sadd.s32 %s60, 1
    %p64 = scmp.eq.s32.totalorder %s12, 1
    %p65 = scmp.ne.s32.totalorder %s60, %s62
    %p66 = scmp.eq.s32.totalorder %s12, 0
    %p67 = por %p65, %p66
    %p68 = scmp.ne.s32.totalorder %s60, %s62
    %p69 = scmp.eq.s32.totalorder %s17, 1
    %p70 = por %p68, %p69
    %p71 = scmp.ne.s32.totalorder %s62, %s63
    %p72 = scmp.eq.s32.totalorder %s17, 0
    %p73 = por %p71, %p72
    %p74 = scmp.ne.s32.totalorder %s62, %s63
    %p75 = scmp.eq.s32.totalorder %s18, 1
    %p76 = por %p74, %p75
    %p78 = scmp.ne.s32.totalorder %s63, %s77
    %p79 = scmp.eq.s32.totalorder %s18, 0
    %p80 = por %p78, %p79
    %s82 = sadd.s32 %s81, 1
    %p85 = scmp.eq.s32.totalorder %s12, 1
    %p86 = scmp.ne.s32.totalorder %s81, %s83
    %p87 = scmp.eq.s32.totalorder %s12, 0
    %p88 = por %p86, %p87
    %p89 = scmp.ne.s32.totalorder %s81, %s83
    %p90 = scmp.eq.s32.totalorder %s17, 1
    %p91 = por %p89, %p90
    %p92 = scmp.ne.s32.totalorder %s83, %s84
    %p93 = scmp.eq.s32.totalorder %s17, 0
    %p94 = por %p92, %p93
    %p95 = scmp.ne.s32.totalorder %s83, %s84
    %p96 = scmp.eq.s32.totalorder %s18, 1
    %p97 = por %p95, %p96
    %p99 = scmp.ne.s32.totalorder %s84, %s98
    %p100 = scmp.eq.s32.totalorder %s18, 0
    %p101 = por %p99, %p100
    %s102 = ssub.s32 %s19, %s31
    %s103 = ssub.s32 %s20, %s27
    %s104 = sor.u32 %s102, %s103
    %p105 = scmp.eq.s32.totalorder %s104, 0
    %s107 = sadd.s32 %s106, 1
    %s108 = scalar_select %p105, %s106, %s107
    %p111 = pneg %p105
    %p112 = scmp.eq.s32.totalorder %s12, 1
    %p113 = por %p111, %p112
    %p114 = scmp.ne.s32.totalorder %s106, %s109
    %p115 = scmp.eq.s32.totalorder %s12, 0
    %p116 = por %p114, %p115
    %p117 = scmp.ne.s32.totalorder %s106, %s109
    %p118 = scmp.eq.s32.totalorder %s17, 1
    %p119 = por %p117, %p118
    %p120 = scmp.ne.s32.totalorder %s109, %s110
    %p121 = scmp.eq.s32.totalorder %s17, 0
    %p122 = por %p120, %p121
    %p123 = scmp.ne.s32.totalorder %s109, %s110
    %p124 = scmp.eq.s32.totalorder %s18, 1
    %p125 = por %p123, %p124
    %p127 = scmp.ne.s32.totalorder %s110, %s126
    %p128 = scmp.eq.s32.totalorder %s18, 0
    %p129 = por %p127, %p128
    %s130 = ssub.s32 %s19, %s31
    %s131 = ssub.s32 %s20, %s27
    %s132 = sor.u32 %s130, %s131
    %p133 = scmp.eq.s32.totalorder %s132, 0
    %s135 = sadd.s32 %s134, 1
    %s136 = scalar_select %p133, %s134, %s135
    %p139 = pneg %p133
    %p140 = scmp.eq.s32.totalorder %s12, 1
    %p141 = por %p139, %p140
    %p142 = scmp.ne.s32.totalorder %s134, %s137
    %p143 = scmp.eq.s32.totalorder %s12, 0
    %p144 = por %p142, %p143
    %p145 = scmp.ne.s32.totalorder %s134, %s137
    %p146 = scmp.eq.s32.totalorder %s17, 1
    %p147 = por %p145, %p146
    %p148 = scmp.ne.s32.totalorder %s137, %s138
    %p149 = scmp.eq.s32.totalorder %s17, 0
    %p150 = por %p148, %p149
    %p151 = scmp.ne.s32.totalorder %s137, %s138
    %p152 = scmp.eq.s32.totalorder %s18, 1
    %p153 = por %p151, %p152
    %p155 = scmp.ne.s32.totalorder %s138, %s154
    %p156 = scmp.eq.s32.totalorder %s18, 0
    %p157 = por %p155, %p156
    %s158 = ssub.s32 %s19, %s31
    %s159 = ssub.s32 %s20, %s27
    %s160 = sor.u32 %s158, %s159
    %p161 = scmp.eq.s32.totalorder %s160, 0
    %s163 = sadd.s32 %s162, 1
    %s164 = scalar_select %p161, %s162, %s163
    %p167 = pneg %p161
    %p168 = scmp.eq.s32.totalorder %s12, 1
    %p169 = por %p167, %p168
    %p170 = scmp.ne.s32.totalorder %s162, %s165
    %p171 = scmp.eq.s32.totalorder %s12, 0
    %p172 = por %p170, %p171
    %p173 = scmp.ne.s32.totalorder %s162, %s165
    %p174 = scmp.eq.s32.totalorder %s17, 1
    %p175 = por %p173, %p174
    %p176 = scmp.ne.s32.totalorder %s165, %s166
    %p177 = scmp.eq.s32.totalorder %s17, 0
    %p178 = por %p176, %p177
    %p179 = scmp.ne.s32.totalorder %s165, %s166
    %p180 = scmp.eq.s32.totalorder %s18, 1
    %p181 = por %p179, %p180
    %p183 = scmp.ne.s32.totalorder %s166, %s182
    %p184 = scmp.eq.s32.totalorder %s18, 0
    %p185 = por %p183, %p184
    %p186 = scmp.le.s32.totalorder 1, %s12
    %p187 = scmp.lt.s32.totalorder %s12, 3
    %p188 = pnand %p186, %p187
    %p189 = pneg %p188
    // Predicated region
    $region9: #{multi_scale_color_decoder_forward.6} parent=5 // pred_check
      _
    $region10: #{multi_scale_color_decoder_forward.6} parent=5 // pred_check_branch
      %191 = sbr.rel (%p188) target = $region12
    $region11: #{multi_scale_color_decoder_forward.6} parent=5 // pred_region
      %s192 = ssub.s32 %s12, 1
      // Predicated region
      $region13: #{multi_scale_color_decoder_forward.6} parent=11 // pred_check
        %p193 = pneg %p73
      $region14: #{multi_scale_color_decoder_forward.6} parent=11 // pred_check_branch
        %195 = sbr.rel (%p193) target = $region16
      $region15: #{multi_scale_color_decoder_forward.6} parent=11 // pred_region
        _
      $region16: #{multi_scale_color_decoder_forward.6} parent=11 // pred_fallthru
        _
      // Predicated region
      $region17: #{multi_scale_color_decoder_forward.6} parent=11 // pred_check
        %p196 = pneg %p94
      $region18: #{multi_scale_color_decoder_forward.6} parent=11 // pred_check_branch
        %198 = sbr.rel (%p196) target = $region20
      $region19: #{multi_scale_color_decoder_forward.6} parent=11 // pred_region
        _
      $region20: #{multi_scale_color_decoder_forward.6} parent=11 // pred_fallthru
        _
    $region12: #{multi_scale_color_decoder_forward.6} parent=5 // pred_fallthru
      _
    %p199 = scmp.lt.s32.totalorder %s12, 2
    // Predicated region
    $region21: #{multi_scale_color_decoder_forward.6} parent=5 // pred_check
      %p200 = pneg %p199
    $region22: #{multi_scale_color_decoder_forward.6} parent=5 // pred_check_branch
      %202 = sbr.rel (%p200) target = $region24
    $region23: #{multi_scale_color_decoder_forward.6} parent=5 // pred_region
      // Predicated region
      $region25: #{multi_scale_color_decoder_forward.6} parent=23 // pred_check
        %p203 = pneg %p46
      $region26: #{multi_scale_color_decoder_forward.6} parent=23 // pred_check_branch
        %205 = sbr.rel (%p203) target = $region28
      $region27: #{multi_scale_color_decoder_forward.6} parent=23 // pred_region
        %s206 = smul.u32 8, %s20
        %p207 = scmp.lt.s32.totalorder %s19, 1
        %s208 = scalar_select %p207, %s19, 1
        %p209 = scmp.lt.s32.totalorder %s206, 7
        %s210 = scalar_select %p209, %s206, 7
        %s211 = smul.addr %s208, 8
        %s212 = sadd.s32 %s210, %s211
        %s213 = smul.addr %s212, 8
        %s214 = scalar_lea.vmem %s0, %s213
        %s215 = smul.u32 8, %s20
      $region28: #{multi_scale_color_decoder_forward.6} parent=23 // pred_fallthru
        _
      // Predicated region
      $region29: #{multi_scale_color_decoder_forward.6} parent=23 // pred_check
        %p216 = pneg %p116
      $region30: #{multi_scale_color_decoder_forward.6} parent=23 // pred_check_branch
        %218 = sbr.rel (%p216) target = $region32
      $region31: #{multi_scale_color_decoder_forward.6} parent=23 // pred_region
        %s219 = smul.u32 8, %s20
        %p220 = scmp.lt.s32.totalorder %s19, 1
        %s221 = scalar_select %p220, %s19, 1
        %p222 = scmp.lt.s32.totalorder %s219, 7
        %s223 = scalar_select %p222, %s219, 7
        %s224 = smul.addr %s221, 8
        %s225 = sadd.s32 %s223, %s224
        %s226 = smul.addr %s225, 8
        %s227 = scalar_lea.vmem %s3, %s226
        %s228 = smul.u32 8, %s20
      $region32: #{multi_scale_color_decoder_forward.6} parent=23 // pred_fallthru
        _
    $region24: #{multi_scale_color_decoder_forward.6} parent=5 // pred_fallthru
      _
    %p229 = scmp.le.s32.totalorder 1, %s12
    %p230 = scmp.lt.s32.totalorder %s12, 3
    %p231 = pnand %p229, %p230
    %p232 = pneg %p231
    // Predicated region
    $region33: #{multi_scale_color_decoder_forward.6} parent=5 // pred_check
      _
    $region34: #{multi_scale_color_decoder_forward.6} parent=5 // pred_check_branch
      %234 = sbr.rel (%p231) target = $region36
    $region35: #{multi_scale_color_decoder_forward.6} parent=5 // pred_region
      %s235 = ssub.s32 %s12, 1
      %s236 = smul.u32 8, %s22
      %p237 = scmp.lt.s32.totalorder %s21, 1
      %s238 = scalar_select %p237, %s21, 1
      %p239 = scmp.lt.s32.totalorder %s236, 7
      %s240 = scalar_select %p239, %s236, 7
      %s241 = smul.addr %s238, 8
      %s242 = sadd.s32 %s240, %s241
      %s243 = smul.addr %s242, 8
      %s244 = scalar_lea.vmem %s0, %s243
      %p245 = pneg %p52
      %p246 = pneg %p49
      %p247 = pneg %p73
      %p248 = pneg %p70
      %p249 = pneg %p94
      %p250 = pneg %p91
      %s251 = smul.u32 8, %s22
      %p252 = scmp.lt.s32.totalorder %s21, 1
      %s253 = scalar_select %p252, %s21, 1
      %p254 = scmp.lt.s32.totalorder %s251, 7
      %s255 = scalar_select %p254, %s251, 7
      %s256 = smul.addr %s253, 8
      %s257 = sadd.s32 %s255, %s256
      %s258 = smul.addr %s257, 8
      %s259 = scalar_lea.vmem %s3, %s258
      %p260 = pneg %p122
      %p261 = pneg %p119
      %p262 = pneg %p150
      %p263 = pneg %p147
      %s264 = smul.u32 8, %s22
      %p265 = scmp.lt.s32.totalorder %s21, 1
      %s266 = scalar_select %p265, %s21, 1
      %p267 = scmp.lt.s32.totalorder %s264, 7
      %s268 = scalar_select %p267, %s264, 7
      %s269 = smul.addr %s266, 8
      %s270 = sadd.s32 %s268, %s269
      %s271 = smul.addr %s270, 4
      %s272 = scalar_lea.vmem %s4, %s271
      %p273 = pneg %p178
      %p274 = pneg %p175
      %s275 = smul.u32 8, %s22
      %p276 = scmp.lt.s32.totalorder %s21, 1
      %s277 = scalar_select %p276, %s21, 1
      %p278 = scmp.lt.s32.totalorder %s275, 7
      %s279 = scalar_select %p278, %s275, 7
      %s280 = smul.addr %s277, 8
      %s281 = sadd.s32 %s279, %s280
      %s282 = smul.addr %s281, 4
      %s283 = scalar_lea.vmem %s5, %s282
      %s284 = smul.u32 8, %s22
      %p285 = scmp.lt.s32.totalorder %s21, 1
      %s286 = scalar_select %p285, %s21, 1
      %p287 = scmp.lt.s32.totalorder %s284, 7
      %s288 = scalar_select %p287, %s284, 7
      %s289 = smul.addr %s286, 8
      %s290 = sadd.s32 %s288, %s289
      %s291 = smul.addr %s290, 8
      %s292 = scalar_lea.vmem %s0, %s291
      %s293 = smul.u32 8, %s22
      %s294 = smul.u32 8, %s22
      %p295 = scmp.lt.s32.totalorder %s21, 1
      %s296 = scalar_select %p295, %s21, 1
      %p297 = scmp.lt.s32.totalorder %s294, 7
      %s298 = scalar_select %p297, %s294, 7
      %s299 = smul.addr %s296, 8
      %s300 = sadd.s32 %s298, %s299
      %s301 = smul.addr %s300, 8
      %s302 = scalar_lea.vmem %s3, %s301
      %s303 = smul.u32 8, %s22
      %s304 = smul.u32 8, %s22
      %p305 = scmp.lt.s32.totalorder %s21, 1
      %s306 = scalar_select %p305, %s21, 1
      %p307 = scmp.lt.s32.totalorder %s304, 7
      %s308 = scalar_select %p307, %s304, 7
      %s309 = smul.addr %s306, 8
      %s310 = sadd.s32 %s308, %s309
      %s311 = smul.addr %s310, 4
      %s312 = scalar_lea.vmem %s4, %s311
      %s313 = smul.u32 8, %s22
      %s314 = smul.u32 8, %s22
      %p315 = scmp.lt.s32.totalorder %s21, 1
      %s316 = scalar_select %p315, %s21, 1
      %p317 = scmp.lt.s32.totalorder %s314, 7
      %s318 = scalar_select %p317, %s314, 7
      %s319 = smul.addr %s316, 8
      %s320 = sadd.s32 %s318, %s319
      %s321 = smul.addr %s320, 4
      %s322 = scalar_lea.vmem %s5, %s321
      %s323 = smul.u32 8, %s22
      %v325 = vld [vmem:[%s292] sm:$0xff]
      %v326 = vld [vmem:[%s292 + $0x8] sm:$0xff]
      %v327 = vld [vmem:[%s292 + $0x10] sm:$0xff]
      %v328 = vld [vmem:[%s292 + $0x18] sm:$0xff]
      %v329 = vld [vmem:[%s292 + $0x20] sm:$0xff]
      %v330 = vld [vmem:[%s292 + $0x28] sm:$0xff]
      %v331 = vld [vmem:[%s292 + $0x30] sm:$0xff]
      %v332 = vld [vmem:[%s292 + $0x38] sm:$0xff]
      %v333 = vpack.c.bf16 %v326, %v325
      %v334 = vpack.c.bf16 %v328, %v327
      %v335 = vpack.c.bf16 %v330, %v329
      %v336 = vpack.c.bf16 %v332, %v331
      %v337 = vld [vmem:[%s1] sm:$0xf]
      %v338 = vld [vmem:[%s2] sm:$0x1]
      %v340 = vperm.slane %v338, 0
      %vm342 = vcmask 64512
      %v344 = vsel %vm342, %v333, 0
      %v347 = vsel %vm342, %v334, 0
      %v350 = vsel %vm342, %v335, 0
      %v353 = vsel %vm342, %v336, 0
      %vm355 = vcmask 1043456
      %v357 = vsel %vm355, %v337, 0
      %359 = vmatpush.bf16.msra.mxu0 0
      %360 = vmatpush.bf16.msra.mxu0 0
      %361 = vmatpush.bf16.msra.mxu0 0
      %362 = vmatpush.bf16.msra.mxu0 0
      %363 = vmatpush.bf16.msra.mxu0 0
      %364 = vmatpush.bf16.msra.mxu0 0
      %365 = vmatpush.bf16.msra.mxu0 0
      %366 = vmatpush.bf16.msra.mxu0 %v357
      %367 = vmatmul.bf16.gmra.mxu0 %v344
      %v368 = vpop.f32.mrf.mxu0
      %v369 = vadd.f32 %v340, %v368
      %v370 = vpop.f32.mrf.mxu0
      %v371 = vadd.f32 %v340, %v370
      %372 = vmatmul.bf16.gmra.mxu0 %v347
      %v373 = vpop.f32.mrf.mxu0
      %v374 = vadd.f32 %v340, %v373
      %v375 = vpop.f32.mrf.mxu0
      %v376 = vadd.f32 %v340, %v375
      %377 = vmatmul.bf16.gmra.mxu0 %v350
      %v378 = vpop.f32.mrf.mxu0
      %v379 = vadd.f32 %v340, %v378
      %v380 = vpop.f32.mrf.mxu0
      %v381 = vadd.f32 %v340, %v380
      %382 = vmatmul.bf16.gmra.mxu0 %v353
      %v383 = vpop.f32.mrf.mxu0
      %v384 = vadd.f32 %v340, %v383
      %v385 = vpop.f32.mrf.mxu0
      %v386 = vadd.f32 %v340, %v385
      %387 = vdwg.mxu0
      %v388 = vpack.c.bf16 %v369, %v369
      %v389 = vpack.c.bf16 %v371, %v371
      %v390 = vpack.c.bf16 %v374, %v374
      %v391 = vpack.c.bf16 %v376, %v376
      %v392 = vpack.c.bf16 %v379, %v379
      %v393 = vpack.c.bf16 %v381, %v381
      %v394 = vpack.c.bf16 %v384, %v384
      %v395 = vpack.c.bf16 %v386, %v386
      %vm396 = vcmask 257024
      %397 = vst.msk [vmem:[%s312] sm:$0xf] %vm396, %v388
      %398 = vst.msk [vmem:[%s312 + $0x4] sm:$0xf] %vm396, %v389
      %399 = vst.msk [vmem:[%s312 + $0x8] sm:$0xf] %vm396, %v390
      %400 = vst.msk [vmem:[%s312 + $0xc] sm:$0xf] %vm396, %v391
      %401 = vst.msk [vmem:[%s312 + $0x10] sm:$0xf] %vm396, %v392
      %402 = vst.msk [vmem:[%s312 + $0x14] sm:$0xf] %vm396, %v393
      %403 = vst.msk [vmem:[%s312 + $0x18] sm:$0xf] %vm396, %v394
      %404 = vst.msk [vmem:[%s312 + $0x1c] sm:$0xf] %vm396, %v395
      %v405 = vld [vmem:[%s302] sm:$0xff]
      %v406 = vld [vmem:[%s302 + $0x8] sm:$0xff]
      %v407 = vld [vmem:[%s302 + $0x10] sm:$0xff]
      %v408 = vld [vmem:[%s302 + $0x18] sm:$0xff]
      %v409 = vld [vmem:[%s302 + $0x20] sm:$0xff]
      %v410 = vld [vmem:[%s302 + $0x28] sm:$0xff]
      %v411 = vld [vmem:[%s302 + $0x30] sm:$0xff]
      %v412 = vld [vmem:[%s302 + $0x38] sm:$0xff]
      %v413 = vadd.f32 %v369, %v405
      %v414 = vadd.f32 %v371, %v406
      %v415 = vadd.f32 %v374, %v407
      %v416 = vadd.f32 %v376, %v408
      %v417 = vadd.f32 %v379, %v409
      %v418 = vadd.f32 %v381, %v410
      %v419 = vadd.f32 %v384, %v411
      %v420 = vadd.f32 %v386, %v412
      %v421 = vpack.c.bf16 %v413, %v413
      %v422 = vpack.c.bf16 %v414, %v414
      %v423 = vpack.c.bf16 %v415, %v415
      %v424 = vpack.c.bf16 %v416, %v416
      %v425 = vpack.c.bf16 %v417, %v417
      %v426 = vpack.c.bf16 %v418, %v418
      %v427 = vpack.c.bf16 %v419, %v419
      %v428 = vpack.c.bf16 %v420, %v420
      %429 = vst.msk [vmem:[%s322] sm:$0xf] %vm396, %v421
      %430 = vst.msk [vmem:[%s322 + $0x4] sm:$0xf] %vm396, %v422
      %431 = vst.msk [vmem:[%s322 + $0x8] sm:$0xf] %vm396, %v423
      %432 = vst.msk [vmem:[%s322 + $0xc] sm:$0xf] %vm396, %v424
      %433 = vst.msk [vmem:[%s322 + $0x10] sm:$0xf] %vm396, %v425
      %434 = vst.msk [vmem:[%s322 + $0x14] sm:$0xf] %vm396, %v426
      %435 = vst.msk [vmem:[%s322 + $0x18] sm:$0xf] %vm396, %v427
      %436 = vst.msk [vmem:[%s322 + $0x1c] sm:$0xf] %vm396, %v428
      %s437 = smul.u32 8, %s22
      %p438 = scmp.lt.s32.totalorder %s21, 1
      %s439 = scalar_select %p438, %s21, 1
      %p440 = scmp.lt.s32.totalorder %s437, 7
      %s441 = scalar_select %p440, %s437, 7
      %s442 = smul.addr %s439, 8
      %s443 = sadd.s32 %s441, %s442
      %s444 = smul.addr %s443, 4
      %s445 = scalar_lea.vmem %s4, %s444
      %s446 = smul.u32 8, %s22
      %p447 = scmp.lt.s32.totalorder %s21, 1
      %s448 = scalar_select %p447, %s21, 1
      %p449 = scmp.lt.s32.totalorder %s446, 7
      %s450 = scalar_select %p449, %s446, 7
      %s451 = smul.addr %s448, 8
      %s452 = sadd.s32 %s450, %s451
      %s453 = smul.addr %s452, 4
      %s454 = scalar_lea.vmem %s5, %s453
      // Predicated region
      $region37: #{multi_scale_color_decoder_forward.6} parent=35 // pred_check
        %p455 = pneg %p147
      $region38: #{multi_scale_color_decoder_forward.6} parent=35 // pred_check_branch
        %457 = sbr.rel (%p455) target = $region40
      $region39: #{multi_scale_color_decoder_forward.6} parent=35 // pred_region
        %s458 = smul.u32 8, %s22
      $region40: #{multi_scale_color_decoder_forward.6} parent=35 // pred_fallthru
        _
      // Predicated region
      $region41: #{multi_scale_color_decoder_forward.6} parent=35 // pred_check
        %p459 = pneg %p175
      $region42: #{multi_scale_color_decoder_forward.6} parent=35 // pred_check_branch
        %461 = sbr.rel (%p459) target = $region44
      $region43: #{multi_scale_color_decoder_forward.6} parent=35 // pred_region
        %s462 = smul.u32 8, %s22
      $region44: #{multi_scale_color_decoder_forward.6} parent=35 // pred_fallthru
        _
    $region36: #{multi_scale_color_decoder_forward.6} parent=5 // pred_fallthru
      _
    %p463 = scmp.le.s32.totalorder 2, %s12
    // Predicated region
    $region45: #{multi_scale_color_decoder_forward.6} parent=5 // pred_check
      %p464 = pneg %p463
    $region46: #{multi_scale_color_decoder_forward.6} parent=5 // pred_check_branch
      %466 = sbr.rel (%p464) target = $region48
    $region47: #{multi_scale_color_decoder_forward.6} parent=5 // pred_region
      %s467 = ssub.s32 %s12, 2
      // Predicated region
      $region49: #{multi_scale_color_decoder_forward.6} parent=47 // pred_check
        %p468 = pneg %p153
      $region50: #{multi_scale_color_decoder_forward.6} parent=47 // pred_check_branch
        %470 = sbr.rel (%p468) target = $region52
      $region51: #{multi_scale_color_decoder_forward.6} parent=47 // pred_region
        %s471 = smul.u32 8, %s24
        %p472 = scmp.lt.s32.totalorder %s23, 1
        %s473 = scalar_select %p472, %s23, 1
        %p474 = scmp.lt.s32.totalorder %s471, 7
        %s475 = scalar_select %p474, %s471, 7
        %s476 = smul.addr %s473, 8
        %s477 = sadd.s32 %s475, %s476
        %s478 = smul.addr %s477, 4
        %s479 = scalar_lea.vmem %s4, %s478
      $region52: #{multi_scale_color_decoder_forward.6} parent=47 // pred_fallthru
        _
      // Predicated region
      $region53: #{multi_scale_color_decoder_forward.6} parent=47 // pred_check
        %p480 = pneg %p181
      $region54: #{multi_scale_color_decoder_forward.6} parent=47 // pred_check_branch
        %482 = sbr.rel (%p480) target = $region56
      $region55: #{multi_scale_color_decoder_forward.6} parent=47 // pred_region
        %s483 = smul.u32 8, %s24
        %p484 = scmp.lt.s32.totalorder %s23, 1
        %s485 = scalar_select %p484, %s23, 1
        %p486 = scmp.lt.s32.totalorder %s483, 7
        %s487 = scalar_select %p486, %s483, 7
        %s488 = smul.addr %s485, 8
        %s489 = sadd.s32 %s487, %s488
        %s490 = smul.addr %s489, 4
        %s491 = scalar_lea.vmem %s5, %s490
      $region56: #{multi_scale_color_decoder_forward.6} parent=47 // pred_fallthru
        _
    $region48: #{multi_scale_color_decoder_forward.6} parent=5 // pred_fallthru
      _
  $region6: #{multi_scale_color_decoder_forward.6} parent=0 // loop_footer
    %s16 = sadd.s32 1, %s12
  $region7: #{multi_scale_color_decoder_forward.6} parent=0 // loop_footer_branch
    %11 = sbr.rel target = $region3
  $region8: #{multi_scale_color_decoder_forward.6} parent=0 // loop_exit
    _

// kernel: multi_scale_color_decoder_forward.8
$region0: #{multi_scale_color_decoder_forward.8}
  #allocation0 [shape = 'u32[]', space=smem, size = 0x4, offset = 0x4, fixed_abs, tag = 'smem constant byte address 0x4 - core index']
  #allocation1 [shape = 'u32[72,128]{1,0:T(1,128)}', space=vmem, size = 0x9000, scoped, tag = 'internal scratch']
  %s0 = inlined_call_operand.vmem [shape: f32[2,16,8], index: 0, kind: input, shape index: {}]
  %s1 = inlined_call_operand.vmem [shape: bf16[8,32], index: 1, kind: input, shape index: {}]
  %s2 = inlined_call_operand.vmem [shape: f32[1,32], index: 2, kind: input, shape index: {}]
  %s3 = inlined_call_operand.vmem [shape: f32[2,16,32], index: 3, kind: input, shape index: {}]
  %s4 = inlined_call_operand.vmem [shape: bf16[2,16,32], index: 4, kind: output, shape index: {0}]
  %s5 = inlined_call_operand.vmem [shape: bf16[2,16,32], index: 5, kind: output, shape index: {1}]
  %6 = xla_tuple %s4, %s5
  %s7 = sld [smem:[#allocation0]]
  $region57: #{multi_scale_color_decoder_forward.8} parent=0
    _
  %s9 = ssub.s32 1, %s7
  %s10 = scalar_select 0, %s9, %s7
  loop: start=0, step=1, limit=4
  $region2: #{multi_scale_color_decoder_forward.8} parent=0 // loop_pre_header
    _
  $region3: #{multi_scale_color_decoder_forward.8} parent=0 // loop_header
    %s12 = sphi 0, %s16
    %p13 = scmp.ge.s32.totalorder %s12, 4
    %s19 = sphi 0, %s31
    %s20 = sphi 0, %s27
    %s21 = sphi 0, %s19
    %s22 = sphi 0, %s20
    %s23 = sphi 0, %s21
    %s24 = sphi 0, %s22
    %s36 = sphi 0, %s38
    %s39 = sphi 0, %s36
    %s40 = sphi 0, %s39
    %s56 = sphi 0, %s40
    %s60 = sphi 0, %s60
    %s62 = sphi 0, %s60
    %s63 = sphi 0, %s62
    %s77 = sphi 0, %s63
    %s81 = sphi 0, %s81
    %s83 = sphi 0, %s81
    %s84 = sphi 0, %s83
    %s98 = sphi 0, %s84
    %s106 = sphi 0, %s108
    %s109 = sphi 0, %s106
    %s110 = sphi 0, %s109
    %s126 = sphi 0, %s110
    %s134 = sphi 0, %s136
    %s137 = sphi 0, %s134
    %s138 = sphi 0, %s137
    %s154 = sphi 0, %s138
    %s162 = sphi 0, %s164
    %s165 = sphi 0, %s162
    %s166 = sphi 0, %s165
    %s182 = sphi 0, %s166
  $region4: #{multi_scale_color_decoder_forward.8} parent=0 // loop_header_branch
    %15 = sbr.rel (%p13) target = $region8
  $region5: #{multi_scale_color_decoder_forward.8} parent=0 // loop_body
    %s17 = ssub.s32 %s12, 1
    %s18 = ssub.s32 %s12, 2
    %s25 = sadd.s32 1, %s20
    %p26 = scmp.ge.s32.totalorder %s25, 1
    %s27 = scalar_select %p26, 0, %s25
    %s28 = sadd.s32 1, %s19
    %s29 = scalar_select %p26, %s28, %s19
    %p30 = scmp.ge.s32.totalorder %s29, 2
    %s31 = scalar_select %p30, 0, %s29
    %s32 = ssub.s32 %s19, %s31
    %s33 = ssub.s32 %s20, %s27
    %s34 = sor.u32 %s32, %s33
    %p35 = scmp.eq.s32.totalorder %s34, 0
    %s37 = sadd.s32 %s36, 1
    %s38 = scalar_select %p35, %s36, %s37
    %p41 = pneg %p35
    %p42 = scmp.eq.s32.totalorder %s12, 1
    %p43 = por %p41, %p42
    %p44 = scmp.ne.s32.totalorder %s36, %s39
    %p45 = scmp.eq.s32.totalorder %s12, 0
    %p46 = por %p44, %p45
    %p47 = scmp.ne.s32.totalorder %s36, %s39
    %p48 = scmp.eq.s32.totalorder %s17, 1
    %p49 = por %p47, %p48
    %p50 = scmp.ne.s32.totalorder %s39, %s40
    %p51 = scmp.eq.s32.totalorder %s17, 0
    %p52 = por %p50, %p51
    %p53 = scmp.ne.s32.totalorder %s39, %s40
    %p54 = scmp.eq.s32.totalorder %s18, 1
    %p55 = por %p53, %p54
    %p57 = scmp.ne.s32.totalorder %s40, %s56
    %p58 = scmp.eq.s32.totalorder %s18, 0
    %p59 = por %p57, %p58
    %s61 = sadd.s32 %s60, 1
    %p64 = scmp.eq.s32.totalorder %s12, 1
    %p65 = scmp.ne.s32.totalorder %s60, %s62
    %p66 = scmp.eq.s32.totalorder %s12, 0
    %p67 = por %p65, %p66
    %p68 = scmp.ne.s32.totalorder %s60, %s62
    %p69 = scmp.eq.s32.totalorder %s17, 1
    %p70 = por %p68, %p69
    %p71 = scmp.ne.s32.totalorder %s62, %s63
    %p72 = scmp.eq.s32.totalorder %s17, 0
    %p73 = por %p71, %p72
    %p74 = scmp.ne.s32.totalorder %s62, %s63
    %p75 = scmp.eq.s32.totalorder %s18, 1
    %p76 = por %p74, %p75
    %p78 = scmp.ne.s32.totalorder %s63, %s77
    %p79 = scmp.eq.s32.totalorder %s18, 0
    %p80 = por %p78, %p79
    %s82 = sadd.s32 %s81, 1
    %p85 = scmp.eq.s32.totalorder %s12, 1
    %p86 = scmp.ne.s32.totalorder %s81, %s83
    %p87 = scmp.eq.s32.totalorder %s12, 0
    %p88 = por %p86, %p87
    %p89 = scmp.ne.s32.totalorder %s81, %s83
    %p90 = scmp.eq.s32.totalorder %s17, 1
    %p91 = por %p89, %p90
    %p92 = scmp.ne.s32.totalorder %s83, %s84
    %p93 = scmp.eq.s32.totalorder %s17, 0
    %p94 = por %p92, %p93
    %p95 = scmp.ne.s32.totalorder %s83, %s84
    %p96 = scmp.eq.s32.totalorder %s18, 1
    %p97 = por %p95, %p96
    %p99 = scmp.ne.s32.totalorder %s84, %s98
    %p100 = scmp.eq.s32.totalorder %s18, 0
    %p101 = por %p99, %p100
    %s102 = ssub.s32 %s19, %s31
    %s103 = ssub.s32 %s20, %s27
    %s104 = sor.u32 %s102, %s103
    %p105 = scmp.eq.s32.totalorder %s104, 0
    %s107 = sadd.s32 %s106, 1
    %s108 = scalar_select %p105, %s106, %s107
    %p111 = pneg %p105
    %p112 = scmp.eq.s32.totalorder %s12, 1
    %p113 = por %p111, %p112
    %p114 = scmp.ne.s32.totalorder %s106, %s109
    %p115 = scmp.eq.s32.totalorder %s12, 0
    %p116 = por %p114, %p115
    %p117 = scmp.ne.s32.totalorder %s106, %s109
    %p118 = scmp.eq.s32.totalorder %s17, 1
    %p119 = por %p117, %p118
    %p120 = scmp.ne.s32.totalorder %s109, %s110
    %p121 = scmp.eq.s32.totalorder %s17, 0
    %p122 = por %p120, %p121
    %p123 = scmp.ne.s32.totalorder %s109, %s110
    %p124 = scmp.eq.s32.totalorder %s18, 1
    %p125 = por %p123, %p124
    %p127 = scmp.ne.s32.totalorder %s110, %s126
    %p128 = scmp.eq.s32.totalorder %s18, 0
    %p129 = por %p127, %p128
    %s130 = ssub.s32 %s19, %s31
    %s131 = ssub.s32 %s20, %s27
    %s132 = sor.u32 %s130, %s131
    %p133 = scmp.eq.s32.totalorder %s132, 0
    %s135 = sadd.s32 %s134, 1
    %s136 = scalar_select %p133, %s134, %s135
    %p139 = pneg %p133
    %p140 = scmp.eq.s32.totalorder %s12, 1
    %p141 = por %p139, %p140
    %p142 = scmp.ne.s32.totalorder %s134, %s137
    %p143 = scmp.eq.s32.totalorder %s12, 0
    %p144 = por %p142, %p143
    %p145 = scmp.ne.s32.totalorder %s134, %s137
    %p146 = scmp.eq.s32.totalorder %s17, 1
    %p147 = por %p145, %p146
    %p148 = scmp.ne.s32.totalorder %s137, %s138
    %p149 = scmp.eq.s32.totalorder %s17, 0
    %p150 = por %p148, %p149
    %p151 = scmp.ne.s32.totalorder %s137, %s138
    %p152 = scmp.eq.s32.totalorder %s18, 1
    %p153 = por %p151, %p152
    %p155 = scmp.ne.s32.totalorder %s138, %s154
    %p156 = scmp.eq.s32.totalorder %s18, 0
    %p157 = por %p155, %p156
    %s158 = ssub.s32 %s19, %s31
    %s159 = ssub.s32 %s20, %s27
    %s160 = sor.u32 %s158, %s159
    %p161 = scmp.eq.s32.totalorder %s160, 0
    %s163 = sadd.s32 %s162, 1
    %s164 = scalar_select %p161, %s162, %s163
    %p167 = pneg %p161
    %p168 = scmp.eq.s32.totalorder %s12, 1
    %p169 = por %p167, %p168
    %p170 = scmp.ne.s32.totalorder %s162, %s165
    %p171 = scmp.eq.s32.totalorder %s12, 0
    %p172 = por %p170, %p171
    %p173 = scmp.ne.s32.totalorder %s162, %s165
    %p174 = scmp.eq.s32.totalorder %s17, 1
    %p175 = por %p173, %p174
    %p176 = scmp.ne.s32.totalorder %s165, %s166
    %p177 = scmp.eq.s32.totalorder %s17, 0
    %p178 = por %p176, %p177
    %p179 = scmp.ne.s32.totalorder %s165, %s166
    %p180 = scmp.eq.s32.totalorder %s18, 1
    %p181 = por %p179, %p180
    %p183 = scmp.ne.s32.totalorder %s166, %s182
    %p184 = scmp.eq.s32.totalorder %s18, 0
    %p185 = por %p183, %p184
    %p186 = scmp.le.s32.totalorder 1, %s12
    %p187 = scmp.lt.s32.totalorder %s12, 3
    %p188 = pnand %p186, %p187
    %p189 = pneg %p188
    // Predicated region
    $region9: #{multi_scale_color_decoder_forward.8} parent=5 // pred_check
      _
    $region10: #{multi_scale_color_decoder_forward.8} parent=5 // pred_check_branch
      %191 = sbr.rel (%p188) target = $region12
    $region11: #{multi_scale_color_decoder_forward.8} parent=5 // pred_region
      %s192 = ssub.s32 %s12, 1
      // Predicated region
      $region13: #{multi_scale_color_decoder_forward.8} parent=11 // pred_check
        %p193 = pneg %p73
      $region14: #{multi_scale_color_decoder_forward.8} parent=11 // pred_check_branch
        %195 = sbr.rel (%p193) target = $region16
      $region15: #{multi_scale_color_decoder_forward.8} parent=11 // pred_region
        _
      $region16: #{multi_scale_color_decoder_forward.8} parent=11 // pred_fallthru
        _
      // Predicated region
      $region17: #{multi_scale_color_decoder_forward.8} parent=11 // pred_check
        %p196 = pneg %p94
      $region18: #{multi_scale_color_decoder_forward.8} parent=11 // pred_check_branch
        %198 = sbr.rel (%p196) target = $region20
      $region19: #{multi_scale_color_decoder_forward.8} parent=11 // pred_region
        _
      $region20: #{multi_scale_color_decoder_forward.8} parent=11 // pred_fallthru
        _
    $region12: #{multi_scale_color_decoder_forward.8} parent=5 // pred_fallthru
      _
    %p199 = scmp.lt.s32.totalorder %s12, 2
    // Predicated region
    $region21: #{multi_scale_color_decoder_forward.8} parent=5 // pred_check
      %p200 = pneg %p199
    $region22: #{multi_scale_color_decoder_forward.8} parent=5 // pred_check_branch
      %202 = sbr.rel (%p200) target = $region24
    $region23: #{multi_scale_color_decoder_forward.8} parent=5 // pred_region
      // Predicated region
      $region25: #{multi_scale_color_decoder_forward.8} parent=23 // pred_check
        %p203 = pneg %p46
      $region26: #{multi_scale_color_decoder_forward.8} parent=23 // pred_check_branch
        %205 = sbr.rel (%p203) target = $region28
      $region27: #{multi_scale_color_decoder_forward.8} parent=23 // pred_region
        %s206 = smul.u32 2, %s20
        %p207 = scmp.lt.s32.totalorder %s19, 1
        %s208 = scalar_select %p207, %s19, 1
        %p209 = scmp.lt.s32.totalorder %s206, 1
        %s210 = scalar_select %p209, %s206, 1
        %s211 = smul.addr %s208, 2
        %s212 = sadd.s32 %s210, %s211
        %s213 = smul.addr %s212, 8
        %s214 = scalar_lea.vmem %s0, %s213
        %s215 = smul.u32 2, %s20
      $region28: #{multi_scale_color_decoder_forward.8} parent=23 // pred_fallthru
        _
      // Predicated region
      $region29: #{multi_scale_color_decoder_forward.8} parent=23 // pred_check
        %p216 = pneg %p116
      $region30: #{multi_scale_color_decoder_forward.8} parent=23 // pred_check_branch
        %218 = sbr.rel (%p216) target = $region32
      $region31: #{multi_scale_color_decoder_forward.8} parent=23 // pred_region
        %s219 = smul.u32 2, %s20
        %p220 = scmp.lt.s32.totalorder %s19, 1
        %s221 = scalar_select %p220, %s19, 1
        %p222 = scmp.lt.s32.totalorder %s219, 1
        %s223 = scalar_select %p222, %s219, 1
        %s224 = smul.addr %s221, 2
        %s225 = sadd.s32 %s223, %s224
        %s226 = smul.addr %s225, 8
        %s227 = scalar_lea.vmem %s3, %s226
        %s228 = smul.u32 2, %s20
      $region32: #{multi_scale_color_decoder_forward.8} parent=23 // pred_fallthru
        _
    $region24: #{multi_scale_color_decoder_forward.8} parent=5 // pred_fallthru
      _
    %p229 = scmp.le.s32.totalorder 1, %s12
    %p230 = scmp.lt.s32.totalorder %s12, 3
    %p231 = pnand %p229, %p230
    %p232 = pneg %p231
    // Predicated region
    $region33: #{multi_scale_color_decoder_forward.8} parent=5 // pred_check
      _
    $region34: #{multi_scale_color_decoder_forward.8} parent=5 // pred_check_branch
      %234 = sbr.rel (%p231) target = $region36
    $region35: #{multi_scale_color_decoder_forward.8} parent=5 // pred_region
      %s235 = ssub.s32 %s12, 1
      %s236 = smul.u32 2, %s22
      %p237 = scmp.lt.s32.totalorder %s21, 1
      %s238 = scalar_select %p237, %s21, 1
      %p239 = scmp.lt.s32.totalorder %s236, 1
      %s240 = scalar_select %p239, %s236, 1
      %s241 = smul.addr %s238, 2
      %s242 = sadd.s32 %s240, %s241
      %s243 = smul.addr %s242, 8
      %s244 = scalar_lea.vmem %s0, %s243
      %p245 = pneg %p52
      %p246 = pneg %p49
      %p247 = pneg %p73
      %p248 = pneg %p70
      %p249 = pneg %p94
      %p250 = pneg %p91
      %s251 = smul.u32 2, %s22
      %p252 = scmp.lt.s32.totalorder %s21, 1
      %s253 = scalar_select %p252, %s21, 1
      %p254 = scmp.lt.s32.totalorder %s251, 1
      %s255 = scalar_select %p254, %s251, 1
      %s256 = smul.addr %s253, 2
      %s257 = sadd.s32 %s255, %s256
      %s258 = smul.addr %s257, 8
      %s259 = scalar_lea.vmem %s3, %s258
      %p260 = pneg %p122
      %p261 = pneg %p119
      %p262 = pneg %p150
      %p263 = pneg %p147
      %s264 = smul.u32 2, %s22
      %p265 = scmp.lt.s32.totalorder %s21, 1
      %s266 = scalar_select %p265, %s21, 1
      %p267 = scmp.lt.s32.totalorder %s264, 1
      %s268 = scalar_select %p267, %s264, 1
      %s269 = smul.addr %s266, 2
      %s270 = sadd.s32 %s268, %s269
      %s271 = smul.addr %s270, 4
      %s272 = scalar_lea.vmem %s4, %s271
      %p273 = pneg %p178
      %p274 = pneg %p175
      %s275 = smul.u32 2, %s22
      %p276 = scmp.lt.s32.totalorder %s21, 1
      %s277 = scalar_select %p276, %s21, 1
      %p278 = scmp.lt.s32.totalorder %s275, 1
      %s279 = scalar_select %p278, %s275, 1
      %s280 = smul.addr %s277, 2
      %s281 = sadd.s32 %s279, %s280
      %s282 = smul.addr %s281, 4
      %s283 = scalar_lea.vmem %s5, %s282
      %s284 = smul.u32 2, %s22
      %p285 = scmp.lt.s32.totalorder %s21, 1
      %s286 = scalar_select %p285, %s21, 1
      %p287 = scmp.lt.s32.totalorder %s284, 1
      %s288 = scalar_select %p287, %s284, 1
      %s289 = smul.addr %s286, 2
      %s290 = sadd.s32 %s288, %s289
      %s291 = smul.addr %s290, 8
      %s292 = scalar_lea.vmem %s0, %s291
      %s293 = smul.u32 2, %s22
      %s294 = smul.u32 2, %s22
      %p295 = scmp.lt.s32.totalorder %s21, 1
      %s296 = scalar_select %p295, %s21, 1
      %p297 = scmp.lt.s32.totalorder %s294, 1
      %s298 = scalar_select %p297, %s294, 1
      %s299 = smul.addr %s296, 2
      %s300 = sadd.s32 %s298, %s299
      %s301 = smul.addr %s300, 8
      %s302 = scalar_lea.vmem %s3, %s301
      %s303 = smul.u32 2, %s22
      %s304 = smul.u32 2, %s22
      %p305 = scmp.lt.s32.totalorder %s21, 1
      %s306 = scalar_select %p305, %s21, 1
      %p307 = scmp.lt.s32.totalorder %s304, 1
      %s308 = scalar_select %p307, %s304, 1
      %s309 = smul.addr %s306, 2
      %s310 = sadd.s32 %s308, %s309
      %s311 = smul.addr %s310, 4
      %s312 = scalar_lea.vmem %s4, %s311
      %s313 = smul.u32 2, %s22
      %s314 = smul.u32 2, %s22
      %p315 = scmp.lt.s32.totalorder %s21, 1
      %s316 = scalar_select %p315, %s21, 1
      %p317 = scmp.lt.s32.totalorder %s314, 1
      %s318 = scalar_select %p317, %s314, 1
      %s319 = smul.addr %s316, 2
      %s320 = sadd.s32 %s318, %s319
      %s321 = smul.addr %s320, 4
      %s322 = scalar_lea.vmem %s5, %s321
      %s323 = smul.u32 2, %s22
      %v325 = vld [vmem:[%s292] sm:$0xff]
      %v326 = vld [vmem:[%s292 + $0x8] sm:$0xff]
      %v327 = vpack.c.bf16 %v326, %v325
      %v328 = vld [vmem:[%s1] sm:$0xf]
      %v329 = vld [vmem:[%s2] sm:$0x1]
      %v331 = vperm.slane %v329, 0
      %vm333 = vcmask 64512
      %v335 = vsel %vm333, %v327, 0
      %vm337 = vcmask 1043456
      %v339 = vsel %vm337, %v328, 0
      %341 = vmatpush.bf16.msra.mxu0 0
      %342 = vmatpush.bf16.msra.mxu0 0
      %343 = vmatpush.bf16.msra.mxu0 0
      %344 = vmatpush.bf16.msra.mxu0 0
      %345 = vmatpush.bf16.msra.mxu0 0
      %346 = vmatpush.bf16.msra.mxu0 0
      %347 = vmatpush.bf16.msra.mxu0 0
      %348 = vmatpush.bf16.msra.mxu0 %v339
      %349 = vmatmul.bf16.gmra.mxu0 %v335
      %v350 = vpop.f32.mrf.mxu0
      %v351 = vadd.f32 %v331, %v350
      %v352 = vpop.f32.mrf.mxu0
      %v353 = vadd.f32 %v331, %v352
      %354 = vdwg.mxu0
      %v355 = vpack.c.bf16 %v351, %v351
      %v356 = vpack.c.bf16 %v353, %v353
      %vm357 = vcmask 257024
      %358 = vst.msk [vmem:[%s312] sm:$0xf] %vm357, %v355
      %359 = vst.msk [vmem:[%s312 + $0x4] sm:$0xf] %vm357, %v356
      %v360 = vld [vmem:[%s302] sm:$0xff]
      %v361 = vld [vmem:[%s302 + $0x8] sm:$0xff]
      %v362 = vadd.f32 %v351, %v360
      %v363 = vadd.f32 %v353, %v361
      %v364 = vpack.c.bf16 %v362, %v362
      %v365 = vpack.c.bf16 %v363, %v363
      %366 = vst.msk [vmem:[%s322] sm:$0xf] %vm357, %v364
      %367 = vst.msk [vmem:[%s322 + $0x4] sm:$0xf] %vm357, %v365
      %s368 = smul.u32 2, %s22
      %p369 = scmp.lt.s32.totalorder %s21, 1
      %s370 = scalar_select %p369, %s21, 1
      %p371 = scmp.lt.s32.totalorder %s368, 1
      %s372 = scalar_select %p371, %s368, 1
      %s373 = smul.addr %s370, 2
      %s374 = sadd.s32 %s372, %s373
      %s375 = smul.addr %s374, 4
      %s376 = scalar_lea.vmem %s4, %s375
      %s377 = smul.u32 2, %s22
      %p378 = scmp.lt.s32.totalorder %s21, 1
      %s379 = scalar_select %p378, %s21, 1
      %p380 = scmp.lt.s32.totalorder %s377, 1
      %s381 = scalar_select %p380, %s377, 1
      %s382 = smul.addr %s379, 2
      %s383 = sadd.s32 %s381, %s382
      %s384 = smul.addr %s383, 4
      %s385 = scalar_lea.vmem %s5, %s384
      // Predicated region
      $region37: #{multi_scale_color_decoder_forward.8} parent=35 // pred_check
        %p386 = pneg %p147
      $region38: #{multi_scale_color_decoder_forward.8} parent=35 // pred_check_branch
        %388 = sbr.rel (%p386) target = $region40
      $region39: #{multi_scale_color_decoder_forward.8} parent=35 // pred_region
        %s389 = smul.u32 2, %s22
      $region40: #{multi_scale_color_decoder_forward.8} parent=35 // pred_fallthru
        _
      // Predicated region
      $region41: #{multi_scale_color_decoder_forward.8} parent=35 // pred_check
        %p390 = pneg %p175
      $region42: #{multi_scale_color_decoder_forward.8} parent=35 // pred_check_branch
        %392 = sbr.rel (%p390) target = $region44
      $region43: #{multi_scale_color_decoder_forward.8} parent=35 // pred_region
        %s393 = smul.u32 2, %s22
      $region44: #{multi_scale_color_decoder_forward.8} parent=35 // pred_fallthru
        _
    $region36: #{multi_scale_color_decoder_forward.8} parent=5 // pred_fallthru
      _
    %p394 = scmp.le.s32.totalorder 2, %s12
    // Predicated region
    $region45: #{multi_scale_color_decoder_forward.8} parent=5 // pred_check
      %p395 = pneg %p394
    $region46: #{multi_scale_color_decoder_forward.8} parent=5 // pred_check_branch
      %397 = sbr.rel (%p395) target = $region48
    $region47: #{multi_scale_color_decoder_forward.8} parent=5 // pred_region
      %s398 = ssub.s32 %s12, 2
      // Predicated region
      $region49: #{multi_scale_color_decoder_forward.8} parent=47 // pred_check
        %p399 = pneg %p153
      $region50: #{multi_scale_color_decoder_forward.8} parent=47 // pred_check_branch
        %401 = sbr.rel (%p399) target = $region52
      $region51: #{multi_scale_color_decoder_forward.8} parent=47 // pred_region
        %s402 = smul.u32 2, %s24
        %p403 = scmp.lt.s32.totalorder %s23, 1
        %s404 = scalar_select %p403, %s23, 1
        %p405 = scmp.lt.s32.totalorder %s402, 1
        %s406 = scalar_select %p405, %s402, 1
        %s407 = smul.addr %s404, 2
        %s408 = sadd.s32 %s406, %s407
        %s409 = smul.addr %s408, 4
        %s410 = scalar_lea.vmem %s4, %s409
      $region52: #{multi_scale_color_decoder_forward.8} parent=47 // pred_fallthru
        _
      // Predicated region
      $region53: #{multi_scale_color_decoder_forward.8} parent=47 // pred_check
        %p411 = pneg %p181
      $region54: #{multi_scale_color_decoder_forward.8} parent=47 // pred_check_branch
        %413 = sbr.rel (%p411) target = $region56
      $region55: #{multi_scale_color_decoder_forward.8} parent=47 // pred_region
        %s414 = smul.u32 2, %s24
        %p415 = scmp.lt.s32.totalorder %s23, 1
        %s416 = scalar_select %p415, %s23, 1
        %p417 = scmp.lt.s32.totalorder %s414, 1
        %s418 = scalar_select %p417, %s414, 1
        %s419 = smul.addr %s416, 2
        %s420 = sadd.s32 %s418, %s419
        %s421 = smul.addr %s420, 4
        %s422 = scalar_lea.vmem %s5, %s421
      $region56: #{multi_scale_color_decoder_forward.8} parent=47 // pred_fallthru
        _
    $region48: #{multi_scale_color_decoder_forward.8} parent=5 // pred_fallthru
      _
  $region6: #{multi_scale_color_decoder_forward.8} parent=0 // loop_footer
    %s16 = sadd.s32 1, %s12
  $region7: #{multi_scale_color_decoder_forward.8} parent=0 // loop_footer_branch
    %11 = sbr.rel target = $region3
  $region8: #{multi_scale_color_decoder_forward.8} parent=0 // loop_exit
    _

// kernel: multi_scale_color_decoder_forward.10
$region0: #{multi_scale_color_decoder_forward.10}
  #allocation0 [shape = 'u32[]', space=smem, size = 0x4, offset = 0x4, fixed_abs, tag = 'smem constant byte address 0x4 - core index']
  #allocation1 [shape = 'u32[72,128]{1,0:T(1,128)}', space=vmem, size = 0x9000, scoped, tag = 'internal scratch']
  %s0 = inlined_call_operand.vmem [shape: f32[16,32], index: 0, kind: input, shape index: {}]
  %s1 = inlined_call_operand.vmem [shape: f32[2,32], index: 1, kind: input, shape index: {}]
  %s2 = inlined_call_operand.vmem [shape: bf16[32,32], index: 2, kind: input, shape index: {}]
  %s3 = inlined_call_operand.vmem [shape: f32[1,32], index: 3, kind: input, shape index: {}]
  %s4 = inlined_call_operand.vmem [shape: bf16[32,32], index: 4, kind: input, shape index: {}]
  %s5 = inlined_call_operand.vmem [shape: f32[1,32], index: 5, kind: input, shape index: {}]
  %s6 = inlined_call_operand.vmem [shape: bf16[32,32], index: 6, kind: input, shape index: {}]
  %s7 = inlined_call_operand.vmem [shape: f32[1,32], index: 7, kind: input, shape index: {}]
  %s8 = inlined_call_operand.vmem [shape: f32[16,32], index: 8, kind: output, shape index: {}]
  %s9 = sld [smem:[#allocation0]]
  $region42: #{multi_scale_color_decoder_forward.10} parent=0
    _
  %s11 = ssub.s32 1, %s9
  %s12 = scalar_select 0, %s11, %s9
  // Predicated region
  $region2: #{multi_scale_color_decoder_forward.10} parent=0 // pred_check
    _
  $region3: #{multi_scale_color_decoder_forward.10} parent=0 // pred_check_branch
    %14 = sbr.rel (0) target = $region5
  $region4: #{multi_scale_color_decoder_forward.10} parent=0 // pred_region
    _
  $region5: #{multi_scale_color_decoder_forward.10} parent=0 // pred_fallthru
    _
  // Predicated region
  $region6: #{multi_scale_color_decoder_forward.10} parent=0 // pred_check
    _
  $region7: #{multi_scale_color_decoder_forward.10} parent=0 // pred_check_branch
    %16 = sbr.rel (0) target = $region9
  $region8: #{multi_scale_color_decoder_forward.10} parent=0 // pred_region
    _
  $region9: #{multi_scale_color_decoder_forward.10} parent=0 // pred_fallthru
    _
  // Predicated region
  $region10: #{multi_scale_color_decoder_forward.10} parent=0 // pred_check
    _
  $region11: #{multi_scale_color_decoder_forward.10} parent=0 // pred_check_branch
    %18 = sbr.rel (0) target = $region13
  $region12: #{multi_scale_color_decoder_forward.10} parent=0 // pred_region
    _
  $region13: #{multi_scale_color_decoder_forward.10} parent=0 // pred_fallthru
    _
  // Predicated region
  $region14: #{multi_scale_color_decoder_forward.10} parent=0 // pred_check
    _
  $region15: #{multi_scale_color_decoder_forward.10} parent=0 // pred_check_branch
    %20 = sbr.rel (0) target = $region17
  $region16: #{multi_scale_color_decoder_forward.10} parent=0 // pred_region
    _
  $region17: #{multi_scale_color_decoder_forward.10} parent=0 // pred_fallthru
    _
  // Predicated region
  $region18: #{multi_scale_color_decoder_forward.10} parent=0 // pred_check
    _
  $region19: #{multi_scale_color_decoder_forward.10} parent=0 // pred_check_branch
    %22 = sbr.rel (0) target = $region21
  $region20: #{multi_scale_color_decoder_forward.10} parent=0 // pred_region
    _
  $region21: #{multi_scale_color_decoder_forward.10} parent=0 // pred_fallthru
    _
  // Predicated region
  $region22: #{multi_scale_color_decoder_forward.10} parent=0 // pred_check
    _
  $region23: #{multi_scale_color_decoder_forward.10} parent=0 // pred_check_branch
    %24 = sbr.rel (0) target = $region25
  $region24: #{multi_scale_color_decoder_forward.10} parent=0 // pred_region
    _
  $region25: #{multi_scale_color_decoder_forward.10} parent=0 // pred_fallthru
    _
  // Predicated region
  $region26: #{multi_scale_color_decoder_forward.10} parent=0 // pred_check
    _
  $region27: #{multi_scale_color_decoder_forward.10} parent=0 // pred_check_branch
    %26 = sbr.rel (0) target = $region29
  $region28: #{multi_scale_color_decoder_forward.10} parent=0 // pred_region
    _
  $region29: #{multi_scale_color_decoder_forward.10} parent=0 // pred_fallthru
    _
  // Predicated region
  $region30: #{multi_scale_color_decoder_forward.10} parent=0 // pred_check
    _
  $region31: #{multi_scale_color_decoder_forward.10} parent=0 // pred_check_branch
    %28 = sbr.rel (0) target = $region33
  $region32: #{multi_scale_color_decoder_forward.10} parent=0 // pred_region
    _
  $region33: #{multi_scale_color_decoder_forward.10} parent=0 // pred_fallthru
    _
  %v30 = vld [vmem:[%s0] sm:$0xff]
  %v31 = vld [vmem:[%s0 + $0x8] sm:$0xff]
  %vm32 = vcmask 261120
  %v33 = vsel %vm32, %v30, 0.0
  %34 = vadd.xlane.f32.xlu0 %v33
  %v35 = vpop.xlane.xlu0 %34
  %v36 = vsel %vm32, %v31, 0.0
  %37 = vadd.xlane.f32.xlu0 %v36
  %v38 = vpop.xlane.xlu0 %37
  %v39 = vrcp.pop 32.0
  %v40 = vmul.f32 32.0, %v39
  %v41 = vsub.f32 1.0, %v40
  %v42 = vmul.f32 %v39, %v41
  %v43 = vadd.f32 %v39, %v42
  %vm44 = vweird.f32 %v39
  %v45 = vsel %vm44, %v39, %v43
  %v46 = vmul.f32 %v35, %v45
  %v47 = vmul.f32 %v38, %v45
  %v48 = vsub.f32 %v30, %v46
  %v49 = vsub.f32 %v31, %v47
  %v50 = vmul.f32 %v48, %v48
  %v51 = vmul.f32 %v49, %v49
  %v52 = vsel %vm32, %v50, 0.0
  %53 = vadd.xlane.f32.xlu0 %v52
  %v54 = vpop.xlane.xlu0 %53
  %v55 = vsel %vm32, %v51, 0.0
  %56 = vadd.xlane.f32.xlu0 %v55
  %v57 = vpop.xlane.xlu0 %56
  %v58 = vmul.f32 %v54, %v45
  %v59 = vmul.f32 %v57, %v45
  %v60 = vadd.f32 %v58, 1e-05
  %v61 = vadd.f32 %v59, 1e-05
  %v62 = vrsqrt.pop %v60
  %v63 = vmul.f32 %v62, %v60
  %v64 = vmul.f32 %v63, %v62
  %v65 = vmul.f32 0.5, %v64
  %v66 = vsub.f32 1.5, %v65
  %v67 = vmul.f32 %v62, %v66
  %vm68 = vweird.f32 %v60
  %vm69 = vweird.f32 %v62
  %vm70 = vmor %vm68, %vm69
  %v71 = vsel %vm70, %v62, %v67
  %v72 = vrsqrt.pop %v61
  %v73 = vmul.f32 %v72, %v61
  %v74 = vmul.f32 %v73, %v72
  %v75 = vmul.f32 0.5, %v74
  %v76 = vsub.f32 1.5, %v75
  %v77 = vmul.f32 %v72, %v76
  %vm78 = vweird.f32 %v61
  %vm79 = vweird.f32 %v72
  %vm80 = vmor %vm78, %vm79
  %v81 = vsel %vm80, %v72, %v77
  %v82 = vmul.f32 %v48, %v71
  %v83 = vmul.f32 %v49, %v81
  %v84 = vld [vmem:[%s1] sm:$0x1]
  %v85 = vperm.slane %v84, 0
  %v86 = vmul.f32 %v82, %v85
  %v87 = vmul.f32 %v83, %v85
  %v88 = vld [vmem:[%s1 + $0x1] sm:$0x1]
  %v89 = vperm.slane %v88, 0
  %v90 = vadd.f32 %v86, %v89
  %v91 = vadd.f32 %v87, %v89
  %v92 = vpack.c.bf16 %v91, %v90
  %v93 = vld [vmem:[%s2] sm:$0xf]
  %v94 = vld [vmem:[%s2 + $0x4] sm:$0xf]
  %v95 = vld [vmem:[%s2 + $0x8] sm:$0xf]
  %v96 = vld [vmem:[%s2 + $0xc] sm:$0xf]
  %v97 = vld [vmem:[%s3] sm:$0x1]
  %v99 = vperm.slane %v97, 0
  %v105 = vunpack.c.l.b16 %v93
  %v106 = vunpack.c.l.b16 %v94
  %v107 = vunpack.c.l.b16 %v95
  %v108 = vunpack.c.l.b16 %v96
  %v109 = vpack.c.b16 %v106, %v105
  %v110 = vpack.c.b16 %v108, %v107
  %v114 = vsel %vm32, %v92, 0
  %116 = vmatpush.bf16.msra.mxu0 0
  %117 = vmatpush.bf16.msra.mxu0 0
  %118 = vmatpush.bf16.msra.mxu0 0
  %119 = vmatpush.bf16.msra.mxu0 0
  %120 = vmatpush.bf16.msra.mxu0 0
  %121 = vmatpush.bf16.msra.mxu0 0
  %122 = vmatpush.bf16.msra.mxu0 %v110
  %123 = vmatpush.bf16.msra.mxu0 %v109
  %124 = vmatmul.bf16.gmra.mxu0 %v114
  %v125 = vpop.f32.mrf.mxu0
  %v126 = vadd.f32 %v99, %v125
  %v127 = vpop.f32.mrf.mxu0
  %v128 = vadd.f32 %v99, %v127
  %129 = vdwg.mxu0
  %v130 = vmax.f32 %v126, 0.0
  %v131 = vmax.f32 %v128, 0.0
  %v132 = vpack.c.bf16 %v131, %v130
  %v133 = vld [vmem:[%s4] sm:$0xf]
  %v134 = vld [vmem:[%s4 + $0x4] sm:$0xf]
  %v135 = vld [vmem:[%s4 + $0x8] sm:$0xf]
  %v136 = vld [vmem:[%s4 + $0xc] sm:$0xf]
  %v137 = vld [vmem:[%s5] sm:$0x1]
  %v139 = vperm.slane %v137, 0
  %v145 = vunpack.c.l.b16 %v133
  %v146 = vunpack.c.l.b16 %v134
  %v147 = vunpack.c.l.b16 %v135
  %v148 = vunpack.c.l.b16 %v136
  %v149 = vpack.c.b16 %v146, %v145
  %v150 = vpack.c.b16 %v148, %v147
  %v154 = vsel %vm32, %v132, 0
  %156 = vmatpush.bf16.msra.mxu0 0
  %157 = vmatpush.bf16.msra.mxu0 0
  %158 = vmatpush.bf16.msra.mxu0 0
  %159 = vmatpush.bf16.msra.mxu0 0
  %160 = vmatpush.bf16.msra.mxu0 0
  %161 = vmatpush.bf16.msra.mxu0 0
  %162 = vmatpush.bf16.msra.mxu0 %v150
  %163 = vmatpush.bf16.msra.mxu0 %v149
  %164 = vmatmul.bf16.gmra.mxu0 %v154
  %v165 = vpop.f32.mrf.mxu0
  %v166 = vadd.f32 %v139, %v165
  %v167 = vpop.f32.mrf.mxu0
  %v168 = vadd.f32 %v139, %v167
  %169 = vdwg.mxu0
  %v170 = vmax.f32 %v166, 0.0
  %v171 = vmax.f32 %v168, 0.0
  %v172 = vpack.c.bf16 %v171, %v170
  %v173 = vld [vmem:[%s6] sm:$0xf]
  %v174 = vld [vmem:[%s6 + $0x4] sm:$0xf]
  %v175 = vld [vmem:[%s6 + $0x8] sm:$0xf]
  %v176 = vld [vmem:[%s6 + $0xc] sm:$0xf]
  %v177 = vld [vmem:[%s7] sm:$0x1]
  %v179 = vperm.slane %v177, 0
  %v185 = vunpack.c.l.b16 %v173
  %v186 = vunpack.c.l.b16 %v174
  %v187 = vunpack.c.l.b16 %v175
  %v188 = vunpack.c.l.b16 %v176
  %v189 = vpack.c.b16 %v186, %v185
  %v190 = vpack.c.b16 %v188, %v187
  %v194 = vsel %vm32, %v172, 0
  %196 = vmatpush.bf16.msra.mxu0 0
  %197 = vmatpush.bf16.msra.mxu0 0
  %198 = vmatpush.bf16.msra.mxu0 0
  %199 = vmatpush.bf16.msra.mxu0 0
  %200 = vmatpush.bf16.msra.mxu0 0
  %201 = vmatpush.bf16.msra.mxu0 0
  %202 = vmatpush.bf16.msra.mxu0 %v190
  %203 = vmatpush.bf16.msra.mxu0 %v189
  %204 = vmatmul.bf16.gmra.mxu0 %v194
  %v205 = vpop.f32.mrf.mxu0
  %v206 = vadd.f32 %v179, %v205
  %v207 = vpop.f32.mrf.mxu0
  %v208 = vadd.f32 %v179, %v207
  %209 = vdwg.mxu0
  %210 = vst.msk [vmem:[%s8] sm:$0xff] %vm32, %v206
  %211 = vst.msk [vmem:[%s8 + $0x8] sm:$0xff] %vm32, %v208
  // Predicated region
  $region34: #{multi_scale_color_decoder_forward.10} parent=0 // pred_check
    _
  $region35: #{multi_scale_color_decoder_forward.10} parent=0 // pred_check_branch
    %213 = sbr.rel (0) target = $region37
  $region36: #{multi_scale_color_decoder_forward.10} parent=0 // pred_region
    _
  $region37: #{multi_scale_color_decoder_forward.10} parent=0 // pred_fallthru
    _
  // Predicated region
  $region38: #{multi_scale_color_decoder_forward.10} parent=0 // pred_check
    _
  $region39: #{multi_scale_color_decoder_forward.10} parent=0 // pred_check_branch
    %215 = sbr.rel (0) target = $region41
  $region40: #{multi_scale_color_decoder_forward.10} parent=0 // pred_region
    _
  $region41: #{multi_scale_color_decoder_forward.10} parent=0 // pred_fallthru
    _

// kernel: multi_scale_color_decoder_forward.11
$region0: #{multi_scale_color_decoder_forward.11}
  #allocation0 [shape = 'u32[]', space=smem, size = 0x4, offset = 0x4, fixed_abs, tag = 'smem constant byte address 0x4 - core index']
  #allocation1 [shape = 'u32[72,128]{1,0:T(1,128)}', space=vmem, size = 0x9000, scoped, tag = 'internal scratch']
  %s0 = inlined_call_operand.vmem [shape: f32[2,8,32], index: 0, kind: input, shape index: {}]
  %s1 = inlined_call_operand.vmem [shape: bf16[2,32,256], index: 1, kind: input, shape index: {}]
  %s2 = inlined_call_operand.vmem [shape: f32[2,8,256], index: 2, kind: output, shape index: {}]
  %s3 = sld [smem:[#allocation0]]
  $region41: #{multi_scale_color_decoder_forward.11} parent=0
    _
  %s5 = ssub.s32 1, %s3
  %s6 = scalar_select 0, %s5, %s3
  loop: start=0, step=1, limit=4
  $region2: #{multi_scale_color_decoder_forward.11} parent=0 // loop_pre_header
    _
  $region3: #{multi_scale_color_decoder_forward.11} parent=0 // loop_header
    %s8 = sphi 0, %s12
    %p9 = scmp.ge.s32.totalorder %s8, 4
    %s15 = sphi 0, %s27
    %s16 = sphi 0, %s23
    %s17 = sphi 0, %s15
    %s18 = sphi 0, %s16
    %s19 = sphi 0, %s17
    %s20 = sphi 0, %s18
    %s30 = sphi 0, %s32
    %s33 = sphi 0, %s30
    %s34 = sphi 0, %s33
    %s50 = sphi 0, %s34
    %s58 = sphi 0, %s60
    %s61 = sphi 0, %s58
    %s62 = sphi 0, %s61
    %s78 = sphi 0, %s62
    %s86 = sphi 0, %s88
    %s89 = sphi 0, %s86
    %s90 = sphi 0, %s89
    %s106 = sphi 0, %s90
  $region4: #{multi_scale_color_decoder_forward.11} parent=0 // loop_header_branch
    %11 = sbr.rel (%p9) target = $region8
  $region5: #{multi_scale_color_decoder_forward.11} parent=0 // loop_body
    %s13 = ssub.s32 %s8, 1
    %s14 = ssub.s32 %s8, 2
    %s21 = sadd.s32 1, %s16
    %p22 = scmp.ge.s32.totalorder %s21, 1
    %s23 = scalar_select %p22, 0, %s21
    %s24 = sadd.s32 1, %s15
    %s25 = scalar_select %p22, %s24, %s15
    %p26 = scmp.ge.s32.totalorder %s25, 2
    %s27 = scalar_select %p26, 0, %s25
    %s28 = ssub.s32 %s15, %s27
    %p29 = scmp.eq.s32.totalorder %s28, 0
    %s31 = sadd.s32 %s30, 1
    %s32 = scalar_select %p29, %s30, %s31
    %p35 = pneg %p29
    %p36 = scmp.eq.s32.totalorder %s8, 1
    %p37 = por %p35, %p36
    %p38 = scmp.ne.s32.totalorder %s30, %s33
    %p39 = scmp.eq.s32.totalorder %s8, 0
    %p40 = por %p38, %p39
    %p41 = scmp.ne.s32.totalorder %s30, %s33
    %p42 = scmp.eq.s32.totalorder %s13, 1
    %p43 = por %p41, %p42
    %p44 = scmp.ne.s32.totalorder %s33, %s34
    %p45 = scmp.eq.s32.totalorder %s13, 0
    %p46 = por %p44, %p45
    %p47 = scmp.ne.s32.totalorder %s33, %s34
    %p48 = scmp.eq.s32.totalorder %s14, 1
    %p49 = por %p47, %p48
    %p51 = scmp.ne.s32.totalorder %s34, %s50
    %p52 = scmp.eq.s32.totalorder %s14, 0
    %p53 = por %p51, %p52
    %s54 = ssub.s32 %s15, %s27
    %s55 = ssub.s32 %s16, %s23
    %s56 = sor.u32 %s54, %s55
    %p57 = scmp.eq.s32.totalorder %s56, 0
    %s59 = sadd.s32 %s58, 1
    %s60 = scalar_select %p57, %s58, %s59
    %p63 = pneg %p57
    %p64 = scmp.eq.s32.totalorder %s8, 1
    %p65 = por %p63, %p64
    %p66 = scmp.ne.s32.totalorder %s58, %s61
    %p67 = scmp.eq.s32.totalorder %s8, 0
    %p68 = por %p66, %p67
    %p69 = scmp.ne.s32.totalorder %s58, %s61
    %p70 = scmp.eq.s32.totalorder %s13, 1
    %p71 = por %p69, %p70
    %p72 = scmp.ne.s32.totalorder %s61, %s62
    %p73 = scmp.eq.s32.totalorder %s13, 0
    %p74 = por %p72, %p73
    %p75 = scmp.ne.s32.totalorder %s61, %s62
    %p76 = scmp.eq.s32.totalorder %s14, 1
    %p77 = por %p75, %p76
    %p79 = scmp.ne.s32.totalorder %s62, %s78
    %p80 = scmp.eq.s32.totalorder %s14, 0
    %p81 = por %p79, %p80
    %s82 = ssub.s32 %s15, %s27
    %s83 = ssub.s32 %s16, %s23
    %s84 = sor.u32 %s82, %s83
    %p85 = scmp.eq.s32.totalorder %s84, 0
    %s87 = sadd.s32 %s86, 1
    %s88 = scalar_select %p85, %s86, %s87
    %p91 = pneg %p85
    %p92 = scmp.eq.s32.totalorder %s8, 1
    %p93 = por %p91, %p92
    %p94 = scmp.ne.s32.totalorder %s86, %s89
    %p95 = scmp.eq.s32.totalorder %s8, 0
    %p96 = por %p94, %p95
    %p97 = scmp.ne.s32.totalorder %s86, %s89
    %p98 = scmp.eq.s32.totalorder %s13, 1
    %p99 = por %p97, %p98
    %p100 = scmp.ne.s32.totalorder %s89, %s90
    %p101 = scmp.eq.s32.totalorder %s13, 0
    %p102 = por %p100, %p101
    %p103 = scmp.ne.s32.totalorder %s89, %s90
    %p104 = scmp.eq.s32.totalorder %s14, 1
    %p105 = por %p103, %p104
    %p107 = scmp.ne.s32.totalorder %s90, %s106
    %p108 = scmp.eq.s32.totalorder %s14, 0
    %p109 = por %p107, %p108
    %p110 = scmp.le.s32.totalorder 1, %s8
    %p111 = scmp.lt.s32.totalorder %s8, 3
    %p112 = pnand %p110, %p111
    %p113 = pneg %p112
    // Predicated region
    $region9: #{multi_scale_color_decoder_forward.11} parent=5 // pred_check
      _
    $region10: #{multi_scale_color_decoder_forward.11} parent=5 // pred_check_branch
      %115 = sbr.rel (%p112) target = $region12
    $region11: #{multi_scale_color_decoder_forward.11} parent=5 // pred_region
      %s116 = ssub.s32 %s8, 1
    $region12: #{multi_scale_color_decoder_forward.11} parent=5 // pred_fallthru
      _
    %p117 = scmp.lt.s32.totalorder %s8, 2
    // Predicated region
    $region13: #{multi_scale_color_decoder_forward.11} parent=5 // pred_check
      %p118 = pneg %p117
    $region14: #{multi_scale_color_decoder_forward.11} parent=5 // pred_check_branch
      %120 = sbr.rel (%p118) target = $region16
    $region15: #{multi_scale_color_decoder_forward.11} parent=5 // pred_region
      // Predicated region
      $region17: #{multi_scale_color_decoder_forward.11} parent=15 // pred_check
        %p121 = pneg %p40
      $region18: #{multi_scale_color_decoder_forward.11} parent=15 // pred_check_branch
        %123 = sbr.rel (%p121) target = $region20
      $region19: #{multi_scale_color_decoder_forward.11} parent=15 // pred_region
        %p124 = scmp.lt.s32.totalorder %s15, 1
        %s125 = scalar_select %p124, %s15, 1
        %s126 = smul.addr %s125, 8
        %s127 = scalar_lea.vmem %s0, %s126
      $region20: #{multi_scale_color_decoder_forward.11} parent=15 // pred_fallthru
        _
      // Predicated region
      $region21: #{multi_scale_color_decoder_forward.11} parent=15 // pred_check
        %p128 = pneg %p68
      $region22: #{multi_scale_color_decoder_forward.11} parent=15 // pred_check_branch
        %130 = sbr.rel (%p128) target = $region24
      $region23: #{multi_scale_color_decoder_forward.11} parent=15 // pred_region
        %s131 = smul.u32 2, %s16
        %p132 = scmp.lt.s32.totalorder %s15, 1
        %s133 = scalar_select %p132, %s15, 1
        %p134 = scmp.lt.s32.totalorder %s131, 1
        %s135 = scalar_select %p134, %s131, 1
        %s136 = smul.addr %s133, 8
        %s137 = sadd.s32 %s135, %s136
        %s138 = smul.addr %s137, 4
        %s139 = scalar_lea.vmem %s1, %s138
        %s140 = smul.u32 2, %s16
      $region24: #{multi_scale_color_decoder_forward.11} parent=15 // pred_fallthru
        _
    $region16: #{multi_scale_color_decoder_forward.11} parent=5 // pred_fallthru
      _
    %p141 = scmp.le.s32.totalorder 1, %s8
    %p142 = scmp.lt.s32.totalorder %s8, 3
    %p143 = pnand %p141, %p142
    %p144 = pneg %p143
    // Predicated region
    $region25: #{multi_scale_color_decoder_forward.11} parent=5 // pred_check
      _
    $region26: #{multi_scale_color_decoder_forward.11} parent=5 // pred_check_branch
      %146 = sbr.rel (%p143) target = $region28
    $region27: #{multi_scale_color_decoder_forward.11} parent=5 // pred_region
      %s147 = ssub.s32 %s8, 1
      %p148 = scmp.lt.s32.totalorder %s17, 1
      %s149 = scalar_select %p148, %s17, 1
      %s150 = smul.addr %s149, 8
      %s151 = scalar_lea.vmem %s0, %s150
      %p152 = pneg %p46
      %p153 = pneg %p43
      %s154 = smul.u32 2, %s18
      %p155 = scmp.lt.s32.totalorder %s17, 1
      %s156 = scalar_select %p155, %s17, 1
      %p157 = scmp.lt.s32.totalorder %s154, 1
      %s158 = scalar_select %p157, %s154, 1
      %s159 = smul.addr %s156, 8
      %s160 = sadd.s32 %s158, %s159
      %s161 = smul.addr %s160, 4
      %s162 = scalar_lea.vmem %s1, %s161
      %p163 = pneg %p74
      %p164 = pneg %p71
      %p165 = pneg %p102
      %p166 = pneg %p99
      %s167 = smul.u32 2, %s18
      %p168 = scmp.lt.s32.totalorder %s17, 1
      %s169 = scalar_select %p168, %s17, 1
      %p170 = scmp.lt.s32.totalorder %s167, 1
      %s171 = scalar_select %p170, %s167, 1
      %s172 = smul.addr %s169, 2
      %s173 = sadd.s32 %s171, %s172
      %s174 = smul.addr %s173, 8
      %s175 = scalar_lea.vmem %s2, %s174
      %p176 = scmp.lt.s32.totalorder %s17, 1
      %s177 = scalar_select %p176, %s17, 1
      %s178 = smul.addr %s177, 8
      %s179 = scalar_lea.vmem %s0, %s178
      %s180 = smul.u32 2, %s18
      %p181 = scmp.lt.s32.totalorder %s17, 1
      %s182 = scalar_select %p181, %s17, 1
      %p183 = scmp.lt.s32.totalorder %s180, 1
      %s184 = scalar_select %p183, %s180, 1
      %s185 = smul.addr %s182, 8
      %s186 = sadd.s32 %s184, %s185
      %s187 = smul.addr %s186, 4
      %s188 = scalar_lea.vmem %s1, %s187
      %s189 = smul.u32 2, %s18
      %s190 = smul.u32 2, %s18
      %p191 = scmp.lt.s32.totalorder %s17, 1
      %s192 = scalar_select %p191, %s17, 1
      %p193 = scmp.lt.s32.totalorder %s190, 1
      %s194 = scalar_select %p193, %s190, 1
      %s195 = smul.addr %s192, 2
      %s196 = sadd.s32 %s194, %s195
      %s197 = smul.addr %s196, 8
      %s198 = scalar_lea.vmem %s2, %s197
      %s199 = smul.u32 2, %s18
      %v201 = vld [vmem:[%s179] sm:$0xff]
      %v202 = vpack.c.bf16 %v201, %v201
      %v203 = vld [vmem:[%s188] sm:$0xff]
      %v204 = vld [vmem:[%s188 + $0x8] sm:$0xff]
      %v205 = vld [vmem:[%s188 + $0x10] sm:$0xff]
      %v206 = vld [vmem:[%s188 + $0x18] sm:$0xff]
      %v211 = vunpack.c.l.b16 %v203
      %v212 = vunpack.c.h.b16 %v203
      %v213 = vunpack.c.l.b16 %v204
      %v214 = vunpack.c.h.b16 %v204
      %v215 = vunpack.c.l.b16 %v205
      %v216 = vunpack.c.h.b16 %v205
      %v217 = vunpack.c.l.b16 %v206
      %v218 = vunpack.c.h.b16 %v206
      %v219 = vpack.c.b16 %v213, %v211
      %v220 = vpack.c.b16 %v214, %v212
      %v221 = vpack.c.b16 %v217, %v215
      %v222 = vpack.c.b16 %v218, %v216
      %vm227 = vcmask 261120
      %v229 = vsel %vm227, %v202, 0
      %231 = vmatpush.bf16.msra.mxu0 0
      %232 = vmatpush.bf16.msra.mxu0 0
      %233 = vmatpush.bf16.msra.mxu0 0
      %234 = vmatpush.bf16.msra.mxu0 0
      %235 = vmatpush.bf16.msra.mxu0 0
      %236 = vmatpush.bf16.msra.mxu0 0
      %237 = vmatpush.bf16.msra.mxu0 %v221
      %238 = vmatpush.bf16.msra.mxu0 %v219
      %239 = vmatmul.bf16.gmra.mxu0 %v229
      %v240 = vpop.f32.mrf.mxu0
      %v241 = vadd.f32 0.0, %v240
      %v242 = vpop.f32.mrf.mxu0
      %243 = vdwg.mxu0
      %244 = vmatpush.bf16.msra.mxu0 0
      %245 = vmatpush.bf16.msra.mxu0 0
      %246 = vmatpush.bf16.msra.mxu0 0
      %247 = vmatpush.bf16.msra.mxu0 0
      %248 = vmatpush.bf16.msra.mxu0 0
      %249 = vmatpush.bf16.msra.mxu0 0
      %250 = vmatpush.bf16.msra.mxu0 %v222
      %251 = vmatpush.bf16.msra.mxu0 %v220
      %252 = vmatmul.bf16.gmra.mxu0 %v229
      %v253 = vpop.f32.mrf.mxu0
      %v254 = vadd.f32 0.0, %v253
      %v255 = vpop.f32.mrf.mxu0
      %256 = vdwg.mxu0
      %257 = vst [vmem:[%s198] sm:$0xff] %v241
      %258 = vst [vmem:[%s198 + $0x8] sm:$0xff] %v254
      %s259 = smul.u32 2, %s18
      %p260 = scmp.lt.s32.totalorder %s17, 1
      %s261 = scalar_select %p260, %s17, 1
      %p262 = scmp.lt.s32.totalorder %s259, 1
      %s263 = scalar_select %p262, %s259, 1
      %s264 = smul.addr %s261, 2
      %s265 = sadd.s32 %s263, %s264
      %s266 = smul.addr %s265, 8
      %s267 = scalar_lea.vmem %s2, %s266
      // Predicated region
      $region29: #{multi_scale_color_decoder_forward.11} parent=27 // pred_check
        %p268 = pneg %p99
      $region30: #{multi_scale_color_decoder_forward.11} parent=27 // pred_check_branch
        %270 = sbr.rel (%p268) target = $region32
      $region31: #{multi_scale_color_decoder_forward.11} parent=27 // pred_region
        %s271 = smul.u32 2, %s18
      $region32: #{multi_scale_color_decoder_forward.11} parent=27 // pred_fallthru
        _
    $region28: #{multi_scale_color_decoder_forward.11} parent=5 // pred_fallthru
      _
    %p272 = scmp.le.s32.totalorder 2, %s8
    // Predicated region
    $region33: #{multi_scale_color_decoder_forward.11} parent=5 // pred_check
      %p273 = pneg %p272
    $region34: #{multi_scale_color_decoder_forward.11} parent=5 // pred_check_branch
      %275 = sbr.rel (%p273) target = $region36
    $region35: #{multi_scale_color_decoder_forward.11} parent=5 // pred_region
      %s276 = ssub.s32 %s8, 2
      // Predicated region
      $region37: #{multi_scale_color_decoder_forward.11} parent=35 // pred_check
        %p277 = pneg %p105
      $region38: #{multi_scale_color_decoder_forward.11} parent=35 // pred_check_branch
        %279 = sbr.rel (%p277) target = $region40
      $region39: #{multi_scale_color_decoder_forward.11} parent=35 // pred_region
        %s280 = smul.u32 2, %s20
        %p281 = scmp.lt.s32.totalorder %s19, 1
        %s282 = scalar_select %p281, %s19, 1
        %p283 = scmp.lt.s32.totalorder %s280, 1
        %s284 = scalar_select %p283, %s280, 1
        %s285 = smul.addr %s282, 2
        %s286 = sadd.s32 %s284, %s285
        %s287 = smul.addr %s286, 8
        %s288 = scalar_lea.vmem %s2, %s287
      $region40: #{multi_scale_color_decoder_forward.11} parent=35 // pred_fallthru
        _
    $region36: #{multi_scale_color_decoder_forward.11} parent=5 // pred_fallthru
      _
  $region6: #{multi_scale_color_decoder_forward.11} parent=0 // loop_footer
    %s12 = sadd.s32 1, %s8
  $region7: #{multi_scale_color_decoder_forward.11} parent=0 // loop_footer_branch
    %7 = sbr.rel target = $region3
  $region8: #{multi_scale_color_decoder_forward.11} parent=0 // loop_exit
    _

// kernel: multi_scale_color_decoder_forward.9
$region0: #{multi_scale_color_decoder_forward.9}
  #allocation0 [shape = 'u32[]', space=smem, size = 0x4, offset = 0x4, fixed_abs, tag = 'smem constant byte address 0x4 - core index']
  #allocation1 [shape = 'u32[72,128]{1,0:T(1,128)}', space=vmem, size = 0x9000, scoped, tag = 'internal scratch']
  %s0 = inlined_call_operand.vmem [shape: f32[3,1,64], index: 0, kind: input, shape index: {}]
  %s1 = inlined_call_operand.vmem [shape: f32[8,32], index: 1, kind: input, shape index: {}]
  %s2 = inlined_call_operand.vmem [shape: f32[8,32], index: 2, kind: input, shape index: {}]
  %s3 = inlined_call_operand.vmem [shape: bf16[3,2,64,32], index: 3, kind: input, shape index: {}]
  %s4 = inlined_call_operand.vmem [shape: bf16[3,2,64,32], index: 4, kind: input, shape index: {}]
  %s5 = inlined_call_operand.vmem [shape: bf16[3,8,32,32], index: 5, kind: input, shape index: {}]
  %s6 = inlined_call_operand.vmem [shape: f32[3,8,32], index: 6, kind: input, shape index: {}]
  %s7 = inlined_call_operand.vmem [shape: f32[3,6,32], index: 7, kind: input, shape index: {}]
  %s8 = inlined_call_operand.vmem [shape: bf16[3,32,64], index: 8, kind: input, shape index: {}]
  %s9 = inlined_call_operand.vmem [shape: f32[3,1,64], index: 9, kind: input, shape index: {}]
  %s10 = inlined_call_operand.vmem [shape: bf16[3,64,32], index: 10, kind: input, shape index: {}]
  %s11 = inlined_call_operand.vmem [shape: f32[3,1,32], index: 11, kind: input, shape index: {}]
  %s12 = inlined_call_operand.vmem [shape: f32[2,8,32], index: 12, kind: output, shape index: {}]
  %s13 = sld [smem:[#allocation0]]
  $region85: #{multi_scale_color_decoder_forward.9} parent=0
    _
  %s15 = ssub.s32 1, %s13
  %s16 = scalar_select 0, %s15, %s13
  loop: start=0, step=1, limit=8
  $region2: #{multi_scale_color_decoder_forward.9} parent=0 // loop_pre_header
    _
  $region3: #{multi_scale_color_decoder_forward.9} parent=0 // loop_header
    %s18 = sphi 0, %s22
    %p19 = scmp.ge.s32.totalorder %s18, 8
    %s25 = sphi 0, %s37
    %s26 = sphi 0, %s33
    %s27 = sphi 0, %s25
    %s28 = sphi 0, %s26
    %s29 = sphi 0, %s27
    %s30 = sphi 0, %s28
    %s66 = sphi 0, %s68
    %s69 = sphi 0, %s66
    %s70 = sphi 0, %s69
    %s86 = sphi 0, %s70
    %s90 = sphi 0, %s90
    %s92 = sphi 0, %s90
    %s93 = sphi 0, %s92
    %s107 = sphi 0, %s93
    %s111 = sphi 0, %s111
    %s113 = sphi 0, %s111
    %s114 = sphi 0, %s113
    %s128 = sphi 0, %s114
    %s162 = sphi 0, %s164
    %s165 = sphi 0, %s162
    %s166 = sphi 0, %s165
    %s182 = sphi 0, %s166
    %s216 = sphi 0, %s218
    %s219 = sphi 0, %s216
    %s220 = sphi 0, %s219
    %s236 = sphi 0, %s220
    %s242 = sphi 0, %s244
    %s245 = sphi 0, %s242
    %s246 = sphi 0, %s245
    %s262 = sphi 0, %s246
    %s268 = sphi 0, %s270
    %s271 = sphi 0, %s268
    %s272 = sphi 0, %s271
    %s288 = sphi 0, %s272
    %s294 = sphi 0, %s296
    %s297 = sphi 0, %s294
    %s298 = sphi 0, %s297
    %s314 = sphi 0, %s298
    %s320 = sphi 0, %s322
    %s323 = sphi 0, %s320
    %s324 = sphi 0, %s323
    %s340 = sphi 0, %s324
    %s346 = sphi 0, %s348
    %s349 = sphi 0, %s346
    %s350 = sphi 0, %s349
    %s366 = sphi 0, %s350
    %s372 = sphi 0, %s374
    %s375 = sphi 0, %s372
    %s376 = sphi 0, %s375
    %s392 = sphi 0, %s376
    %s398 = sphi 0, %s400
    %s401 = sphi 0, %s398
    %s402 = sphi 0, %s401
    %s418 = sphi 0, %s402
    %s424 = sphi 0, %s426
    %s427 = sphi 0, %s424
    %s428 = sphi 0, %s427
    %s444 = sphi 0, %s428
  $region4: #{multi_scale_color_decoder_forward.9} parent=0 // loop_header_branch
    %21 = sbr.rel (%p19) target = $region8
  $region5: #{multi_scale_color_decoder_forward.9} parent=0 // loop_body
    %s23 = ssub.s32 %s18, 1
    %s24 = ssub.s32 %s18, 2
    %s31 = sadd.s32 1, %s26
    %p32 = scmp.ge.s32.totalorder %s31, 3
    %s33 = scalar_select %p32, 0, %s31
    %s34 = sadd.s32 1, %s25
    %s35 = scalar_select %p32, %s34, %s25
    %p36 = scmp.ge.s32.totalorder %s35, 2
    %s37 = scalar_select %p36, 0, %s35
    %p38 = scmp.lt.s32.totalorder %s26, 0
    %s39 = ssub.s32 0, %s26
    %s40 = scalar_select %p38, %s39, %s26
    %s41 = sdiv.u32.pop %s40, 3
    %s42 = srem.u32.pop %s40, 3
    %s43 = ssub.s32 0, %s42
    %s44 = scalar_select %p38, %s43, %s42
    %p45 = scmp.ne.s32.totalorder %s44, 0
    %p46 = scmp.lt.s32.totalorder %s44, 0
    %p47 = pnand %p46, %p45
    %p48 = pneg %p47
    %s49 = sadd.s32 %s44, 3
    %s50 = scalar_select %p48, %s49, %s44
    %p51 = scmp.lt.s32.totalorder %s33, 0
    %s52 = ssub.s32 0, %s33
    %s53 = scalar_select %p51, %s52, %s33
    %s54 = sdiv.u32.pop %s53, 3
    %s55 = srem.u32.pop %s53, 3
    %s56 = ssub.s32 0, %s55
    %s57 = scalar_select %p51, %s56, %s55
    %p58 = scmp.ne.s32.totalorder %s57, 0
    %p59 = scmp.lt.s32.totalorder %s57, 0
    %p60 = pnand %p59, %p58
    %p61 = pneg %p60
    %s62 = sadd.s32 %s57, 3
    %s63 = scalar_select %p61, %s62, %s57
    %s64 = ssub.s32 %s50, %s63
    %p65 = scmp.eq.s32.totalorder %s64, 0
    %s67 = sadd.s32 %s66, 1
    %s68 = scalar_select %p65, %s66, %s67
    %p71 = pneg %p65
    %p72 = scmp.eq.s32.totalorder %s18, 5
    %p73 = por %p71, %p72
    %p74 = scmp.ne.s32.totalorder %s66, %s69
    %p75 = scmp.eq.s32.totalorder %s18, 0
    %p76 = por %p74, %p75
    %p77 = scmp.ne.s32.totalorder %s66, %s69
    %p78 = scmp.eq.s32.totalorder %s23, 5
    %p79 = por %p77, %p78
    %p80 = scmp.ne.s32.totalorder %s69, %s70
    %p81 = scmp.eq.s32.totalorder %s23, 0
    %p82 = por %p80, %p81
    %p83 = scmp.ne.s32.totalorder %s69, %s70
    %p84 = scmp.eq.s32.totalorder %s24, 5
    %p85 = por %p83, %p84
    %p87 = scmp.ne.s32.totalorder %s70, %s86
    %p88 = scmp.eq.s32.totalorder %s24, 0
    %p89 = por %p87, %p88
    %s91 = sadd.s32 %s90, 1
    %p94 = scmp.eq.s32.totalorder %s18, 5
    %p95 = scmp.ne.s32.totalorder %s90, %s92
    %p96 = scmp.eq.s32.totalorder %s18, 0
    %p97 = por %p95, %p96
    %p98 = scmp.ne.s32.totalorder %s90, %s92
    %p99 = scmp.eq.s32.totalorder %s23, 5
    %p100 = por %p98, %p99
    %p101 = scmp.ne.s32.totalorder %s92, %s93
    %p102 = scmp.eq.s32.totalorder %s23, 0
    %p103 = por %p101, %p102
    %p104 = scmp.ne.s32.totalorder %s92, %s93
    %p105 = scmp.eq.s32.totalorder %s24, 5
    %p106 = por %p104, %p105
    %p108 = scmp.ne.s32.totalorder %s93, %s107
    %p109 = scmp.eq.s32.totalorder %s24, 0
    %p110 = por %p108, %p109
    %s112 = sadd.s32 %s111, 1
    %p115 = scmp.eq.s32.totalorder %s18, 5
    %p116 = scmp.ne.s32.totalorder %s111, %s113
    %p117 = scmp.eq.s32.totalorder %s18, 0
    %p118 = por %p116, %p117
    %p119 = scmp.ne.s32.totalorder %s111, %s113
    %p120 = scmp.eq.s32.totalorder %s23, 5
    %p121 = por %p119, %p120
    %p122 = scmp.ne.s32.totalorder %s113, %s114
    %p123 = scmp.eq.s32.totalorder %s23, 0
    %p124 = por %p122, %p123
    %p125 = scmp.ne.s32.totalorder %s113, %s114
    %p126 = scmp.eq.s32.totalorder %s24, 5
    %p127 = por %p125, %p126
    %p129 = scmp.ne.s32.totalorder %s114, %s128
    %p130 = scmp.eq.s32.totalorder %s24, 0
    %p131 = por %p129, %p130
    %p132 = scmp.lt.s32.totalorder %s26, 0
    %s133 = ssub.s32 0, %s26
    %s134 = scalar_select %p132, %s133, %s26
    %s135 = sdiv.u32.pop %s134, 3
    %s136 = srem.u32.pop %s134, 3
    %s137 = ssub.s32 0, %s136
    %s138 = scalar_select %p132, %s137, %s136
    %p139 = scmp.ne.s32.totalorder %s138, 0
    %p140 = scmp.lt.s32.totalorder %s138, 0
    %p141 = pnand %p140, %p139
    %p142 = pneg %p141
    %s143 = sadd.s32 %s138, 3
    %s144 = scalar_select %p142, %s143, %s138
    %p145 = scmp.lt.s32.totalorder %s33, 0
    %s146 = ssub.s32 0, %s33
    %s147 = scalar_select %p145, %s146, %s33
    %s148 = sdiv.u32.pop %s147, 3
    %s149 = srem.u32.pop %s147, 3
    %s150 = ssub.s32 0, %s149
    %s151 = scalar_select %p145, %s150, %s149
    %p152 = scmp.ne.s32.totalorder %s151, 0
    %p153 = scmp.lt.s32.totalorder %s151, 0
    %p154 = pnand %p153, %p152
    %p155 = pneg %p154
    %s156 = sadd.s32 %s151, 3
    %s157 = scalar_select %p155, %s156, %s151
    %s158 = ssub.s32 %s144, %s157
    %s159 = ssub.s32 %s25, %s37
    %s160 = sor.u32 %s158, %s159
    %p161 = scmp.eq.s32.totalorder %s160, 0
    %s163 = sadd.s32 %s162, 1
    %s164 = scalar_select %p161, %s162, %s163
    %p167 = pneg %p161
    %p168 = scmp.eq.s32.totalorder %s18, 5
    %p169 = por %p167, %p168
    %p170 = scmp.ne.s32.totalorder %s162, %s165
    %p171 = scmp.eq.s32.totalorder %s18, 0
    %p172 = por %p170, %p171
    %p173 = scmp.ne.s32.totalorder %s162, %s165
    %p174 = scmp.eq.s32.totalorder %s23, 5
    %p175 = por %p173, %p174
    %p176 = scmp.ne.s32.totalorder %s165, %s166
    %p177 = scmp.eq.s32.totalorder %s23, 0
    %p178 = por %p176, %p177
    %p179 = scmp.ne.s32.totalorder %s165, %s166
    %p180 = scmp.eq.s32.totalorder %s24, 5
    %p181 = por %p179, %p180
    %p183 = scmp.ne.s32.totalorder %s166, %s182
    %p184 = scmp.eq.s32.totalorder %s24, 0
    %p185 = por %p183, %p184
    %p186 = scmp.lt.s32.totalorder %s26, 0
    %s187 = ssub.s32 0, %s26
    %s188 = scalar_select %p186, %s187, %s26
    %s189 = sdiv.u32.pop %s188, 3
    %s190 = srem.u32.pop %s188, 3
    %s191 = ssub.s32 0, %s190
    %s192 = scalar_select %p186, %s191, %s190
    %p193 = scmp.ne.s32.totalorder %s192, 0
    %p194 = scmp.lt.s32.totalorder %s192, 0
    %p195 = pnand %p194, %p193
    %p196 = pneg %p195
    %s197 = sadd.s32 %s192, 3
    %s198 = scalar_select %p196, %s197, %s192
    %p199 = scmp.lt.s32.totalorder %s33, 0
    %s200 = ssub.s32 0, %s33
    %s201 = scalar_select %p199, %s200, %s33
    %s202 = sdiv.u32.pop %s201, 3
    %s203 = srem.u32.pop %s201, 3
    %s204 = ssub.s32 0, %s203
    %s205 = scalar_select %p199, %s204, %s203
    %p206 = scmp.ne.s32.totalorder %s205, 0
    %p207 = scmp.lt.s32.totalorder %s205, 0
    %p208 = pnand %p207, %p206
    %p209 = pneg %p208
    %s210 = sadd.s32 %s205, 3
    %s211 = scalar_select %p209, %s210, %s205
    %s212 = ssub.s32 %s198, %s211
    %s213 = ssub.s32 %s25, %s37
    %s214 = sor.u32 %s212, %s213
    %p215 = scmp.eq.s32.totalorder %s214, 0
    %s217 = sadd.s32 %s216, 1
    %s218 = scalar_select %p215, %s216, %s217
    %p221 = pneg %p215
    %p222 = scmp.eq.s32.totalorder %s18, 5
    %p223 = por %p221, %p222
    %p224 = scmp.ne.s32.totalorder %s216, %s219
    %p225 = scmp.eq.s32.totalorder %s18, 0
    %p226 = por %p224, %p225
    %p227 = scmp.ne.s32.totalorder %s216, %s219
    %p228 = scmp.eq.s32.totalorder %s23, 5
    %p229 = por %p227, %p228
    %p230 = scmp.ne.s32.totalorder %s219, %s220
    %p231 = scmp.eq.s32.totalorder %s23, 0
    %p232 = por %p230, %p231
    %p233 = scmp.ne.s32.totalorder %s219, %s220
    %p234 = scmp.eq.s32.totalorder %s24, 5
    %p235 = por %p233, %p234
    %p237 = scmp.ne.s32.totalorder %s220, %s236
    %p238 = scmp.eq.s32.totalorder %s24, 0
    %p239 = por %p237, %p238
    %s240 = ssub.s32 %s26, %s33
    %p241 = scmp.eq.s32.totalorder %s240, 0
    %s243 = sadd.s32 %s242, 1
    %s244 = scalar_select %p241, %s242, %s243
    %p247 = pneg %p241
    %p248 = scmp.eq.s32.totalorder %s18, 5
    %p249 = por %p247, %p248
    %p250 = scmp.ne.s32.totalorder %s242, %s245
    %p251 = scmp.eq.s32.totalorder %s18, 0
    %p252 = por %p250, %p251
    %p253 = scmp.ne.s32.totalorder %s242, %s245
    %p254 = scmp.eq.s32.totalorder %s23, 5
    %p255 = por %p253, %p254
    %p256 = scmp.ne.s32.totalorder %s245, %s246
    %p257 = scmp.eq.s32.totalorder %s23, 0
    %p258 = por %p256, %p257
    %p259 = scmp.ne.s32.totalorder %s245, %s246
    %p260 = scmp.eq.s32.totalorder %s24, 5
    %p261 = por %p259, %p260
    %p263 = scmp.ne.s32.totalorder %s246, %s262
    %p264 = scmp.eq.s32.totalorder %s24, 0
    %p265 = por %p263, %p264
    %s266 = ssub.s32 %s26, %s33
    %p267 = scmp.eq.s32.totalorder %s266, 0
    %s269 = sadd.s32 %s268, 1
    %s270 = scalar_select %p267, %s268, %s269
    %p273 = pneg %p267
    %p274 = scmp.eq.s32.totalorder %s18, 5
    %p275 = por %p273, %p274
    %p276 = scmp.ne.s32.totalorder %s268, %s271
    %p277 = scmp.eq.s32.totalorder %s18, 0
    %p278 = por %p276, %p277
    %p279 = scmp.ne.s32.totalorder %s268, %s271
    %p280 = scmp.eq.s32.totalorder %s23, 5
    %p281 = por %p279, %p280
    %p282 = scmp.ne.s32.totalorder %s271, %s272
    %p283 = scmp.eq.s32.totalorder %s23, 0
    %p284 = por %p282, %p283
    %p285 = scmp.ne.s32.totalorder %s271, %s272
    %p286 = scmp.eq.s32.totalorder %s24, 5
    %p287 = por %p285, %p286
    %p289 = scmp.ne.s32.totalorder %s272, %s288
    %p290 = scmp.eq.s32.totalorder %s24, 0
    %p291 = por %p289, %p290
    %s292 = ssub.s32 %s26, %s33
    %p293 = scmp.eq.s32.totalorder %s292, 0
    %s295 = sadd.s32 %s294, 1
    %s296 = scalar_select %p293, %s294, %s295
    %p299 = pneg %p293
    %p300 = scmp.eq.s32.totalorder %s18, 5
    %p301 = por %p299, %p300
    %p302 = scmp.ne.s32.totalorder %s294, %s297
    %p303 = scmp.eq.s32.totalorder %s18, 0
    %p304 = por %p302, %p303
    %p305 = scmp.ne.s32.totalorder %s294, %s297
    %p306 = scmp.eq.s32.totalorder %s23, 5
    %p307 = por %p305, %p306
    %p308 = scmp.ne.s32.totalorder %s297, %s298
    %p309 = scmp.eq.s32.totalorder %s23, 0
    %p310 = por %p308, %p309
    %p311 = scmp.ne.s32.totalorder %s297, %s298
    %p312 = scmp.eq.s32.totalorder %s24, 5
    %p313 = por %p311, %p312
    %p315 = scmp.ne.s32.totalorder %s298, %s314
    %p316 = scmp.eq.s32.totalorder %s24, 0
    %p317 = por %p315, %p316
    %s318 = ssub.s32 %s26, %s33
    %p319 = scmp.eq.s32.totalorder %s318, 0
    %s321 = sadd.s32 %s320, 1
    %s322 = scalar_select %p319, %s320, %s321
    %p325 = pneg %p319
    %p326 = scmp.eq.s32.totalorder %s18, 5
    %p327 = por %p325, %p326
    %p328 = scmp.ne.s32.totalorder %s320, %s323
    %p329 = scmp.eq.s32.totalorder %s18, 0
    %p330 = por %p328, %p329
    %p331 = scmp.ne.s32.totalorder %s320, %s323
    %p332 = scmp.eq.s32.totalorder %s23, 5
    %p333 = por %p331, %p332
    %p334 = scmp.ne.s32.totalorder %s323, %s324
    %p335 = scmp.eq.s32.totalorder %s23, 0
    %p336 = por %p334, %p335
    %p337 = scmp.ne.s32.totalorder %s323, %s324
    %p338 = scmp.eq.s32.totalorder %s24, 5
    %p339 = por %p337, %p338
    %p341 = scmp.ne.s32.totalorder %s324, %s340
    %p342 = scmp.eq.s32.totalorder %s24, 0
    %p343 = por %p341, %p342
    %s344 = ssub.s32 %s26, %s33
    %p345 = scmp.eq.s32.totalorder %s344, 0
    %s347 = sadd.s32 %s346, 1
    %s348 = scalar_select %p345, %s346, %s347
    %p351 = pneg %p345
    %p352 = scmp.eq.s32.totalorder %s18, 5
    %p353 = por %p351, %p352
    %p354 = scmp.ne.s32.totalorder %s346, %s349
    %p355 = scmp.eq.s32.totalorder %s18, 0
    %p356 = por %p354, %p355
    %p357 = scmp.ne.s32.totalorder %s346, %s349
    %p358 = scmp.eq.s32.totalorder %s23, 5
    %p359 = por %p357, %p358
    %p360 = scmp.ne.s32.totalorder %s349, %s350
    %p361 = scmp.eq.s32.totalorder %s23, 0
    %p362 = por %p360, %p361
    %p363 = scmp.ne.s32.totalorder %s349, %s350
    %p364 = scmp.eq.s32.totalorder %s24, 5
    %p365 = por %p363, %p364
    %p367 = scmp.ne.s32.totalorder %s350, %s366
    %p368 = scmp.eq.s32.totalorder %s24, 0
    %p369 = por %p367, %p368
    %s370 = ssub.s32 %s26, %s33
    %p371 = scmp.eq.s32.totalorder %s370, 0
    %s373 = sadd.s32 %s372, 1
    %s374 = scalar_select %p371, %s372, %s373
    %p377 = pneg %p371
    %p378 = scmp.eq.s32.totalorder %s18, 5
    %p379 = por %p377, %p378
    %p380 = scmp.ne.s32.totalorder %s372, %s375
    %p381 = scmp.eq.s32.totalorder %s18, 0
    %p382 = por %p380, %p381
    %p383 = scmp.ne.s32.totalorder %s372, %s375
    %p384 = scmp.eq.s32.totalorder %s23, 5
    %p385 = por %p383, %p384
    %p386 = scmp.ne.s32.totalorder %s375, %s376
    %p387 = scmp.eq.s32.totalorder %s23, 0
    %p388 = por %p386, %p387
    %p389 = scmp.ne.s32.totalorder %s375, %s376
    %p390 = scmp.eq.s32.totalorder %s24, 5
    %p391 = por %p389, %p390
    %p393 = scmp.ne.s32.totalorder %s376, %s392
    %p394 = scmp.eq.s32.totalorder %s24, 0
    %p395 = por %p393, %p394
    %s396 = ssub.s32 %s26, %s33
    %p397 = scmp.eq.s32.totalorder %s396, 0
    %s399 = sadd.s32 %s398, 1
    %s400 = scalar_select %p397, %s398, %s399
    %p403 = pneg %p397
    %p404 = scmp.eq.s32.totalorder %s18, 5
    %p405 = por %p403, %p404
    %p406 = scmp.ne.s32.totalorder %s398, %s401
    %p407 = scmp.eq.s32.totalorder %s18, 0
    %p408 = por %p406, %p407
    %p409 = scmp.ne.s32.totalorder %s398, %s401
    %p410 = scmp.eq.s32.totalorder %s23, 5
    %p411 = por %p409, %p410
    %p412 = scmp.ne.s32.totalorder %s401, %s402
    %p413 = scmp.eq.s32.totalorder %s23, 0
    %p414 = por %p412, %p413
    %p415 = scmp.ne.s32.totalorder %s401, %s402
    %p416 = scmp.eq.s32.totalorder %s24, 5
    %p417 = por %p415, %p416
    %p419 = scmp.ne.s32.totalorder %s402, %s418
    %p420 = scmp.eq.s32.totalorder %s24, 0
    %p421 = por %p419, %p420
    %s422 = ssub.s32 %s25, %s37
    %p423 = scmp.eq.s32.totalorder %s422, 0
    %s425 = sadd.s32 %s424, 1
    %s426 = scalar_select %p423, %s424, %s425
    %p429 = pneg %p423
    %p430 = scmp.eq.s32.totalorder %s18, 5
    %p431 = por %p429, %p430
    %p432 = scmp.ne.s32.totalorder %s424, %s427
    %p433 = scmp.eq.s32.totalorder %s18, 0
    %p434 = por %p432, %p433
    %p435 = scmp.ne.s32.totalorder %s424, %s427
    %p436 = scmp.eq.s32.totalorder %s23, 5
    %p437 = por %p435, %p436
    %p438 = scmp.ne.s32.totalorder %s427, %s428
    %p439 = scmp.eq.s32.totalorder %s23, 0
    %p440 = por %p438, %p439
    %p441 = scmp.ne.s32.totalorder %s427, %s428
    %p442 = scmp.eq.s32.totalorder %s24, 5
    %p443 = por %p441, %p442
    %p445 = scmp.ne.s32.totalorder %s428, %s444
    %p446 = scmp.eq.s32.totalorder %s24, 0
    %p447 = por %p445, %p446
    %p448 = scmp.le.s32.totalorder 1, %s18
    %p449 = scmp.lt.s32.totalorder %s18, 7
    %p450 = pnand %p448, %p449
    %p451 = pneg %p450
    // Predicated region
    $region9: #{multi_scale_color_decoder_forward.9} parent=5 // pred_check
      _
    $region10: #{multi_scale_color_decoder_forward.9} parent=5 // pred_check_branch
      %453 = sbr.rel (%p450) target = $region12
    $region11: #{multi_scale_color_decoder_forward.9} parent=5 // pred_region
      %s454 = ssub.s32 %s18, 1
      // Predicated region
      $region13: #{multi_scale_color_decoder_forward.9} parent=11 // pred_check
        %p455 = pneg %p103
      $region14: #{multi_scale_color_decoder_forward.9} parent=11 // pred_check_branch
        %457 = sbr.rel (%p455) target = $region16
      $region15: #{multi_scale_color_decoder_forward.9} parent=11 // pred_region
        _
      $region16: #{multi_scale_color_decoder_forward.9} parent=11 // pred_fallthru
        _
      // Predicated region
      $region17: #{multi_scale_color_decoder_forward.9} parent=11 // pred_check
        %p458 = pneg %p124
      $region18: #{multi_scale_color_decoder_forward.9} parent=11 // pred_check_branch
        %460 = sbr.rel (%p458) target = $region20
      $region19: #{multi_scale_color_decoder_forward.9} parent=11 // pred_region
        _
      $region20: #{multi_scale_color_decoder_forward.9} parent=11 // pred_fallthru
        _
    $region12: #{multi_scale_color_decoder_forward.9} parent=5 // pred_fallthru
      _
    %p461 = scmp.lt.s32.totalorder %s18, 6
    // Predicated region
    $region21: #{multi_scale_color_decoder_forward.9} parent=5 // pred_check
      %p462 = pneg %p461
    $region22: #{multi_scale_color_decoder_forward.9} parent=5 // pred_check_branch
      %464 = sbr.rel (%p462) target = $region24
    $region23: #{multi_scale_color_decoder_forward.9} parent=5 // pred_region
      // Predicated region
      $region25: #{multi_scale_color_decoder_forward.9} parent=23 // pred_check
        %p465 = pneg %p76
      $region26: #{multi_scale_color_decoder_forward.9} parent=23 // pred_check_branch
        %467 = sbr.rel (%p465) target = $region28
      $region27: #{multi_scale_color_decoder_forward.9} parent=23 // pred_region
        %p468 = scmp.lt.s32.totalorder %s26, 0
        %s469 = ssub.s32 0, %s26
        %s470 = scalar_select %p468, %s469, %s26
        %s471 = sdiv.u32.pop %s470, 3
        %s472 = srem.u32.pop %s470, 3
        %s473 = ssub.s32 0, %s472
        %s474 = scalar_select %p468, %s473, %s472
        %p475 = scmp.ne.s32.totalorder %s474, 0
        %p476 = scmp.lt.s32.totalorder %s474, 0
        %p477 = pnand %p476, %p475
        %p478 = pneg %p477
        %s479 = sadd.s32 %s474, 3
        %s480 = scalar_select %p478, %s479, %s474
        %p481 = scmp.lt.s32.totalorder %s480, 2
        %s482 = scalar_select %p481, %s480, 2
        %s483 = scalar_lea.vmem %s0, %s482
        %p484 = scmp.lt.s32.totalorder %s26, 0
        %s485 = ssub.s32 0, %s26
        %s486 = scalar_select %p484, %s485, %s26
        %s487 = sdiv.u32.pop %s486, 3
        %s488 = srem.u32.pop %s486, 3
        %s489 = ssub.s32 0, %s488
        %s490 = scalar_select %p484, %s489, %s488
        %p491 = scmp.ne.s32.totalorder %s490, 0
        %p492 = scmp.lt.s32.totalorder %s490, 0
        %p493 = pnand %p492, %p491
        %p494 = pneg %p493
        %s495 = sadd.s32 %s490, 3
        %s496 = scalar_select %p494, %s495, %s490
      $region28: #{multi_scale_color_decoder_forward.9} parent=23 // pred_fallthru
        _
      // Predicated region
      $region29: #{multi_scale_color_decoder_forward.9} parent=23 // pred_check
        %p497 = pneg %p172
      $region30: #{multi_scale_color_decoder_forward.9} parent=23 // pred_check_branch
        %499 = sbr.rel (%p497) target = $region32
      $region31: #{multi_scale_color_decoder_forward.9} parent=23 // pred_region
        %p500 = scmp.lt.s32.totalorder %s26, 0
        %s501 = ssub.s32 0, %s26
        %s502 = scalar_select %p500, %s501, %s26
        %s503 = sdiv.u32.pop %s502, 3
        %s504 = srem.u32.pop %s502, 3
        %s505 = ssub.s32 0, %s504
        %s506 = scalar_select %p500, %s505, %s504
        %p507 = scmp.ne.s32.totalorder %s506, 0
        %p508 = scmp.lt.s32.totalorder %s506, 0
        %p509 = pnand %p508, %p507
        %p510 = pneg %p509
        %s511 = sadd.s32 %s506, 3
        %s512 = scalar_select %p510, %s511, %s506
        %p513 = scmp.lt.s32.totalorder %s512, 2
        %s514 = scalar_select %p513, %s512, 2
        %p515 = scmp.lt.s32.totalorder %s25, 1
        %s516 = scalar_select %p515, %s25, 1
        %s517 = smul.addr %s516, 8
        %s518 = smul.addr %s514, 16
        %s519 = sadd.s32 %s517, %s518
        %s520 = smul.addr %s519, 4
        %s521 = scalar_lea.vmem %s3, %s520
        %p522 = scmp.lt.s32.totalorder %s26, 0
        %s523 = ssub.s32 0, %s26
        %s524 = scalar_select %p522, %s523, %s26
        %s525 = sdiv.u32.pop %s524, 3
        %s526 = srem.u32.pop %s524, 3
        %s527 = ssub.s32 0, %s526
        %s528 = scalar_select %p522, %s527, %s526
        %p529 = scmp.ne.s32.totalorder %s528, 0
        %p530 = scmp.lt.s32.totalorder %s528, 0
        %p531 = pnand %p530, %p529
        %p532 = pneg %p531
        %s533 = sadd.s32 %s528, 3
        %s534 = scalar_select %p532, %s533, %s528
      $region32: #{multi_scale_color_decoder_forward.9} parent=23 // pred_fallthru
        _
      // Predicated region
      $region33: #{multi_scale_color_decoder_forward.9} parent=23 // pred_check
        %p535 = pneg %p226
      $region34: #{multi_scale_color_decoder_forward.9} parent=23 // pred_check_branch
        %537 = sbr.rel (%p535) target = $region36
      $region35: #{multi_scale_color_decoder_forward.9} parent=23 // pred_region
        %p538 = scmp.lt.s32.totalorder %s26, 0
        %s539 = ssub.s32 0, %s26
        %s540 = scalar_select %p538, %s539, %s26
        %s541 = sdiv.u32.pop %s540, 3
        %s542 = srem.u32.pop %s540, 3
        %s543 = ssub.s32 0, %s542
        %s544 = scalar_select %p538, %s543, %s542
        %p545 = scmp.ne.s32.totalorder %s544, 0
        %p546 = scmp.lt.s32.totalorder %s544, 0
        %p547 = pnand %p546, %p545
        %p548 = pneg %p547
        %s549 = sadd.s32 %s544, 3
        %s550 = scalar_select %p548, %s549, %s544
        %p551 = scmp.lt.s32.totalorder %s550, 2
        %s552 = scalar_select %p551, %s550, 2
        %p553 = scmp.lt.s32.totalorder %s25, 1
        %s554 = scalar_select %p553, %s25, 1
        %s555 = smul.addr %s554, 8
        %s556 = smul.addr %s552, 16
        %s557 = sadd.s32 %s555, %s556
        %s558 = smul.addr %s557, 4
        %s559 = scalar_lea.vmem %s4, %s558
        %p560 = scmp.lt.s32.totalorder %s26, 0
        %s561 = ssub.s32 0, %s26
        %s562 = scalar_select %p560, %s561, %s26
        %s563 = sdiv.u32.pop %s562, 3
        %s564 = srem.u32.pop %s562, 3
        %s565 = ssub.s32 0, %s564
        %s566 = scalar_select %p560, %s565, %s564
        %p567 = scmp.ne.s32.totalorder %s566, 0
        %p568 = scmp.lt.s32.totalorder %s566, 0
        %p569 = pnand %p568, %p567
        %p570 = pneg %p569
        %s571 = sadd.s32 %s566, 3
        %s572 = scalar_select %p570, %s571, %s566
      $region36: #{multi_scale_color_decoder_forward.9} parent=23 // pred_fallthru
        _
      // Predicated region
      $region37: #{multi_scale_color_decoder_forward.9} parent=23 // pred_check
        %p573 = pneg %p252
      $region38: #{multi_scale_color_decoder_forward.9} parent=23 // pred_check_branch
        %575 = sbr.rel (%p573) target = $region40
      $region39: #{multi_scale_color_decoder_forward.9} parent=23 // pred_region
        %p576 = scmp.lt.s32.totalorder %s26, 2
        %s577 = scalar_select %p576, %s26, 2
        %s578 = smul.addr %s577, 32
        %s579 = smul.addr %s578, 4
        %s580 = scalar_lea.vmem %s5, %s579
      $region40: #{multi_scale_color_decoder_forward.9} parent=23 // pred_fallthru
        _
      // Predicated region
      $region41: #{multi_scale_color_decoder_forward.9} parent=23 // pred_check
        %p581 = pneg %p278
      $region42: #{multi_scale_color_decoder_forward.9} parent=23 // pred_check_branch
        %583 = sbr.rel (%p581) target = $region44
      $region43: #{multi_scale_color_decoder_forward.9} parent=23 // pred_region
        %p584 = scmp.lt.s32.totalorder %s26, 2
        %s585 = scalar_select %p584, %s26, 2
        %s586 = smul.addr %s585, 8
        %s587 = scalar_lea.vmem %s6, %s586
      $region44: #{multi_scale_color_decoder_forward.9} parent=23 // pred_fallthru
        _
      // Predicated region
      $region45: #{multi_scale_color_decoder_forward.9} parent=23 // pred_check
        %p588 = pneg %p304
      $region46: #{multi_scale_color_decoder_forward.9} parent=23 // pred_check_branch
        %590 = sbr.rel (%p588) target = $region48
      $region47: #{multi_scale_color_decoder_forward.9} parent=23 // pred_region
        %p591 = scmp.lt.s32.totalorder %s26, 2
        %s592 = scalar_select %p591, %s26, 2
        %s593 = smul.addr %s592, 8
        %s594 = scalar_lea.vmem %s7, %s593
      $region48: #{multi_scale_color_decoder_forward.9} parent=23 // pred_fallthru
        _
      // Predicated region
      $region49: #{multi_scale_color_decoder_forward.9} parent=23 // pred_check
        %p595 = pneg %p330
      $region50: #{multi_scale_color_decoder_forward.9} parent=23 // pred_check_branch
        %597 = sbr.rel (%p595) target = $region52
      $region51: #{multi_scale_color_decoder_forward.9} parent=23 // pred_region
        %p598 = scmp.lt.s32.totalorder %s26, 2
        %s599 = scalar_select %p598, %s26, 2
        %s600 = smul.addr %s599, 4
        %s601 = smul.addr %s600, 4
        %s602 = scalar_lea.vmem %s8, %s601
      $region52: #{multi_scale_color_decoder_forward.9} parent=23 // pred_fallthru
        _
      // Predicated region
      $region53: #{multi_scale_color_decoder_forward.9} parent=23 // pred_check
        %p603 = pneg %p356
      $region54: #{multi_scale_color_decoder_forward.9} parent=23 // pred_check_branch
        %605 = sbr.rel (%p603) target = $region56
      $region55: #{multi_scale_color_decoder_forward.9} parent=23 // pred_region
        %p606 = scmp.lt.s32.totalorder %s26, 2
        %s607 = scalar_select %p606, %s26, 2
        %s608 = scalar_lea.vmem %s9, %s607
      $region56: #{multi_scale_color_decoder_forward.9} parent=23 // pred_fallthru
        _
      // Predicated region
      $region57: #{multi_scale_color_decoder_forward.9} parent=23 // pred_check
        %p609 = pneg %p382
      $region58: #{multi_scale_color_decoder_forward.9} parent=23 // pred_check_branch
        %611 = sbr.rel (%p609) target = $region60
      $region59: #{multi_scale_color_decoder_forward.9} parent=23 // pred_region
        %p612 = scmp.lt.s32.totalorder %s26, 2
        %s613 = scalar_select %p612, %s26, 2
        %s614 = smul.addr %s613, 8
        %s615 = smul.addr %s614, 4
        %s616 = scalar_lea.vmem %s10, %s615
      $region60: #{multi_scale_color_decoder_forward.9} parent=23 // pred_fallthru
        _
      // Predicated region
      $region61: #{multi_scale_color_decoder_forward.9} parent=23 // pred_check
        %p617 = pneg %p408
      $region62: #{multi_scale_color_decoder_forward.9} parent=23 // pred_check_branch
        %619 = sbr.rel (%p617) target = $region64
      $region63: #{multi_scale_color_decoder_forward.9} parent=23 // pred_region
        %p620 = scmp.lt.s32.totalorder %s26, 2
        %s621 = scalar_select %p620, %s26, 2
        %s622 = scalar_lea.vmem %s11, %s621
      $region64: #{multi_scale_color_decoder_forward.9} parent=23 // pred_fallthru
        _
    $region24: #{multi_scale_color_decoder_forward.9} parent=5 // pred_fallthru
      _
    %p623 = scmp.le.s32.totalorder 1, %s18
    %p624 = scmp.lt.s32.totalorder %s18, 7
    %p625 = pnand %p623, %p624
    %p626 = pneg %p625
    // Predicated region
    $region65: #{multi_scale_color_decoder_forward.9} parent=5 // pred_check
      _
    $region66: #{multi_scale_color_decoder_forward.9} parent=5 // pred_check_branch
      %628 = sbr.rel (%p625) target = $region68
    $region67: #{multi_scale_color_decoder_forward.9} parent=5 // pred_region
      %s629 = ssub.s32 %s18, 1
      %p630 = scmp.lt.s32.totalorder %s28, 0
      %s631 = ssub.s32 0, %s28
      %s632 = scalar_select %p630, %s631, %s28
      %s633 = sdiv.u32.pop %s632, 3
      %s634 = srem.u32.pop %s632, 3
      %s635 = ssub.s32 0, %s634
      %s636 = scalar_select %p630, %s635, %s634
      %p637 = scmp.ne.s32.totalorder %s636, 0
      %p638 = scmp.lt.s32.totalorder %s636, 0
      %p639 = pnand %p638, %p637
      %p640 = pneg %p639
      %s641 = sadd.s32 %s636, 3
      %s642 = scalar_select %p640, %s641, %s636
      %p643 = scmp.lt.s32.totalorder %s642, 2
      %s644 = scalar_select %p643, %s642, 2
      %s645 = scalar_lea.vmem %s0, %s644
      %p646 = pneg %p82
      %p647 = pneg %p79
      %p648 = pneg %p103
      %p649 = pneg %p100
      %p650 = pneg %p124
      %p651 = pneg %p121
      %p652 = scmp.lt.s32.totalorder %s28, 0
      %s653 = ssub.s32 0, %s28
      %s654 = scalar_select %p652, %s653, %s28
      %s655 = sdiv.u32.pop %s654, 3
      %s656 = srem.u32.pop %s654, 3
      %s657 = ssub.s32 0, %s656
      %s658 = scalar_select %p652, %s657, %s656
      %p659 = scmp.ne.s32.totalorder %s658, 0
      %p660 = scmp.lt.s32.totalorder %s658, 0
      %p661 = pnand %p660, %p659
      %p662 = pneg %p661
      %s663 = sadd.s32 %s658, 3
      %s664 = scalar_select %p662, %s663, %s658
      %p665 = scmp.lt.s32.totalorder %s664, 2
      %s666 = scalar_select %p665, %s664, 2
      %p667 = scmp.lt.s32.totalorder %s27, 1
      %s668 = scalar_select %p667, %s27, 1
      %s669 = smul.addr %s668, 8
      %s670 = smul.addr %s666, 16
      %s671 = sadd.s32 %s669, %s670
      %s672 = smul.addr %s671, 4
      %s673 = scalar_lea.vmem %s3, %s672
      %p674 = pneg %p178
      %p675 = pneg %p175
      %p676 = scmp.lt.s32.totalorder %s28, 0
      %s677 = ssub.s32 0, %s28
      %s678 = scalar_select %p676, %s677, %s28
      %s679 = sdiv.u32.pop %s678, 3
      %s680 = srem.u32.pop %s678, 3
      %s681 = ssub.s32 0, %s680
      %s682 = scalar_select %p676, %s681, %s680
      %p683 = scmp.ne.s32.totalorder %s682, 0
      %p684 = scmp.lt.s32.totalorder %s682, 0
      %p685 = pnand %p684, %p683
      %p686 = pneg %p685
      %s687 = sadd.s32 %s682, 3
      %s688 = scalar_select %p686, %s687, %s682
      %p689 = scmp.lt.s32.totalorder %s688, 2
      %s690 = scalar_select %p689, %s688, 2
      %p691 = scmp.lt.s32.totalorder %s27, 1
      %s692 = scalar_select %p691, %s27, 1
      %s693 = smul.addr %s692, 8
      %s694 = smul.addr %s690, 16
      %s695 = sadd.s32 %s693, %s694
      %s696 = smul.addr %s695, 4
      %s697 = scalar_lea.vmem %s4, %s696
      %p698 = pneg %p232
      %p699 = pneg %p229
      %p700 = scmp.lt.s32.totalorder %s28, 2
      %s701 = scalar_select %p700, %s28, 2
      %s702 = smul.addr %s701, 32
      %s703 = smul.addr %s702, 4
      %s704 = scalar_lea.vmem %s5, %s703
      %p705 = pneg %p258
      %p706 = pneg %p255
      %p707 = scmp.lt.s32.totalorder %s28, 2
      %s708 = scalar_select %p707, %s28, 2
      %s709 = smul.addr %s708, 8
      %s710 = scalar_lea.vmem %s6, %s709
      %p711 = pneg %p284
      %p712 = pneg %p281
      %p713 = scmp.lt.s32.totalorder %s28, 2
      %s714 = scalar_select %p713, %s28, 2
      %s715 = smul.addr %s714, 8
      %s716 = scalar_lea.vmem %s7, %s715
      %p717 = pneg %p310
      %p718 = pneg %p307
      %p719 = scmp.lt.s32.totalorder %s28, 2
      %s720 = scalar_select %p719, %s28, 2
      %s721 = smul.addr %s720, 4
      %s722 = smul.addr %s721, 4
      %s723 = scalar_lea.vmem %s8, %s722
      %p724 = pneg %p336
      %p725 = pneg %p333
      %p726 = scmp.lt.s32.totalorder %s28, 2
      %s727 = scalar_select %p726, %s28, 2
      %s728 = scalar_lea.vmem %s9, %s727
      %p729 = pneg %p362
      %p730 = pneg %p359
      %p731 = scmp.lt.s32.totalorder %s28, 2
      %s732 = scalar_select %p731, %s28, 2
      %s733 = smul.addr %s732, 8
      %s734 = smul.addr %s733, 4
      %s735 = scalar_lea.vmem %s10, %s734
      %p736 = pneg %p388
      %p737 = pneg %p385
      %p738 = scmp.lt.s32.totalorder %s28, 2
      %s739 = scalar_select %p738, %s28, 2
      %s740 = scalar_lea.vmem %s11, %s739
      %p741 = pneg %p414
      %p742 = pneg %p411
      %p743 = pneg %p440
      %p744 = pneg %p437
      %p745 = scmp.lt.s32.totalorder %s27, 1
      %s746 = scalar_select %p745, %s27, 1
      %s747 = smul.addr %s746, 8
      %s748 = scalar_lea.vmem %s12, %s747
      %p749 = scmp.lt.s32.totalorder %s28, 0
      %s750 = ssub.s32 0, %s28
      %s751 = scalar_select %p749, %s750, %s28
      %s752 = sdiv.u32.pop %s751, 3
      %s753 = srem.u32.pop %s751, 3
      %s754 = ssub.s32 0, %s753
      %s755 = scalar_select %p749, %s754, %s753
      %p756 = scmp.ne.s32.totalorder %s755, 0
      %p757 = scmp.lt.s32.totalorder %s755, 0
      %p758 = pnand %p757, %p756
      %p759 = pneg %p758
      %s760 = sadd.s32 %s755, 3
      %s761 = scalar_select %p759, %s760, %s755
      %p762 = scmp.lt.s32.totalorder %s761, 2
      %s763 = scalar_select %p762, %s761, 2
      %s764 = scalar_lea.vmem %s0, %s763
      %p765 = scmp.lt.s32.totalorder %s28, 0
      %s766 = ssub.s32 0, %s28
      %s767 = scalar_select %p765, %s766, %s28
      %s768 = sdiv.u32.pop %s767, 3
      %s769 = srem.u32.pop %s767, 3
      %s770 = ssub.s32 0, %s769
      %s771 = scalar_select %p765, %s770, %s769
      %p772 = scmp.ne.s32.totalorder %s771, 0
      %p773 = scmp.lt.s32.totalorder %s771, 0
      %p774 = pnand %p773, %p772
      %p775 = pneg %p774
      %s776 = sadd.s32 %s771, 3
      %s777 = scalar_select %p775, %s776, %s771
      %p778 = scmp.lt.s32.totalorder %s28, 0
      %s779 = ssub.s32 0, %s28
      %s780 = scalar_select %p778, %s779, %s28
      %s781 = sdiv.u32.pop %s780, 3
      %s782 = srem.u32.pop %s780, 3
      %s783 = ssub.s32 0, %s782
      %s784 = scalar_select %p778, %s783, %s782
      %p785 = scmp.ne.s32.totalorder %s784, 0
      %p786 = scmp.lt.s32.totalorder %s784, 0
      %p787 = pnand %p786, %p785
      %p788 = pneg %p787
      %s789 = sadd.s32 %s784, 3
      %s790 = scalar_select %p788, %s789, %s784
      %p791 = scmp.lt.s32.totalorder %s790, 2
      %s792 = scalar_select %p791, %s790, 2
      %p793 = scmp.lt.s32.totalorder %s27, 1
      %s794 = scalar_select %p793, %s27, 1
      %s795 = smul.addr %s794, 8
      %s796 = smul.addr %s792, 16
      %s797 = sadd.s32 %s795, %s796
      %s798 = smul.addr %s797, 4
      %s799 = scalar_lea.vmem %s3, %s798
      %p800 = scmp.lt.s32.totalorder %s28, 0
      %s801 = ssub.s32 0, %s28
      %s802 = scalar_select %p800, %s801, %s28
      %s803 = sdiv.u32.pop %s802, 3
      %s804 = srem.u32.pop %s802, 3
      %s805 = ssub.s32 0, %s804
      %s806 = scalar_select %p800, %s805, %s804
      %p807 = scmp.ne.s32.totalorder %s806, 0
      %p808 = scmp.lt.s32.totalorder %s806, 0
      %p809 = pnand %p808, %p807
      %p810 = pneg %p809
      %s811 = sadd.s32 %s806, 3
      %s812 = scalar_select %p810, %s811, %s806
      %p813 = scmp.lt.s32.totalorder %s28, 0
      %s814 = ssub.s32 0, %s28
      %s815 = scalar_select %p813, %s814, %s28
      %s816 = sdiv.u32.pop %s815, 3
      %s817 = srem.u32.pop %s815, 3
      %s818 = ssub.s32 0, %s817
      %s819 = scalar_select %p813, %s818, %s817
      %p820 = scmp.ne.s32.totalorder %s819, 0
      %p821 = scmp.lt.s32.totalorder %s819, 0
      %p822 = pnand %p821, %p820
      %p823 = pneg %p822
      %s824 = sadd.s32 %s819, 3
      %s825 = scalar_select %p823, %s824, %s819
      %p826 = scmp.lt.s32.totalorder %s825, 2
      %s827 = scalar_select %p826, %s825, 2
      %p828 = scmp.lt.s32.totalorder %s27, 1
      %s829 = scalar_select %p828, %s27, 1
      %s830 = smul.addr %s829, 8
      %s831 = smul.addr %s827, 16
      %s832 = sadd.s32 %s830, %s831
      %s833 = smul.addr %s832, 4
      %s834 = scalar_lea.vmem %s4, %s833
      %p835 = scmp.lt.s32.totalorder %s28, 0
      %s836 = ssub.s32 0, %s28
      %s837 = scalar_select %p835, %s836, %s28
      %s838 = sdiv.u32.pop %s837, 3
      %s839 = srem.u32.pop %s837, 3
      %s840 = ssub.s32 0, %s839
      %s841 = scalar_select %p835, %s840, %s839
      %p842 = scmp.ne.s32.totalorder %s841, 0
      %p843 = scmp.lt.s32.totalorder %s841, 0
      %p844 = pnand %p843, %p842
      %p845 = pneg %p844
      %s846 = sadd.s32 %s841, 3
      %s847 = scalar_select %p845, %s846, %s841
      %p848 = scmp.lt.s32.totalorder %s28, 2
      %s849 = scalar_select %p848, %s28, 2
      %s850 = smul.addr %s849, 32
      %s851 = smul.addr %s850, 4
      %s852 = scalar_lea.vmem %s5, %s851
      %p853 = scmp.lt.s32.totalorder %s28, 2
      %s854 = scalar_select %p853, %s28, 2
      %s855 = smul.addr %s854, 8
      %s856 = scalar_lea.vmem %s6, %s855
      %p857 = scmp.lt.s32.totalorder %s28, 2
      %s858 = scalar_select %p857, %s28, 2
      %s859 = smul.addr %s858, 8
      %s860 = scalar_lea.vmem %s7, %s859
      %p861 = scmp.lt.s32.totalorder %s28, 2
      %s862 = scalar_select %p861, %s28, 2
      %s863 = smul.addr %s862, 4
      %s864 = smul.addr %s863, 4
      %s865 = scalar_lea.vmem %s8, %s864
      %p866 = scmp.lt.s32.totalorder %s28, 2
      %s867 = scalar_select %p866, %s28, 2
      %s868 = scalar_lea.vmem %s9, %s867
      %p869 = scmp.lt.s32.totalorder %s28, 2
      %s870 = scalar_select %p869, %s28, 2
      %s871 = smul.addr %s870, 8
      %s872 = smul.addr %s871, 4
      %s873 = scalar_lea.vmem %s10, %s872
      %p874 = scmp.lt.s32.totalorder %s28, 2
      %s875 = scalar_select %p874, %s28, 2
      %s876 = scalar_lea.vmem %s11, %s875
      %p877 = scmp.lt.s32.totalorder %s27, 1
      %s878 = scalar_select %p877, %s27, 1
      %s879 = smul.addr %s878, 8
      %s880 = scalar_lea.vmem %s12, %s879
      %p882 = scmp.eq.s32.totalorder %s28, 0
      // Predicated region
      $region69: #{multi_scale_color_decoder_forward.9} parent=67 // pred_check
        %p883 = pneg %p882
      $region70: #{multi_scale_color_decoder_forward.9} parent=67 // pred_check_branch
        %885 = sbr.rel (%p883) target = $region72
      $region71: #{multi_scale_color_decoder_forward.9} parent=67 // pred_region
        %v886 = vld [vmem:[%s1] sm:$0xff]
        %vm887 = vcmask 261120
        %888 = vst.msk [vmem:[%s880] sm:$0xff] %vm887, %v886
      $region72: #{multi_scale_color_decoder_forward.9} parent=67 // pred_fallthru
        _
      %v889 = vld [vmem:[%s880] sm:$0xff]
      %v890 = vld [vmem:[%s2] sm:$0xff]
      %v891 = vld [vmem:[%s799] sm:$0xf]
      %v892 = vld [vmem:[%s799 + $0x4] sm:$0xf]
      %v893 = vld [vmem:[%s799 + $0x8] sm:$0xf]
      %v894 = vld [vmem:[%s799 + $0xc] sm:$0xf]
      %v895 = vld [vmem:[%s799 + $0x10] sm:$0xf]
      %v896 = vld [vmem:[%s799 + $0x14] sm:$0xf]
      %v897 = vld [vmem:[%s799 + $0x18] sm:$0xf]
      %v898 = vld [vmem:[%s799 + $0x1c] sm:$0xf]
      %v899 = vld [vmem:[%s834] sm:$0xf]
      %v900 = vld [vmem:[%s834 + $0x4] sm:$0xf]
      %v901 = vld [vmem:[%s834 + $0x8] sm:$0xf]
      %v902 = vld [vmem:[%s834 + $0xc] sm:$0xf]
      %v903 = vld [vmem:[%s834 + $0x10] sm:$0xf]
      %v904 = vld [vmem:[%s834 + $0x14] sm:$0xf]
      %v905 = vld [vmem:[%s834 + $0x18] sm:$0xf]
      %v906 = vld [vmem:[%s834 + $0x1c] sm:$0xf]
      %v907 = vld [vmem:[%s764] sm:$0x1]
      %v908 = vadd.f32 %v889, %v890
      %v909 = vpack.c.bf16 %v908, %v908
      %v910 = vld [vmem:[%s852] sm:$0xf]
      %v911 = vld [vmem:[%s852 + $0x4] sm:$0xf]
      %v912 = vld [vmem:[%s852 + $0x8] sm:$0xf]
      %v913 = vld [vmem:[%s852 + $0xc] sm:$0xf]
      %v914 = vld [vmem:[%s856] sm:$0x1]
      %v915 = vperm.slane %v914, 0
      %v920 = vunpack.c.l.b16 %v910
      %v921 = vunpack.c.l.b16 %v911
      %v922 = vunpack.c.l.b16 %v912
      %v923 = vunpack.c.l.b16 %v913
      %v924 = vpack.c.b16 %v921, %v920
      %v925 = vpack.c.b16 %v923, %v922
      %vm928 = vcmask 261120
      %v930 = vsel %vm928, %v909, 0
      %932 = vmatpush.bf16.msra.mxu0 0
      %933 = vmatpush.bf16.msra.mxu0 0
      %934 = vmatpush.bf16.msra.mxu0 0
      %935 = vmatpush.bf16.msra.mxu0 0
      %936 = vmatpush.bf16.msra.mxu0 0
      %937 = vmatpush.bf16.msra.mxu0 0
      %938 = vmatpush.bf16.msra.mxu0 %v925
      %939 = vmatpush.bf16.msra.mxu0 %v924
      %940 = vmatmul.bf16.gmra.mxu0 %v930
      %v941 = vpop.f32.mrf.mxu0
      %v942 = vadd.f32 %v915, %v941
      %v943 = vpop.f32.mrf.mxu0
      %944 = vdwg.mxu0
      %s945 = scalar_lea.vmem %s852, 16
      %v946 = vld [vmem:[%s945] sm:$0xf]
      %v947 = vld [vmem:[%s945 + $0x4] sm:$0xf]
      %v948 = vld [vmem:[%s945 + $0x8] sm:$0xf]
      %v949 = vld [vmem:[%s945 + $0xc] sm:$0xf]
      %v950 = vld [vmem:[%s856 + $0x1] sm:$0x1]
      %v951 = vperm.slane %v950, 0
      %v960 = vunpack.c.l.b16 %v899
      %v961 = vunpack.c.l.b16 %v900
      %v962 = vunpack.c.l.b16 %v901
      %v963 = vunpack.c.l.b16 %v902
      %v964 = vunpack.c.l.b16 %v903
      %v965 = vunpack.c.l.b16 %v904
      %v966 = vunpack.c.l.b16 %v905
      %v967 = vunpack.c.l.b16 %v906
      %v968 = vpack.c.b16 %v961, %v960
      %v969 = vpack.c.b16 %v963, %v962
      %v970 = vpack.c.b16 %v965, %v964
      %v971 = vpack.c.b16 %v967, %v966
      %v976 = vunpack.c.l.b16 %v946
      %v977 = vunpack.c.l.b16 %v947
      %v978 = vunpack.c.l.b16 %v948
      %v979 = vunpack.c.l.b16 %v949
      %v980 = vpack.c.b16 %v977, %v976
      %v981 = vpack.c.b16 %v979, %v978
      %v985 = vsel %vm928, %v968, 0
      %v988 = vsel %vm928, %v969, 0
      %v991 = vsel %vm928, %v970, 0
      %v994 = vsel %vm928, %v971, 0
      %996 = vmatpush.bf16.msra.mxu0 0
      %997 = vmatpush.bf16.msra.mxu0 0
      %998 = vmatpush.bf16.msra.mxu0 0
      %999 = vmatpush.bf16.msra.mxu0 0
      %1000 = vmatpush.bf16.msra.mxu0 0
      %1001 = vmatpush.bf16.msra.mxu0 0
      %1002 = vmatpush.bf16.msra.mxu0 %v981
      %1003 = vmatpush.bf16.msra.mxu0 %v980
      %1004 = vmatmul.bf16.gmra.mxu0 %v985
      %v1005 = vpop.f32.mrf.mxu0
      %v1006 = vadd.f32 %v951, %v1005
      %v1007 = vpop.f32.mrf.mxu0
      %v1008 = vadd.f32 %v951, %v1007
      %1009 = vmatmul.bf16.gmra.mxu0 %v988
      %v1010 = vpop.f32.mrf.mxu0
      %v1011 = vadd.f32 %v951, %v1010
      %v1012 = vpop.f32.mrf.mxu0
      %v1013 = vadd.f32 %v951, %v1012
      %1014 = vmatmul.bf16.gmra.mxu0 %v991
      %v1015 = vpop.f32.mrf.mxu0
      %v1016 = vadd.f32 %v951, %v1015
      %v1017 = vpop.f32.mrf.mxu0
      %v1018 = vadd.f32 %v951, %v1017
      %1019 = vmatmul.bf16.gmra.mxu0 %v994
      %v1020 = vpop.f32.mrf.mxu0
      %v1021 = vadd.f32 %v951, %v1020
      %v1022 = vpop.f32.mrf.mxu0
      %v1023 = vadd.f32 %v951, %v1022
      %1024 = vdwg.mxu0
      %s1025 = scalar_lea.vmem %s852, 32
      %v1026 = vld [vmem:[%s1025] sm:$0xf]
      %v1027 = vld [vmem:[%s1025 + $0x4] sm:$0xf]
      %v1028 = vld [vmem:[%s1025 + $0x8] sm:$0xf]
      %v1029 = vld [vmem:[%s1025 + $0xc] sm:$0xf]
      %v1030 = vld [vmem:[%s856 + $0x2] sm:$0x1]
      %v1031 = vperm.slane %v1030, 0
      %v1040 = vunpack.c.l.b16 %v891
      %v1041 = vunpack.c.l.b16 %v892
      %v1042 = vunpack.c.l.b16 %v893
      %v1043 = vunpack.c.l.b16 %v894
      %v1044 = vunpack.c.l.b16 %v895
      %v1045 = vunpack.c.l.b16 %v896
      %v1046 = vunpack.c.l.b16 %v897
      %v1047 = vunpack.c.l.b16 %v898
      %v1048 = vpack.c.b16 %v1041, %v1040
      %v1049 = vpack.c.b16 %v1043, %v1042
      %v1050 = vpack.c.b16 %v1045, %v1044
      %v1051 = vpack.c.b16 %v1047, %v1046
      %v1056 = vunpack.c.l.b16 %v1026
      %v1057 = vunpack.c.l.b16 %v1027
      %v1058 = vunpack.c.l.b16 %v1028
      %v1059 = vunpack.c.l.b16 %v1029
      %v1060 = vpack.c.b16 %v1057, %v1056
      %v1061 = vpack.c.b16 %v1059, %v1058
      %v1065 = vsel %vm928, %v1048, 0
      %v1068 = vsel %vm928, %v1049, 0
      %v1071 = vsel %vm928, %v1050, 0
      %v1074 = vsel %vm928, %v1051, 0
      %1076 = vmatpush.bf16.msra.mxu0 0
      %1077 = vmatpush.bf16.msra.mxu0 0
      %1078 = vmatpush.bf16.msra.mxu0 0
      %1079 = vmatpush.bf16.msra.mxu0 0
      %1080 = vmatpush.bf16.msra.mxu0 0
      %1081 = vmatpush.bf16.msra.mxu0 0
      %1082 = vmatpush.bf16.msra.mxu0 %v1061
      %1083 = vmatpush.bf16.msra.mxu0 %v1060
      %1084 = vmatmul.bf16.gmra.mxu0 %v1065
      %v1085 = vpop.f32.mrf.mxu0
      %v1086 = vadd.f32 %v1031, %v1085
      %v1087 = vpop.f32.mrf.mxu0
      %v1088 = vadd.f32 %v1031, %v1087
      %1089 = vmatmul.bf16.gmra.mxu0 %v1068
      %v1090 = vpop.f32.mrf.mxu0
      %v1091 = vadd.f32 %v1031, %v1090
      %v1092 = vpop.f32.mrf.mxu0
      %v1093 = vadd.f32 %v1031, %v1092
      %1094 = vmatmul.bf16.gmra.mxu0 %v1071
      %v1095 = vpop.f32.mrf.mxu0
      %v1096 = vadd.f32 %v1031, %v1095
      %v1097 = vpop.f32.mrf.mxu0
      %v1098 = vadd.f32 %v1031, %v1097
      %1099 = vmatmul.bf16.gmra.mxu0 %v1074
      %v1100 = vpop.f32.mrf.mxu0
      %v1101 = vadd.f32 %v1031, %v1100
      %v1102 = vpop.f32.mrf.mxu0
      %v1103 = vadd.f32 %v1031, %v1102
      %1104 = vdwg.mxu0
      %v1105 = vpack.c.bf16 %v942, %v942
      %v1106 = vpack.c.bf16 %v1006, %v1006
      %v1107 = vpack.c.bf16 %v1008, %v1008
      %v1108 = vpack.c.bf16 %v1011, %v1011
      %v1109 = vpack.c.bf16 %v1013, %v1013
      %v1110 = vpack.c.bf16 %v1016, %v1016
      %v1111 = vpack.c.bf16 %v1018, %v1018
      %v1112 = vpack.c.bf16 %v1021, %v1021
      %v1113 = vpack.c.bf16 %v1023, %v1023
      %v1114 = vpack.c.bf16 %v1086, %v1086
      %v1115 = vpack.c.bf16 %v1088, %v1088
      %v1116 = vpack.c.bf16 %v1091, %v1091
      %v1117 = vpack.c.bf16 %v1093, %v1093
      %v1118 = vpack.c.bf16 %v1096, %v1096
      %v1119 = vpack.c.bf16 %v1098, %v1098
      %v1120 = vpack.c.bf16 %v1101, %v1101
      %v1121 = vpack.c.bf16 %v1103, %v1103
      %v1130 = vunpack.c.l.b16 %v1106
      %v1131 = vunpack.c.l.b16 %v1107
      %v1132 = vunpack.c.l.b16 %v1108
      %v1133 = vunpack.c.l.b16 %v1109
      %v1134 = vunpack.c.l.b16 %v1110
      %v1135 = vunpack.c.l.b16 %v1111
      %v1136 = vunpack.c.l.b16 %v1112
      %v1137 = vunpack.c.l.b16 %v1113
      %v1138 = vpack.c.b16 %v1131, %v1130
      %v1139 = vpack.c.b16 %v1133, %v1132
      %v1140 = vpack.c.b16 %v1135, %v1134
      %v1141 = vpack.c.b16 %v1137, %v1136
      %vm1142 = vcmask 64512
      %v1144 = vsel %vm1142, %v1105, 0
      %v1147 = vsel %vm1142, %v1138, 0
      %v1150 = vsel %vm1142, %v1139, 0
      %v1153 = vsel %vm1142, %v1140, 0
      %v1156 = vsel %vm1142, %v1141, 0
      %1158 = vmatpush.bf16.xpose.msra.mxu0 0
      %1159 = vmatpush.bf16.xpose.msra.mxu0 0
      %1160 = vmatpush.bf16.xpose.msra.mxu0 0
      %1161 = vmatpush.bf16.xpose.msra.mxu0 0
      %1162 = vmatpush.bf16.xpose.msra.mxu0 %v1156
      %1163 = vmatpush.bf16.xpose.msra.mxu0 %v1153
      %1164 = vmatpush.bf16.xpose.msra.mxu0 %v1150
      %1165 = vmatpush.bf16.xpose.msra.mxu0 %v1147
      %1166 = vmatmul.bf16.gmra.mxu0 %v1144
      %v1167 = vpop.f32.mrf.mxu0
      %v1168 = vadd.f32 0.0, %v1167
      %v1169 = vpop.f32.mrf.mxu0
      %1170 = vdwg.mxu0
      %v1171 = vmul.f32 %v1168, 0.35355338
      %v1173 = vperm.slane %v907, 0
      %v1175 = vadd.f32 %v1171, %v1173
      %vm1176 = vcmask 523264
      %v1177 = vsel %vm1176, %v1175, -inf
      %1178 = vmax.xlane.f32.xlu0 %v1177
      %v1179 = vpop.xlane.xlu0 %1178
      %v1180 = vsub.f32 %v1175, %v1179
      %v1181 = vmul.f32 %v1180, 1.442695
      %v1182 = vpow.pop %v1181
      %v1183 = vsel %vm1176, %v1182, 0.0
      %1184 = vadd.xlane.f32.xlu0 %v1183
      %v1185 = vpop.xlane.xlu0 %1184
      %v1186 = vrcp.pop %v1185
      %v1187 = vmul.f32 %v1182, %v1186
      %v1188 = vpack.c.bf16 %v1187, %v1187
      %v1197 = vunpack.c.l.b16 %v1114
      %v1198 = vunpack.c.l.b16 %v1115
      %v1199 = vunpack.c.l.b16 %v1116
      %v1200 = vunpack.c.l.b16 %v1117
      %v1201 = vunpack.c.l.b16 %v1118
      %v1202 = vunpack.c.l.b16 %v1119
      %v1203 = vunpack.c.l.b16 %v1120
      %v1204 = vunpack.c.l.b16 %v1121
      %v1205 = vpack.c.b16 %v1198, %v1197
      %v1206 = vpack.c.b16 %v1200, %v1199
      %v1207 = vpack.c.b16 %v1202, %v1201
      %v1208 = vpack.c.b16 %v1204, %v1203
      %v1214 = vsel %vm1176, %v1188, 0
      %1216 = vmatpush.bf16.msra.mxu0 0
      %1217 = vmatpush.bf16.msra.mxu0 0
      %1218 = vmatpush.bf16.msra.mxu0 0
      %1219 = vmatpush.bf16.msra.mxu0 0
      %1220 = vmatpush.bf16.msra.mxu0 %v1208
      %1221 = vmatpush.bf16.msra.mxu0 %v1207
      %1222 = vmatpush.bf16.msra.mxu0 %v1206
      %1223 = vmatpush.bf16.msra.mxu0 %v1205
      %1224 = vmatmul.bf16.gmra.mxu0 %v1214
      %v1225 = vpop.f32.mrf.mxu0
      %v1226 = vadd.f32 0.0, %v1225
      %v1227 = vpop.f32.mrf.mxu0
      %1228 = vdwg.mxu0
      %v1230 = vunpack.c.l.b16 %v1105
      %v1231 = vpack.c.b16 %v1230, %v1230
      %1232 = vrot.lane.b32.xlu0 %v1231, 120
      %v1233 = vpop.permute.xlu0 %1232
      %1234 = vrot.lane.b32.xlu0 %v1138, 120
      %v1235 = vpop.permute.xlu0 %1234
      %1236 = vrot.lane.b32.xlu0 %v1139, 120
      %v1237 = vpop.permute.xlu0 %1236
      %1238 = vrot.lane.b32.xlu0 %v1140, 120
      %v1239 = vpop.permute.xlu0 %1238
      %1240 = vrot.lane.b32.xlu0 %v1141, 120
      %v1241 = vpop.permute.xlu0 %1240
      %v1243 = vsel %vm1142, %v1233, 0
      %v1246 = vsel %vm1142, %v1235, 0
      %v1249 = vsel %vm1142, %v1237, 0
      %v1252 = vsel %vm1142, %v1239, 0
      %v1255 = vsel %vm1142, %v1241, 0
      %1257 = vmatpush.bf16.xpose.msra.mxu0 0
      %1258 = vmatpush.bf16.xpose.msra.mxu0 0
      %1259 = vmatpush.bf16.xpose.msra.mxu0 0
      %1260 = vmatpush.bf16.xpose.msra.mxu0 0
      %1261 = vmatpush.bf16.xpose.msra.mxu0 %v1255
      %1262 = vmatpush.bf16.xpose.msra.mxu0 %v1252
      %1263 = vmatpush.bf16.xpose.msra.mxu0 %v1249
      %1264 = vmatpush.bf16.xpose.msra.mxu0 %v1246
      %1265 = vmatmul.bf16.gmra.mxu0 %v1243
      %v1266 = vpop.f32.mrf.mxu0
      %v1267 = vadd.f32 0.0, %v1266
      %v1268 = vpop.f32.mrf.mxu0
      %1269 = vdwg.mxu0
      %v1270 = vmul.f32 %v1267, 0.35355338
      %v1271 = vadd.f32 %v1270, %v1173
      %v1272 = vsel %vm1176, %v1271, -inf
      %1273 = vmax.xlane.f32.xlu0 %v1272
      %v1274 = vpop.xlane.xlu0 %1273
      %v1275 = vsub.f32 %v1271, %v1274
      %v1276 = vmul.f32 %v1275, 1.442695
      %v1277 = vpow.pop %v1276
      %v1278 = vsel %vm1176, %v1277, 0.0
      %1279 = vadd.xlane.f32.xlu0 %v1278
      %v1280 = vpop.xlane.xlu0 %1279
      %v1281 = vrcp.pop %v1280
      %v1282 = vmul.f32 %v1277, %v1281
      %v1283 = vpack.c.bf16 %v1282, %v1282
      %1284 = vrot.lane.b32.xlu0 %v1205, 120
      %v1285 = vpop.permute.xlu0 %1284
      %1286 = vrot.lane.b32.xlu0 %v1206, 120
      %v1287 = vpop.permute.xlu0 %1286
      %1288 = vrot.lane.b32.xlu0 %v1207, 120
      %v1289 = vpop.permute.xlu0 %1288
      %1290 = vrot.lane.b32.xlu0 %v1208, 120
      %v1291 = vpop.permute.xlu0 %1290
      %v1297 = vsel %vm1176, %v1283, 0
      %1299 = vmatpush.bf16.msra.mxu0 0
      %1300 = vmatpush.bf16.msra.mxu0 0
      %1301 = vmatpush.bf16.msra.mxu0 0
      %1302 = vmatpush.bf16.msra.mxu0 0
      %1303 = vmatpush.bf16.msra.mxu0 %v1291
      %1304 = vmatpush.bf16.msra.mxu0 %v1289
      %1305 = vmatpush.bf16.msra.mxu0 %v1287
      %1306 = vmatpush.bf16.msra.mxu0 %v1285
      %1307 = vmatmul.bf16.gmra.mxu0 %v1297
      %v1308 = vpop.f32.mrf.mxu0
      %v1309 = vadd.f32 0.0, %v1308
      %v1310 = vpop.f32.mrf.mxu0
      %1311 = vdwg.mxu0
      %1312 = vrot.lane.b32.xlu0 %v1231, 112
      %v1313 = vpop.permute.xlu0 %1312
      %1314 = vrot.lane.b32.xlu0 %v1138, 112
      %v1315 = vpop.permute.xlu0 %1314
      %1316 = vrot.lane.b32.xlu0 %v1139, 112
      %v1317 = vpop.permute.xlu0 %1316
      %1318 = vrot.lane.b32.xlu0 %v1140, 112
      %v1319 = vpop.permute.xlu0 %1318
      %1320 = vrot.lane.b32.xlu0 %v1141, 112
      %v1321 = vpop.permute.xlu0 %1320
      %v1323 = vsel %vm1142, %v1313, 0
      %v1326 = vsel %vm1142, %v1315, 0
      %v1329 = vsel %vm1142, %v1317, 0
      %v1332 = vsel %vm1142, %v1319, 0
      %v1335 = vsel %vm1142, %v1321, 0
      %1337 = vmatpush.bf16.xpose.msra.mxu0 0
      %1338 = vmatpush.bf16.xpose.msra.mxu0 0
      %1339 = vmatpush.bf16.xpose.msra.mxu0 0
      %1340 = vmatpush.bf16.xpose.msra.mxu0 0
      %1341 = vmatpush.bf16.xpose.msra.mxu0 %v1335
      %1342 = vmatpush.bf16.xpose.msra.mxu0 %v1332
      %1343 = vmatpush.bf16.xpose.msra.mxu0 %v1329
      %1344 = vmatpush.bf16.xpose.msra.mxu0 %v1326
      %1345 = vmatmul.bf16.gmra.mxu0 %v1323
      %v1346 = vpop.f32.mrf.mxu0
      %v1347 = vadd.f32 0.0, %v1346
      %v1348 = vpop.f32.mrf.mxu0
      %1349 = vdwg.mxu0
      %v1350 = vmul.f32 %v1347, 0.35355338
      %v1351 = vadd.f32 %v1350, %v1173
      %v1352 = vsel %vm1176, %v1351, -inf
      %1353 = vmax.xlane.f32.xlu0 %v1352
      %v1354 = vpop.xlane.xlu0 %1353
      %v1355 = vsub.f32 %v1351, %v1354
      %v1356 = vmul.f32 %v1355, 1.442695
      %v1357 = vpow.pop %v1356
      %v1358 = vsel %vm1176, %v1357, 0.0
      %1359 = vadd.xlane.f32.xlu0 %v1358
      %v1360 = vpop.xlane.xlu0 %1359
      %v1361 = vrcp.pop %v1360
      %v1362 = vmul.f32 %v1357, %v1361
      %v1363 = vpack.c.bf16 %v1362, %v1362
      %1364 = vrot.lane.b32.xlu0 %v1205, 112
      %v1365 = vpop.permute.xlu0 %1364
      %1366 = vrot.lane.b32.xlu0 %v1206, 112
      %v1367 = vpop.permute.xlu0 %1366
      %1368 = vrot.lane.b32.xlu0 %v1207, 112
      %v1369 = vpop.permute.xlu0 %1368
      %1370 = vrot.lane.b32.xlu0 %v1208, 112
      %v1371 = vpop.permute.xlu0 %1370
      %v1377 = vsel %vm1176, %v1363, 0
      %1379 = vmatpush.bf16.msra.mxu0 0
      %1380 = vmatpush.bf16.msra.mxu0 0
      %1381 = vmatpush.bf16.msra.mxu0 0
      %1382 = vmatpush.bf16.msra.mxu0 0
      %1383 = vmatpush.bf16.msra.mxu0 %v1371
      %1384 = vmatpush.bf16.msra.mxu0 %v1369
      %1385 = vmatpush.bf16.msra.mxu0 %v1367
      %1386 = vmatpush.bf16.msra.mxu0 %v1365
      %1387 = vmatmul.bf16.gmra.mxu0 %v1377
      %v1388 = vpop.f32.mrf.mxu0
      %v1389 = vadd.f32 0.0, %v1388
      %v1390 = vpop.f32.mrf.mxu0
      %1391 = vdwg.mxu0
      %1392 = vrot.lane.b32.xlu0 %v1231, 104
      %v1393 = vpop.permute.xlu0 %1392
      %1394 = vrot.lane.b32.xlu0 %v1138, 104
      %v1395 = vpop.permute.xlu0 %1394
      %1396 = vrot.lane.b32.xlu0 %v1139, 104
      %v1397 = vpop.permute.xlu0 %1396
      %1398 = vrot.lane.b32.xlu0 %v1140, 104
      %v1399 = vpop.permute.xlu0 %1398
      %1400 = vrot.lane.b32.xlu0 %v1141, 104
      %v1401 = vpop.permute.xlu0 %1400
      %v1403 = vsel %vm1142, %v1393, 0
      %v1406 = vsel %vm1142, %v1395, 0
      %v1409 = vsel %vm1142, %v1397, 0
      %v1412 = vsel %vm1142, %v1399, 0
      %v1415 = vsel %vm1142, %v1401, 0
      %1417 = vmatpush.bf16.xpose.msra.mxu0 0
      %1418 = vmatpush.bf16.xpose.msra.mxu0 0
      %1419 = vmatpush.bf16.xpose.msra.mxu0 0
      %1420 = vmatpush.bf16.xpose.msra.mxu0 0
      %1421 = vmatpush.bf16.xpose.msra.mxu0 %v1415
      %1422 = vmatpush.bf16.xpose.msra.mxu0 %v1412
      %1423 = vmatpush.bf16.xpose.msra.mxu0 %v1409
      %1424 = vmatpush.bf16.xpose.msra.mxu0 %v1406
      %1425 = vmatmul.bf16.gmra.mxu0 %v1403
      %v1426 = vpop.f32.mrf.mxu0
      %v1427 = vadd.f32 0.0, %v1426
      %v1428 = vpop.f32.mrf.mxu0
      %1429 = vdwg.mxu0
      %v1430 = vmul.f32 %v1427, 0.35355338
      %v1431 = vadd.f32 %v1430, %v1173
      %v1432 = vsel %vm1176, %v1431, -inf
      %1433 = vmax.xlane.f32.xlu0 %v1432
      %v1434 = vpop.xlane.xlu0 %1433
      %v1435 = vsub.f32 %v1431, %v1434
      %v1436 = vmul.f32 %v1435, 1.442695
      %v1437 = vpow.pop %v1436
      %v1438 = vsel %vm1176, %v1437, 0.0
      %1439 = vadd.xlane.f32.xlu0 %v1438
      %v1440 = vpop.xlane.xlu0 %1439
      %v1441 = vrcp.pop %v1440
      %v1442 = vmul.f32 %v1437, %v1441
      %v1443 = vpack.c.bf16 %v1442, %v1442
      %1444 = vrot.lane.b32.xlu0 %v1205, 104
      %v1445 = vpop.permute.xlu0 %1444
      %1446 = vrot.lane.b32.xlu0 %v1206, 104
      %v1447 = vpop.permute.xlu0 %1446
      %1448 = vrot.lane.b32.xlu0 %v1207, 104
      %v1449 = vpop.permute.xlu0 %1448
      %1450 = vrot.lane.b32.xlu0 %v1208, 104
      %v1451 = vpop.permute.xlu0 %1450
      %v1457 = vsel %vm1176, %v1443, 0
      %1459 = vmatpush.bf16.msra.mxu0 0
      %1460 = vmatpush.bf16.msra.mxu0 0
      %1461 = vmatpush.bf16.msra.mxu0 0
      %1462 = vmatpush.bf16.msra.mxu0 0
      %1463 = vmatpush.bf16.msra.mxu0 %v1451
      %1464 = vmatpush.bf16.msra.mxu0 %v1449
      %1465 = vmatpush.bf16.msra.mxu0 %v1447
      %1466 = vmatpush.bf16.msra.mxu0 %v1445
      %1467 = vmatmul.bf16.gmra.mxu0 %v1457
      %v1468 = vpop.f32.mrf.mxu0
      %v1469 = vadd.f32 0.0, %v1468
      %v1470 = vpop.f32.mrf.mxu0
      %1471 = vdwg.mxu0
      %1473 = vrot.lane.b32.xlu0 %v1309, 8
      %v1474 = vpop.permute.xlu0 %1473
      %1477 = vrot.lane.b32.xlu0 %v1389, 16
      %v1478 = vpop.permute.xlu0 %1477
      %1481 = vrot.lane.b32.xlu0 %v1469, 24
      %v1482 = vpop.permute.xlu0 %1481
      %v1484 = vsel %vm1142, %v1226, %v1474
      %vm1485 = vcmask 130048
      %v1486 = vsel %vm1485, %v1484, %v1478
      %vm1487 = vcmask 195584
      %v1488 = vsel %vm1487, %v1486, %v1482
      %v1489 = vpack.c.bf16 %v1488, %v1488
      %s1490 = scalar_lea.vmem %s852, 48
      %v1491 = vld [vmem:[%s1490] sm:$0xf]
      %v1492 = vld [vmem:[%s1490 + $0x4] sm:$0xf]
      %v1493 = vld [vmem:[%s1490 + $0x8] sm:$0xf]
      %v1494 = vld [vmem:[%s1490 + $0xc] sm:$0xf]
      %v1495 = vld [vmem:[%s856 + $0x3] sm:$0x1]
      %v1496 = vperm.slane %v1495, 0
      %v1501 = vunpack.c.l.b16 %v1491
      %v1502 = vunpack.c.l.b16 %v1492
      %v1503 = vunpack.c.l.b16 %v1493
      %v1504 = vunpack.c.l.b16 %v1494
      %v1505 = vpack.c.b16 %v1502, %v1501
      %v1506 = vpack.c.b16 %v1504, %v1503
      %v1510 = vsel %vm928, %v1489, 0
      %1512 = vmatpush.bf16.msra.mxu0 0
      %1513 = vmatpush.bf16.msra.mxu0 0
      %1514 = vmatpush.bf16.msra.mxu0 0
      %1515 = vmatpush.bf16.msra.mxu0 0
      %1516 = vmatpush.bf16.msra.mxu0 0
      %1517 = vmatpush.bf16.msra.mxu0 0
      %1518 = vmatpush.bf16.msra.mxu0 %v1506
      %1519 = vmatpush.bf16.msra.mxu0 %v1505
      %1520 = vmatmul.bf16.gmra.mxu0 %v1510
      %v1521 = vpop.f32.mrf.mxu0
      %v1522 = vadd.f32 %v1496, %v1521
      %v1523 = vpop.f32.mrf.mxu0
      %1524 = vdwg.mxu0
      %v1525 = vadd.f32 %v889, %v1522
      %v1526 = vsel %vm928, %v1525, 0.0
      %1527 = vadd.xlane.f32.xlu0 %v1526
      %v1528 = vpop.xlane.xlu0 %1527
      %v1529 = vrcp.pop 32.0
      %v1530 = vmul.f32 32.0, %v1529
      %v1531 = vsub.f32 1.0, %v1530
      %v1532 = vmul.f32 %v1529, %v1531
      %v1533 = vadd.f32 %v1529, %v1532
      %vm1534 = vweird.f32 %v1529
      %v1535 = vsel %vm1534, %v1529, %v1533
      %v1536 = vmul.f32 %v1528, %v1535
      %v1537 = vsub.f32 %v1525, %v1536
      %v1538 = vmul.f32 %v1537, %v1537
      %v1539 = vsel %vm928, %v1538, 0.0
      %1540 = vadd.xlane.f32.xlu0 %v1539
      %v1541 = vpop.xlane.xlu0 %1540
      %v1542 = vmul.f32 %v1541, %v1535
      %v1543 = vadd.f32 %v1542, 1e-05
      %v1544 = vrsqrt.pop %v1543
      %v1545 = vmul.f32 %v1544, %v1543
      %v1546 = vmul.f32 %v1545, %v1544
      %v1547 = vmul.f32 0.5, %v1546
      %v1548 = vsub.f32 1.5, %v1547
      %v1549 = vmul.f32 %v1544, %v1548
      %vm1550 = vweird.f32 %v1543
      %vm1551 = vweird.f32 %v1544
      %vm1552 = vmor %vm1550, %vm1551
      %v1553 = vsel %vm1552, %v1544, %v1549
      %v1554 = vmul.f32 %v1537, %v1553
      %v1555 = vld [vmem:[%s860] sm:$0x1]
      %v1556 = vperm.slane %v1555, 0
      %v1557 = vmul.f32 %v1554, %v1556
      %v1558 = vld [vmem:[%s860 + $0x1] sm:$0x1]
      %v1559 = vperm.slane %v1558, 0
      %v1560 = vadd.f32 %v1557, %v1559
      %v1561 = vadd.f32 %v1560, %v890
      %v1562 = vpack.c.bf16 %v1561, %v1561
      %s1563 = scalar_lea.vmem %s852, 64
      %v1564 = vld [vmem:[%s1563] sm:$0xf]
      %v1565 = vld [vmem:[%s1563 + $0x4] sm:$0xf]
      %v1566 = vld [vmem:[%s1563 + $0x8] sm:$0xf]
      %v1567 = vld [vmem:[%s1563 + $0xc] sm:$0xf]
      %v1568 = vld [vmem:[%s856 + $0x4] sm:$0x1]
      %v1569 = vperm.slane %v1568, 0
      %v1574 = vunpack.c.l.b16 %v1564
      %v1575 = vunpack.c.l.b16 %v1565
      %v1576 = vunpack.c.l.b16 %v1566
      %v1577 = vunpack.c.l.b16 %v1567
      %v1578 = vpack.c.b16 %v1575, %v1574
      %v1579 = vpack.c.b16 %v1577, %v1576
      %v1583 = vsel %vm928, %v1562, 0
      %1585 = vmatpush.bf16.msra.mxu0 0
      %1586 = vmatpush.bf16.msra.mxu0 0
      %1587 = vmatpush.bf16.msra.mxu0 0
      %1588 = vmatpush.bf16.msra.mxu0 0
      %1589 = vmatpush.bf16.msra.mxu0 0
      %1590 = vmatpush.bf16.msra.mxu0 0
      %1591 = vmatpush.bf16.msra.mxu0 %v1579
      %1592 = vmatpush.bf16.msra.mxu0 %v1578
      %1593 = vmatmul.bf16.gmra.mxu0 %v1583
      %v1594 = vpop.f32.mrf.mxu0
      %v1595 = vadd.f32 %v1569, %v1594
      %v1596 = vpop.f32.mrf.mxu0
      %1597 = vdwg.mxu0
      %s1598 = scalar_lea.vmem %s852, 80
      %v1599 = vld [vmem:[%s1598] sm:$0xf]
      %v1600 = vld [vmem:[%s1598 + $0x4] sm:$0xf]
      %v1601 = vld [vmem:[%s1598 + $0x8] sm:$0xf]
      %v1602 = vld [vmem:[%s1598 + $0xc] sm:$0xf]
      %v1603 = vld [vmem:[%s856 + $0x5] sm:$0x1]
      %v1604 = vperm.slane %v1603, 0
      %v1609 = vunpack.c.l.b16 %v1599
      %v1610 = vunpack.c.l.b16 %v1600
      %v1611 = vunpack.c.l.b16 %v1601
      %v1612 = vunpack.c.l.b16 %v1602
      %v1613 = vpack.c.b16 %v1610, %v1609
      %v1614 = vpack.c.b16 %v1612, %v1611
      %1617 = vmatpush.bf16.msra.mxu0 0
      %1618 = vmatpush.bf16.msra.mxu0 0
      %1619 = vmatpush.bf16.msra.mxu0 0
      %1620 = vmatpush.bf16.msra.mxu0 0
      %1621 = vmatpush.bf16.msra.mxu0 0
      %1622 = vmatpush.bf16.msra.mxu0 0
      %1623 = vmatpush.bf16.msra.mxu0 %v1614
      %1624 = vmatpush.bf16.msra.mxu0 %v1613
      %1625 = vmatmul.bf16.gmra.mxu0 %v1583
      %v1626 = vpop.f32.mrf.mxu0
      %v1627 = vadd.f32 %v1604, %v1626
      %v1628 = vpop.f32.mrf.mxu0
      %1629 = vdwg.mxu0
      %v1630 = vpack.c.bf16 %v1560, %v1560
      %s1631 = scalar_lea.vmem %s852, 96
      %v1632 = vld [vmem:[%s1631] sm:$0xf]
      %v1633 = vld [vmem:[%s1631 + $0x4] sm:$0xf]
      %v1634 = vld [vmem:[%s1631 + $0x8] sm:$0xf]
      %v1635 = vld [vmem:[%s1631 + $0xc] sm:$0xf]
      %v1636 = vld [vmem:[%s856 + $0x6] sm:$0x1]
      %v1637 = vperm.slane %v1636, 0
      %v1642 = vunpack.c.l.b16 %v1632
      %v1643 = vunpack.c.l.b16 %v1633
      %v1644 = vunpack.c.l.b16 %v1634
      %v1645 = vunpack.c.l.b16 %v1635
      %v1646 = vpack.c.b16 %v1643, %v1642
      %v1647 = vpack.c.b16 %v1645, %v1644
      %v1651 = vsel %vm928, %v1630, 0
      %1653 = vmatpush.bf16.msra.mxu0 0
      %1654 = vmatpush.bf16.msra.mxu0 0
      %1655 = vmatpush.bf16.msra.mxu0 0
      %1656 = vmatpush.bf16.msra.mxu0 0
      %1657 = vmatpush.bf16.msra.mxu0 0
      %1658 = vmatpush.bf16.msra.mxu0 0
      %1659 = vmatpush.bf16.msra.mxu0 %v1647
      %1660 = vmatpush.bf16.msra.mxu0 %v1646
      %1661 = vmatmul.bf16.gmra.mxu0 %v1651
      %v1662 = vpop.f32.mrf.mxu0
      %v1663 = vadd.f32 %v1637, %v1662
      %v1664 = vpop.f32.mrf.mxu0
      %1665 = vdwg.mxu0
      %v1666 = vpack.c.bf16 %v1595, %v1595
      %v1667 = vpack.c.bf16 %v1627, %v1627
      %v1668 = vpack.c.bf16 %v1663, %v1663
      %v1670 = vsel %vm1142, %v1666, 0
      %v1673 = vsel %vm1142, %v1667, 0
      %1675 = vmatpush.bf16.xpose.msra.mxu0 0
      %1676 = vmatpush.bf16.xpose.msra.mxu0 0
      %1677 = vmatpush.bf16.xpose.msra.mxu0 0
      %1678 = vmatpush.bf16.xpose.msra.mxu0 0
      %1679 = vmatpush.bf16.xpose.msra.mxu0 0
      %1680 = vmatpush.bf16.xpose.msra.mxu0 0
      %1681 = vmatpush.bf16.xpose.msra.mxu0 0
      %1682 = vmatpush.bf16.xpose.msra.mxu0 %v1673
      %1683 = vmatmul.bf16.gmra.mxu0 %v1670
      %v1684 = vpop.f32.mrf.mxu0
      %v1685 = vadd.f32 0.0, %v1684
      %v1686 = vpop.f32.mrf.mxu0
      %1687 = vdwg.mxu0
      %v1688 = vmul.f32 %v1685, 0.35355338
      %v1689 = vsel %vm1142, %v1688, -inf
      %1690 = vmax.xlane.f32.xlu0 %v1689
      %v1691 = vpop.xlane.xlu0 %1690
      %v1692 = vsub.f32 %v1688, %v1691
      %v1693 = vmul.f32 %v1692, 1.442695
      %v1694 = vpow.pop %v1693
      %v1695 = vsel %vm1142, %v1694, 0.0
      %1696 = vadd.xlane.f32.xlu0 %v1695
      %v1697 = vpop.xlane.xlu0 %1696
      %v1698 = vrcp.pop %v1697
      %v1699 = vmul.f32 %v1694, %v1698
      %v1700 = vpack.c.bf16 %v1699, %v1699
      %v1702 = vsel %vm1142, %v1700, 0
      %vm1704 = vcmask 1043456
      %v1706 = vsel %vm1704, %v1668, 0
      %1708 = vmatpush.bf16.msra.mxu0 0
      %1709 = vmatpush.bf16.msra.mxu0 0
      %1710 = vmatpush.bf16.msra.mxu0 0
      %1711 = vmatpush.bf16.msra.mxu0 0
      %1712 = vmatpush.bf16.msra.mxu0 0
      %1713 = vmatpush.bf16.msra.mxu0 0
      %1714 = vmatpush.bf16.msra.mxu0 0
      %1715 = vmatpush.bf16.msra.mxu0 %v1706
      %1716 = vmatmul.bf16.gmra.mxu0 %v1702
      %v1717 = vpop.f32.mrf.mxu0
      %v1718 = vadd.f32 0.0, %v1717
      %v1719 = vpop.f32.mrf.mxu0
      %1720 = vdwg.mxu0
      %v1722 = vunpack.c.l.b16 %v1666
      %v1723 = vpack.c.b16 %v1722, %v1722
      %1724 = vrot.lane.b32.xlu0 %v1723, 120
      %v1725 = vpop.permute.xlu0 %1724
      %v1727 = vunpack.c.l.b16 %v1667
      %v1728 = vpack.c.b16 %v1727, %v1727
      %1729 = vrot.lane.b32.xlu0 %v1728, 120
      %v1730 = vpop.permute.xlu0 %1729
      %v1732 = vsel %vm1142, %v1725, 0
      %v1735 = vsel %vm1142, %v1730, 0
      %1737 = vmatpush.bf16.xpose.msra.mxu0 0
      %1738 = vmatpush.bf16.xpose.msra.mxu0 0
      %1739 = vmatpush.bf16.xpose.msra.mxu0 0
      %1740 = vmatpush.bf16.xpose.msra.mxu0 0
      %1741 = vmatpush.bf16.xpose.msra.mxu0 0
      %1742 = vmatpush.bf16.xpose.msra.mxu0 0
      %1743 = vmatpush.bf16.xpose.msra.mxu0 0
      %1744 = vmatpush.bf16.xpose.msra.mxu0 %v1735
      %1745 = vmatmul.bf16.gmra.mxu0 %v1732
      %v1746 = vpop.f32.mrf.mxu0
      %v1747 = vadd.f32 0.0, %v1746
      %v1748 = vpop.f32.mrf.mxu0
      %1749 = vdwg.mxu0
      %v1750 = vmul.f32 %v1747, 0.35355338
      %v1751 = vsel %vm1142, %v1750, -inf
      %1752 = vmax.xlane.f32.xlu0 %v1751
      %v1753 = vpop.xlane.xlu0 %1752
      %v1754 = vsub.f32 %v1750, %v1753
      %v1755 = vmul.f32 %v1754, 1.442695
      %v1756 = vpow.pop %v1755
      %v1757 = vsel %vm1142, %v1756, 0.0
      %1758 = vadd.xlane.f32.xlu0 %v1757
      %v1759 = vpop.xlane.xlu0 %1758
      %v1760 = vrcp.pop %v1759
      %v1761 = vmul.f32 %v1756, %v1760
      %v1762 = vpack.c.bf16 %v1761, %v1761
      %v1764 = vunpack.c.l.b16 %v1668
      %v1765 = vpack.c.b16 %v1764, %v1764
      %1766 = vrot.lane.b32.xlu0 %v1765, 120
      %v1767 = vpop.permute.xlu0 %1766
      %v1769 = vsel %vm1142, %v1762, 0
      %v1772 = vsel %vm1704, %v1767, 0
      %1774 = vmatpush.bf16.msra.mxu0 0
      %1775 = vmatpush.bf16.msra.mxu0 0
      %1776 = vmatpush.bf16.msra.mxu0 0
      %1777 = vmatpush.bf16.msra.mxu0 0
      %1778 = vmatpush.bf16.msra.mxu0 0
      %1779 = vmatpush.bf16.msra.mxu0 0
      %1780 = vmatpush.bf16.msra.mxu0 0
      %1781 = vmatpush.bf16.msra.mxu0 %v1772
      %1782 = vmatmul.bf16.gmra.mxu0 %v1769
      %v1783 = vpop.f32.mrf.mxu0
      %v1784 = vadd.f32 0.0, %v1783
      %v1785 = vpop.f32.mrf.mxu0
      %1786 = vdwg.mxu0
      %1787 = vrot.lane.b32.xlu0 %v1723, 112
      %v1788 = vpop.permute.xlu0 %1787
      %1789 = vrot.lane.b32.xlu0 %v1728, 112
      %v1790 = vpop.permute.xlu0 %1789
      %v1792 = vsel %vm1142, %v1788, 0
      %v1795 = vsel %vm1142, %v1790, 0
      %1797 = vmatpush.bf16.xpose.msra.mxu0 0
      %1798 = vmatpush.bf16.xpose.msra.mxu0 0
      %1799 = vmatpush.bf16.xpose.msra.mxu0 0
      %1800 = vmatpush.bf16.xpose.msra.mxu0 0
      %1801 = vmatpush.bf16.xpose.msra.mxu0 0
      %1802 = vmatpush.bf16.xpose.msra.mxu0 0
      %1803 = vmatpush.bf16.xpose.msra.mxu0 0
      %1804 = vmatpush.bf16.xpose.msra.mxu0 %v1795
      %1805 = vmatmul.bf16.gmra.mxu0 %v1792
      %v1806 = vpop.f32.mrf.mxu0
      %v1807 = vadd.f32 0.0, %v1806
      %v1808 = vpop.f32.mrf.mxu0
      %1809 = vdwg.mxu0
      %v1810 = vmul.f32 %v1807, 0.35355338
      %v1811 = vsel %vm1142, %v1810, -inf
      %1812 = vmax.xlane.f32.xlu0 %v1811
      %v1813 = vpop.xlane.xlu0 %1812
      %v1814 = vsub.f32 %v1810, %v1813
      %v1815 = vmul.f32 %v1814, 1.442695
      %v1816 = vpow.pop %v1815
      %v1817 = vsel %vm1142, %v1816, 0.0
      %1818 = vadd.xlane.f32.xlu0 %v1817
      %v1819 = vpop.xlane.xlu0 %1818
      %v1820 = vrcp.pop %v1819
      %v1821 = vmul.f32 %v1816, %v1820
      %v1822 = vpack.c.bf16 %v1821, %v1821
      %1823 = vrot.lane.b32.xlu0 %v1765, 112
      %v1824 = vpop.permute.xlu0 %1823
      %v1826 = vsel %vm1142, %v1822, 0
      %v1829 = vsel %vm1704, %v1824, 0
      %1831 = vmatpush.bf16.msra.mxu0 0
      %1832 = vmatpush.bf16.msra.mxu0 0
      %1833 = vmatpush.bf16.msra.mxu0 0
      %1834 = vmatpush.bf16.msra.mxu0 0
      %1835 = vmatpush.bf16.msra.mxu0 0
      %1836 = vmatpush.bf16.msra.mxu0 0
      %1837 = vmatpush.bf16.msra.mxu0 0
      %1838 = vmatpush.bf16.msra.mxu0 %v1829
      %1839 = vmatmul.bf16.gmra.mxu0 %v1826
      %v1840 = vpop.f32.mrf.mxu0
      %v1841 = vadd.f32 0.0, %v1840
      %v1842 = vpop.f32.mrf.mxu0
      %1843 = vdwg.mxu0
      %1844 = vrot.lane.b32.xlu0 %v1723, 104
      %v1845 = vpop.permute.xlu0 %1844
      %1846 = vrot.lane.b32.xlu0 %v1728, 104
      %v1847 = vpop.permute.xlu0 %1846
      %v1849 = vsel %vm1142, %v1845, 0
      %v1852 = vsel %vm1142, %v1847, 0
      %1854 = vmatpush.bf16.xpose.msra.mxu0 0
      %1855 = vmatpush.bf16.xpose.msra.mxu0 0
      %1856 = vmatpush.bf16.xpose.msra.mxu0 0
      %1857 = vmatpush.bf16.xpose.msra.mxu0 0
      %1858 = vmatpush.bf16.xpose.msra.mxu0 0
      %1859 = vmatpush.bf16.xpose.msra.mxu0 0
      %1860 = vmatpush.bf16.xpose.msra.mxu0 0
      %1861 = vmatpush.bf16.xpose.msra.mxu0 %v1852
      %1862 = vmatmul.bf16.gmra.mxu0 %v1849
      %v1863 = vpop.f32.mrf.mxu0
      %v1864 = vadd.f32 0.0, %v1863
      %v1865 = vpop.f32.mrf.mxu0
      %1866 = vdwg.mxu0
      %v1867 = vmul.f32 %v1864, 0.35355338
      %v1868 = vsel %vm1142, %v1867, -inf
      %1869 = vmax.xlane.f32.xlu0 %v1868
      %v1870 = vpop.xlane.xlu0 %1869
      %v1871 = vsub.f32 %v1867, %v1870
      %v1872 = vmul.f32 %v1871, 1.442695
      %v1873 = vpow.pop %v1872
      %v1874 = vsel %vm1142, %v1873, 0.0
      %1875 = vadd.xlane.f32.xlu0 %v1874
      %v1876 = vpop.xlane.xlu0 %1875
      %v1877 = vrcp.pop %v1876
      %v1878 = vmul.f32 %v1873, %v1877
      %v1879 = vpack.c.bf16 %v1878, %v1878
      %1880 = vrot.lane.b32.xlu0 %v1765, 104
      %v1881 = vpop.permute.xlu0 %1880
      %v1883 = vsel %vm1142, %v1879, 0
      %v1886 = vsel %vm1704, %v1881, 0
      %1888 = vmatpush.bf16.msra.mxu0 0
      %1889 = vmatpush.bf16.msra.mxu0 0
      %1890 = vmatpush.bf16.msra.mxu0 0
      %1891 = vmatpush.bf16.msra.mxu0 0
      %1892 = vmatpush.bf16.msra.mxu0 0
      %1893 = vmatpush.bf16.msra.mxu0 0
      %1894 = vmatpush.bf16.msra.mxu0 0
      %1895 = vmatpush.bf16.msra.mxu0 %v1886
      %1896 = vmatmul.bf16.gmra.mxu0 %v1883
      %v1897 = vpop.f32.mrf.mxu0
      %v1898 = vadd.f32 0.0, %v1897
      %v1899 = vpop.f32.mrf.mxu0
      %1900 = vdwg.mxu0
      %1902 = vrot.lane.b32.xlu0 %v1784, 8
      %v1903 = vpop.permute.xlu0 %1902
      %1906 = vrot.lane.b32.xlu0 %v1841, 16
      %v1907 = vpop.permute.xlu0 %1906
      %1910 = vrot.lane.b32.xlu0 %v1898, 24
      %v1911 = vpop.permute.xlu0 %1910
      %v1913 = vsel %vm1142, %v1718, %v1903
      %v1914 = vsel %vm1485, %v1913, %v1907
      %v1915 = vsel %vm1487, %v1914, %v1911
      %v1916 = vpack.c.bf16 %v1915, %v1915
      %s1917 = scalar_lea.vmem %s852, 112
      %v1918 = vld [vmem:[%s1917] sm:$0xf]
      %v1919 = vld [vmem:[%s1917 + $0x4] sm:$0xf]
      %v1920 = vld [vmem:[%s1917 + $0x8] sm:$0xf]
      %v1921 = vld [vmem:[%s1917 + $0xc] sm:$0xf]
      %v1922 = vld [vmem:[%s856 + $0x7] sm:$0x1]
      %v1923 = vperm.slane %v1922, 0
      %v1928 = vunpack.c.l.b16 %v1918
      %v1929 = vunpack.c.l.b16 %v1919
      %v1930 = vunpack.c.l.b16 %v1920
      %v1931 = vunpack.c.l.b16 %v1921
      %v1932 = vpack.c.b16 %v1929, %v1928
      %v1933 = vpack.c.b16 %v1931, %v1930
      %v1937 = vsel %vm928, %v1916, 0
      %1939 = vmatpush.bf16.msra.mxu0 0
      %1940 = vmatpush.bf16.msra.mxu0 0
      %1941 = vmatpush.bf16.msra.mxu0 0
      %1942 = vmatpush.bf16.msra.mxu0 0
      %1943 = vmatpush.bf16.msra.mxu0 0
      %1944 = vmatpush.bf16.msra.mxu0 0
      %1945 = vmatpush.bf16.msra.mxu0 %v1933
      %1946 = vmatpush.bf16.msra.mxu0 %v1932
      %1947 = vmatmul.bf16.gmra.mxu0 %v1937
      %v1948 = vpop.f32.mrf.mxu0
      %v1949 = vadd.f32 %v1923, %v1948
      %v1950 = vpop.f32.mrf.mxu0
      %1951 = vdwg.mxu0
      %v1952 = vadd.f32 %v1560, %v1949
      %v1953 = vsel %vm928, %v1952, 0.0
      %1954 = vadd.xlane.f32.xlu0 %v1953
      %v1955 = vpop.xlane.xlu0 %1954
      %v1956 = vmul.f32 %v1955, %v1535
      %v1957 = vsub.f32 %v1952, %v1956
      %v1958 = vmul.f32 %v1957, %v1957
      %v1959 = vsel %vm928, %v1958, 0.0
      %1960 = vadd.xlane.f32.xlu0 %v1959
      %v1961 = vpop.xlane.xlu0 %1960
      %v1962 = vmul.f32 %v1961, %v1535
      %v1963 = vadd.f32 %v1962, 1e-05
      %v1964 = vrsqrt.pop %v1963
      %v1965 = vmul.f32 %v1964, %v1963
      %v1966 = vmul.f32 %v1965, %v1964
      %v1967 = vmul.f32 0.5, %v1966
      %v1968 = vsub.f32 1.5, %v1967
      %v1969 = vmul.f32 %v1964, %v1968
      %vm1970 = vweird.f32 %v1963
      %vm1971 = vweird.f32 %v1964
      %vm1972 = vmor %vm1970, %vm1971
      %v1973 = vsel %vm1972, %v1964, %v1969
      %v1974 = vmul.f32 %v1957, %v1973
      %v1975 = vld [vmem:[%s860 + $0x2] sm:$0x1]
      %v1976 = vperm.slane %v1975, 0
      %v1977 = vmul.f32 %v1974, %v1976
      %v1978 = vld [vmem:[%s860 + $0x3] sm:$0x1]
      %v1979 = vperm.slane %v1978, 0
      %v1980 = vadd.f32 %v1977, %v1979
      %v1981 = vpack.c.bf16 %v1980, %v1980
      %v1982 = vld [vmem:[%s865] sm:$0xf]
      %v1983 = vld [vmem:[%s865 + $0x4] sm:$0xf]
      %v1984 = vld [vmem:[%s865 + $0x8] sm:$0xf]
      %v1985 = vld [vmem:[%s865 + $0xc] sm:$0xf]
      %v1986 = vld [vmem:[%s868] sm:$0x1]
      %v1988 = vperm.slane %v1986, 0
      %v1994 = vunpack.c.l.b16 %v1982
      %v1995 = vunpack.c.l.b16 %v1983
      %v1996 = vunpack.c.l.b16 %v1984
      %v1997 = vunpack.c.l.b16 %v1985
      %v1998 = vpack.c.b16 %v1995, %v1994
      %v1999 = vpack.c.b16 %v1997, %v1996
      %v2003 = vsel %vm928, %v1981, 0
      %2005 = vmatpush.bf16.msra.mxu0 0
      %2006 = vmatpush.bf16.msra.mxu0 0
      %2007 = vmatpush.bf16.msra.mxu0 0
      %2008 = vmatpush.bf16.msra.mxu0 0
      %2009 = vmatpush.bf16.msra.mxu0 0
      %2010 = vmatpush.bf16.msra.mxu0 0
      %2011 = vmatpush.bf16.msra.mxu0 %v1999
      %2012 = vmatpush.bf16.msra.mxu0 %v1998
      %2013 = vmatmul.bf16.gmra.mxu0 %v2003
      %v2014 = vpop.f32.mrf.mxu0
      %v2015 = vadd.f32 %v1988, %v2014
      %v2016 = vpop.f32.mrf.mxu0
      %2017 = vdwg.mxu0
      %v2018 = vmax.f32 %v2015, 0.0
      %v2019 = vpack.c.bf16 %v2018, %v2018
      %v2020 = vld [vmem:[%s873] sm:$0xf]
      %v2021 = vld [vmem:[%s873 + $0x4] sm:$0xf]
      %v2022 = vld [vmem:[%s873 + $0x8] sm:$0xf]
      %v2023 = vld [vmem:[%s873 + $0xc] sm:$0xf]
      %v2024 = vld [vmem:[%s873 + $0x10] sm:$0xf]
      %v2025 = vld [vmem:[%s873 + $0x14] sm:$0xf]
      %v2026 = vld [vmem:[%s873 + $0x18] sm:$0xf]
      %v2027 = vld [vmem:[%s873 + $0x1c] sm:$0xf]
      %v2028 = vld [vmem:[%s876] sm:$0x1]
      %v2030 = vperm.slane %v2028, 0
      %v2040 = vunpack.c.l.b16 %v2020
      %v2041 = vunpack.c.l.b16 %v2021
      %v2042 = vunpack.c.l.b16 %v2022
      %v2043 = vunpack.c.l.b16 %v2023
      %v2044 = vunpack.c.l.b16 %v2024
      %v2045 = vunpack.c.l.b16 %v2025
      %v2046 = vunpack.c.l.b16 %v2026
      %v2047 = vunpack.c.l.b16 %v2027
      %v2048 = vpack.c.b16 %v2041, %v2040
      %v2049 = vpack.c.b16 %v2043, %v2042
      %v2050 = vpack.c.b16 %v2045, %v2044
      %v2051 = vpack.c.b16 %v2047, %v2046
      %v2057 = vsel %vm1176, %v2019, 0
      %2059 = vmatpush.bf16.msra.mxu0 0
      %2060 = vmatpush.bf16.msra.mxu0 0
      %2061 = vmatpush.bf16.msra.mxu0 0
      %2062 = vmatpush.bf16.msra.mxu0 0
      %2063 = vmatpush.bf16.msra.mxu0 %v2051
      %2064 = vmatpush.bf16.msra.mxu0 %v2050
      %2065 = vmatpush.bf16.msra.mxu0 %v2049
      %2066 = vmatpush.bf16.msra.mxu0 %v2048
      %2067 = vmatmul.bf16.gmra.mxu0 %v2057
      %v2068 = vpop.f32.mrf.mxu0
      %v2069 = vadd.f32 %v2030, %v2068
      %v2070 = vpop.f32.mrf.mxu0
      %2071 = vdwg.mxu0
      %v2072 = vadd.f32 %v1980, %v2069
      %v2073 = vsel %vm928, %v2072, 0.0
      %2074 = vadd.xlane.f32.xlu0 %v2073
      %v2075 = vpop.xlane.xlu0 %2074
      %v2076 = vmul.f32 %v2075, %v1535
      %v2077 = vsub.f32 %v2072, %v2076
      %v2078 = vmul.f32 %v2077, %v2077
      %v2079 = vsel %vm928, %v2078, 0.0
      %2080 = vadd.xlane.f32.xlu0 %v2079
      %v2081 = vpop.xlane.xlu0 %2080
      %v2082 = vmul.f32 %v2081, %v1535
      %v2083 = vadd.f32 %v2082, 1e-05
      %v2084 = vrsqrt.pop %v2083
      %v2085 = vmul.f32 %v2084, %v2083
      %v2086 = vmul.f32 %v2085, %v2084
      %v2087 = vmul.f32 0.5, %v2086
      %v2088 = vsub.f32 1.5, %v2087
      %v2089 = vmul.f32 %v2084, %v2088
      %vm2090 = vweird.f32 %v2083
      %vm2091 = vweird.f32 %v2084
      %vm2092 = vmor %vm2090, %vm2091
      %v2093 = vsel %vm2092, %v2084, %v2089
      %v2094 = vmul.f32 %v2077, %v2093
      %v2095 = vld [vmem:[%s860 + $0x4] sm:$0x1]
      %v2096 = vperm.slane %v2095, 0
      %v2097 = vmul.f32 %v2094, %v2096
      %v2098 = vld [vmem:[%s860 + $0x5] sm:$0x1]
      %v2099 = vperm.slane %v2098, 0
      %v2100 = vadd.f32 %v2097, %v2099
      %2101 = vst.msk [vmem:[%s880] sm:$0xff] %vm928, %v2100
      %p2102 = scmp.lt.s32.totalorder %s27, 1
      %s2103 = scalar_select %p2102, %s27, 1
      %s2104 = smul.addr %s2103, 8
      %s2105 = scalar_lea.vmem %s12, %s2104
      // Predicated region
      $region73: #{multi_scale_color_decoder_forward.9} parent=67 // pred_check
        %p2106 = pneg %p437
      $region74: #{multi_scale_color_decoder_forward.9} parent=67 // pred_check_branch
        %2108 = sbr.rel (%p2106) target = $region76
      $region75: #{multi_scale_color_decoder_forward.9} parent=67 // pred_region
        _
      $region76: #{multi_scale_color_decoder_forward.9} parent=67 // pred_fallthru
        _
    $region68: #{multi_scale_color_decoder_forward.9} parent=5 // pred_fallthru
      _
    %p2109 = scmp.le.s32.totalorder 2, %s18
    // Predicated region
    $region77: #{multi_scale_color_decoder_forward.9} parent=5 // pred_check
      %p2110 = pneg %p2109
    $region78: #{multi_scale_color_decoder_forward.9} parent=5 // pred_check_branch
      %2112 = sbr.rel (%p2110) target = $region80
    $region79: #{multi_scale_color_decoder_forward.9} parent=5 // pred_region
      %s2113 = ssub.s32 %s18, 2
      // Predicated region
      $region81: #{multi_scale_color_decoder_forward.9} parent=79 // pred_check
        %p2114 = pneg %p443
      $region82: #{multi_scale_color_decoder_forward.9} parent=79 // pred_check_branch
        %2116 = sbr.rel (%p2114) target = $region84
      $region83: #{multi_scale_color_decoder_forward.9} parent=79 // pred_region
        %p2117 = scmp.lt.s32.totalorder %s29, 1
        %s2118 = scalar_select %p2117, %s29, 1
        %s2119 = smul.addr %s2118, 8
        %s2120 = scalar_lea.vmem %s12, %s2119
      $region84: #{multi_scale_color_decoder_forward.9} parent=79 // pred_fallthru
        _
    $region80: #{multi_scale_color_decoder_forward.9} parent=5 // pred_fallthru
      _
  $region6: #{multi_scale_color_decoder_forward.9} parent=0 // loop_footer
    %s22 = sadd.s32 1, %s18
  $region7: #{multi_scale_color_decoder_forward.9} parent=0 // loop_footer_branch
    %17 = sbr.rel target = $region3
  $region8: #{multi_scale_color_decoder_forward.9} parent=0 // loop_exit
    _

</llo_original>
